<compile_context>
chip_gen: v7x
topology: tpu7x:2x2x1
jax: 0.10.0
libtpu: 0.0.40
codegen_flags: <defaults>
</compile_context>

<pallas_src>
import functools

import jax
import jax.numpy as jnp
from jax import lax
from jax.experimental import pallas as pl
from jax.experimental.pallas import tpu as pltpu

KSIZE = 8                        # Conv1d kernel_size hardcoded in NMFEncoder
PAD_L = (KSIZE - 1) // 2         # 3  (PyTorch 'same' for even kernel)
PAD_R = (KSIZE - 1) - PAD_L      # 4
HALO = KSIZE - 1                 # 7 extra rows needed per conv layer
XL = 16                          # zero rows staged left of the input scratch (>= 3*PAD_L, 16-aligned)
LANE = 128


def _round_up(x, m):
    return ((x + m - 1) // m) * m


def _fused_nmf_kernel(x_ref, w1_ref, b1_ref, w2_ref, b2_ref, w3_ref, b3_ref,
                      o_ref, xpad_ref, *, T, tile_t, n_freq, c0p):
    """Fused 3x (Conv1d 'same' + ReLU) for one (batch, time-tile) grid point.

    x_ref    : (1, T, n_freq)        full-T input slab for this batch element (f32)
    w*_ref   : (K*Cin_pad, Cout_pad) im2col-reshaped weights (compute dtype)
    b*_ref   : (1, Cout_pad)         biases (f32)
    o_ref    : (1, tile_t, Cout3_pad) output tile
    xpad_ref : (tpad, c0p)           VMEM scratch: zero-padded, lane-padded input,
                                     filled once per batch element (t == 0).
    """
    cdt = xpad_ref.dtype
    t = pl.program_id(1)
    t0 = pl.multiple_of(t * tile_t, tile_t)          # global start time of this tile

    # --- Stage the input for this batch element into VMEM once (t == 0). ---
    @pl.when(t == 0)
    def _stage_input():
        xpad_ref[...] = jnp.zeros_like(xpad_ref)     # zero halos + channel padding
        xv = x_ref[0].astype(cdt)                    # (T, n_freq)
        if c0p > n_freq:                             # lane-pad channels to 128*
            xv = jnp.concatenate(
                [xv, jnp.zeros((T, c0p - n_freq), cdt)], axis=-1)
        xpad_ref[XL:XL + T, :] = xv

    n1 = tile_t + 2 * HALO       # layer-1 rows needed by this tile
    n2 = tile_t + HALO           # layer-2 rows
    n0 = n1 + HALO               # input rows (tile_t + 21)

    def conv_relu(a, w_ref, b_ref, n_out):
        # im2col + ONE deep MXU matmul (instead of 8 shallow accumulations).
        cols = [lax.slice_in_dim(a, k, k + n_out, axis=0) for k in range(KSIZE)]
        win = jnp.concatenate(cols, axis=-1)                      # (n_out, K*Cin)
        pre = jnp.dot(win, w_ref[...], preferred_element_type=jnp.float32)
        return jnp.maximum(pre + b_ref[...], 0.0)                 # f32

    def mask_rows(a, first_global_row):
        # Zero halo rows outside [0, T): reproduces per-layer 'same' zero padding.
        g = first_global_row + lax.broadcasted_iota(jnp.int32, (a.shape[0], 1), 0)
        return jnp.where((g >= 0) & (g < T), a, 0.0)

    # ---- layer 1: reads padded input rows [t0-9, t0+tile_t+12) ----
    x0 = xpad_ref[pl.ds(t0 + (XL - 3 * PAD_L), n0), :]            # (n0, c0p)
    a1 = mask_rows(conv_relu(x0, w1_ref, b1_ref, n1),
                   t0 - 2 * PAD_L).astype(cdt)                    # rows [t0-6, t0+tile_t+8)
    # ---- layer 2 ----
    a2 = mask_rows(conv_relu(a1, w2_ref, b2_ref, n2),
                   t0 - PAD_L).astype(cdt)                        # rows [t0-3, t0+tile_t+4)
    # ---- layer 3 ----
    a3 = conv_relu(a2, w3_ref, b3_ref, tile_t)                    # rows [t0, t0+tile_t)
    o_ref[0] = a3.astype(o_ref.dtype)


def _prep_weight(w_oik, cin_pad, cout_pad, dtype):
    """PyTorch (Cout, Cin, K) -> im2col matrix (K*Cin_pad, Cout_pad), row = k*Cin_pad + c."""
    cout, cin, k = w_oik.shape
    w_kio = jnp.transpose(w_oik, (2, 1, 0))                       # (K, Cin, Cout)
    w_kio = jnp.pad(w_kio, ((0, 0), (0, cin_pad - cin), (0, cout_pad - cout)))
    return w_kio.reshape(k * cin_pad, cout_pad).astype(dtype)


def _prep_bias(b, cout_pad):
    return jnp.pad(b, (0, cout_pad - b.shape[0]))[None, :].astype(jnp.float32)


def nmf_encoder_forward(X_nct, params, *, tile_t=256, compute_dtype=jnp.bfloat16):
    """Fused Pallas forward.  X_nct: (B, n_freq, T)  ->  (B, n_comp, T)."""
    B, n_freq, T = X_nct.shape
    (w1, b1), (w2, b2), (w3, b3) = params
    c1, c2, n_comp = w1.shape[0], w2.shape[0], w3.shape[0]        # 256, 128, n_comp

    c0p = _round_up(n_freq, LANE)        # lane-padded input channels (VMEM only)
    c3p = _round_up(n_comp, LANE)        # lane-dense output channels (sliced off below)

    tile_t = _round_up(max(8, min(tile_t, T)), 8)
    Tr = _round_up(T, tile_t)
    nt = Tr // tile_t
    tpad = _round_up(Tr + XL + 3 * PAD_R, 8)   # padded-time scratch length

    x_btc = jnp.transpose(X_nct, (0, 2, 1))    # channels-last (B, T, n_freq)

    w1m = _prep_weight(w1, c0p, c1, compute_dtype)
    w2m = _prep_weight(w2, c1, c2, compute_dtype)
    w3m = _prep_weight(w3, c2, c3p, compute_dtype)
    b1m, b2m, b3m = _prep_bias(b1, c1), _prep_bias(b2, c2), _prep_bias(b3, c3p)

    kernel = functools.partial(_fused_nmf_kernel, T=T, tile_t=tile_t,
                               n_freq=n_freq, c0p=c0p)

    out = pl.pallas_call(
        kernel,
        out_shape=jax.ShapeDtypeStruct((B, Tr, c3p), X_nct.dtype),
        grid_spec=pltpu.PrefetchScalarGridSpec(
            num_scalar_prefetch=0,
            grid=(B, nt),
            in_specs=[
                pl.BlockSpec((1, T, n_freq), lambda b, t: (b, 0, 0)),   # fetched once per b
                pl.BlockSpec((KSIZE * c0p, c1), lambda b, t: (0, 0)),
                pl.BlockSpec((1, c1), lambda b, t: (0, 0)),
                pl.BlockSpec((KSIZE * c1, c2), lambda b, t: (0, 0)),
                pl.BlockSpec((1, c2), lambda b, t: (0, 0)),
                pl.BlockSpec((KSIZE * c2, c3p), lambda b, t: (0, 0)),
                pl.BlockSpec((1, c3p), lambda b, t: (0, 0)),
            ],
            out_specs=pl.BlockSpec((1, tile_t, c3p), lambda b, t: (b, t, 0)),
            scratch_shapes=[pltpu.VMEM((tpad, c0p), compute_dtype)],
        ),
        compiler_params=pltpu.CompilerParams(
            dimension_semantics=("parallel", "arbitrary"),
            vmem_limit_bytes=32 * 1024 * 1024,
        ),
    )(x_btc, w1m, b1m, w2m, b2m, w3m, b3m)

    return jnp.transpose(out[:, :T, :n_comp], (0, 2, 1))   # (B, n_comp, T)


def init_nmf_encoder_params(key, n_freq, n_comp):
    """Deterministic init mimicking PyTorch Conv1d default (uniform +/- 1/sqrt(fan_in)).

    Weights kept in PyTorch layout (Cout, Cin, K); biases (Cout,)."""
    layer_dims = [(n_freq, 256), (256, 128), (128, n_comp)]
    params = []
    for i, (cin, cout) in enumerate(layer_dims):
        kw, kb = jax.random.split(jax.random.fold_in(key, i))
        bound = 1.0 / float(cin * KSIZE) ** 0.5
        w = jax.random.uniform(kw, (cout, cin, KSIZE), jnp.float32, -bound, bound)
        b = jax.random.uniform(kb, (cout,), jnp.float32, -bound, bound)
        params.append((w, b))
    return params


def nmf_encoder_reference(X_nct, params):
    """Pure-JAX reference (matches torch.nn.Conv1d(padding='same') + ReLU, left=3/right=4)."""
    x = X_nct
    for w_oik, b in params:
        y = lax.conv_general_dilated(
            x, w_oik, window_strides=(1,), padding=[(PAD_L, PAD_R)],
            dimension_numbers=("NCH", "OIH", "NCH"),
        )
        x = jax.nn.relu(y + b[None, :, None])
    return x


if __name__ == "__main__":
    B, n_freq, n_comp, T = 2, 64, 32, 240

    key = jax.random.PRNGKey(0)
    k_x, k_p = jax.random.split(key)
    X = jax.random.uniform(k_x, (B, n_freq, T), jnp.float32)   # like torch.rand
    params = init_nmf_encoder_params(k_p, n_freq, n_comp)

    Href = jax.block_until_ready(nmf_encoder_reference(X, params))

    # f32 compute path (tight check of the fused / tiled / halo-masked indexing).
    H32 = jax.block_until_ready(
        nmf_encoder_forward(X, params, tile_t=128, compute_dtype=jnp.float32))
    assert H32.shape == (B, n_comp, T), H32.shape
    assert jnp.allclose(H32, Href, rtol=1e-3, atol=1e-4), (
        float(jnp.max(jnp.abs(H32 - Href))))

    # bf16 compute path (production config: bf16 MXU inputs, f32 accumulation).
    Hbf = jax.block_until_ready(nmf_encoder_forward(X, params, tile_t=128))
    assert Hbf.shape == (B, n_comp, T), Hbf.shape
    assert jnp.allclose(Hbf, Href, rtol=2e-2, atol=2e-2), (
        float(jnp.max(jnp.abs(Hbf - Href))))

    print("KERNEL_OK")
</pallas_src>

<mosaic_0001>
module attributes {stable_mosaic.version = 11 : i64} {
  func.func @_fused_nmf_kernel(%arg0: i32, %arg1: i32, %arg2: memref<1x240x64xf32, #tpu.memory_space<vmem>>, %arg3: memref<1024x256xf32, #tpu.memory_space<vmem>>, %arg4: memref<1x256xf32, #tpu.memory_space<vmem>>, %arg5: memref<2048x128xf32, #tpu.memory_space<vmem>>, %arg6: memref<1x128xf32, #tpu.memory_space<vmem>>, %arg7: memref<1024x128xf32, #tpu.memory_space<vmem>>, %arg8: memref<1x128xf32, #tpu.memory_space<vmem>>, %arg9: memref<1x128x128xf32, #tpu.memory_space<vmem>>, %arg10: memref<288x128xf32, #tpu.memory_space<vmem>>) attributes {dimension_semantics = [#tpu.dimension_semantics<parallel>, #tpu.dimension_semantics<arbitrary>], iteration_bounds = array<i64: 2, 2>, scalar_prefetch = 0 : i64, scratch_operands = 1 : i64, tpu.core_type = #tpu.core_type<tc>, window_params = [{transform_indices = @transform_0, window_bounds = array<i64: 1, 240, 64>}, {pipeline_mode = #tpu.pipeline_mode<synchronous>, transform_indices = @transform_1, window_bounds = array<i64: 1024, 256>}, {pipeline_mode = #tpu.pipeline_mode<synchronous>, transform_indices = @transform_2, window_bounds = array<i64: 1, 256>}, {pipeline_mode = #tpu.pipeline_mode<synchronous>, transform_indices = @transform_3, window_bounds = array<i64: 2048, 128>}, {pipeline_mode = #tpu.pipeline_mode<synchronous>, transform_indices = @transform_4, window_bounds = array<i64: 1, 128>}, {pipeline_mode = #tpu.pipeline_mode<synchronous>, transform_indices = @transform_5, window_bounds = array<i64: 1024, 128>}, {pipeline_mode = #tpu.pipeline_mode<synchronous>, transform_indices = @transform_6, window_bounds = array<i64: 1, 128>}, {transform_indices = @transform_7, window_bounds = array<i64: 1, 128, 128>}]} {
    %c128_i32 = arith.constant 128 : i32
    %0 = arith.muli %arg1, %c128_i32 : i32
    %1 = tpu.assume_multiple %0, 128 : i32
    %c0_i32 = arith.constant 0 : i32
    %2 = arith.cmpi eq, %arg1, %c0_i32 : i32
    %3 = arith.extui %2 : i1 to i32
    %c0_i32_0 = arith.constant 0 : i32
    %4 = arith.cmpi ne, %3, %c0_i32_0 : i32
    scf.if %4 {
      %cst_26 = arith.constant 0.000000e+00 : f32
      %85 = vector.broadcast %cst_26 : f32 to vector<288x128xf32>
      %c0_27 = arith.constant 0 : index
      %c0_28 = arith.constant 0 : index
      %86 = vector.load %arg10[%c0_27, %c0_28] : memref<288x128xf32, #tpu.memory_space<vmem>>, vector<288x128xf32>
      tpu.vector_store %arg10[%c0_27, %c0_28], %85 {strides = array<i32>} : memref<288x128xf32, #tpu.memory_space<vmem>>, vector<288x128xf32>,
      %c0_29 = arith.constant 0 : index
      %c0_30 = arith.constant 0 : index
      %c0_31 = arith.constant 0 : index
      %87 = vector.load %arg2[%c0_29, %c0_30, %c0_31] : memref<1x240x64xf32, #tpu.memory_space<vmem>>, vector<1x240x64xf32>
      %88 = vector.shape_cast %87 : vector<1x240x64xf32> to vector<240x64xf32>
      %cst_32 = arith.constant 0.000000e+00 : f32
      %89 = vector.broadcast %cst_32 : f32 to vector<240x64xf32>
      %90 = tpu.concatenate %88, %89 in 1 : vector<240x64xf32>, vector<240x64xf32> -> vector<240x128xf32>
      %c16 = arith.constant 16 : index
      %c0_33 = arith.constant 0 : index
      %91 = vector.load %arg10[%c16, %c0_33] : memref<288x128xf32, #tpu.memory_space<vmem>>, vector<240x128xf32>
      tpu.vector_store %arg10[%c16, %c0_33], %90 {strides = array<i32>} : memref<288x128xf32, #tpu.memory_space<vmem>>, vector<240x128xf32>,
    } else {
    }
    %c7_i32 = arith.constant 7 : i32
    %5 = arith.addi %1, %c7_i32 : i32
    %6 = arith.index_cast %5 : i32 to index
    %c0 = arith.constant 0 : index
    %7 = vector.load %arg10[%6, %c0] : memref<288x128xf32, #tpu.memory_space<vmem>>, vector<149x128xf32>
    %8 = vector.extract_strided_slice %7 {offsets = [0, 0], sizes = [142, 128], strides = [1, 1]} : vector<149x128xf32> to vector<142x128xf32>
    %9 = vector.extract_strided_slice %7 {offsets = [1, 0], sizes = [142, 128], strides = [1, 1]} : vector<149x128xf32> to vector<142x128xf32>
    %10 = vector.extract_strided_slice %7 {offsets = [2, 0], sizes = [142, 128], strides = [1, 1]} : vector<149x128xf32> to vector<142x128xf32>
    %11 = vector.extract_strided_slice %7 {offsets = [3, 0], sizes = [142, 128], strides = [1, 1]} : vector<149x128xf32> to vector<142x128xf32>
    %12 = vector.extract_strided_slice %7 {offsets = [4, 0], sizes = [142, 128], strides = [1, 1]} : vector<149x128xf32> to vector<142x128xf32>
    %13 = vector.extract_strided_slice %7 {offsets = [5, 0], sizes = [142, 128], strides = [1, 1]} : vector<149x128xf32> to vector<142x128xf32>
    %14 = vector.extract_strided_slice %7 {offsets = [6, 0], sizes = [142, 128], strides = [1, 1]} : vector<149x128xf32> to vector<142x128xf32>
    %15 = vector.extract_strided_slice %7 {offsets = [7, 0], sizes = [142, 128], strides = [1, 1]} : vector<149x128xf32> to vector<142x128xf32>
    %16 = tpu.concatenate %8, %9, %10, %11, %12, %13, %14, %15 in 1 : vector<142x128xf32>, vector<142x128xf32>, vector<142x128xf32>, vector<142x128xf32>, vector<142x128xf32>, vector<142x128xf32>, vector<142x128xf32>, vector<142x128xf32> -> vector<142x1024xf32>
    %c0_1 = arith.constant 0 : index
    %c0_2 = arith.constant 0 : index
    %17 = vector.load %arg3[%c0_1, %c0_2] : memref<1024x256xf32, #tpu.memory_space<vmem>>, vector<1024x256xf32>
    %cst = arith.constant dense<0.000000e+00> : vector<142x256xf32>
    %18 = tpu.matmul %16, %17, %cst {dimension_numbers = #tpu.dot_dimension_numbers<[1], [0], [0], [1], [0, 0, 1, 1], [], []>} : vector<142x1024xf32>, vector<1024x256xf32>, vector<142x256xf32> -> vector<142x256xf32>
    %c0_3 = arith.constant 0 : index
    %c0_4 = arith.constant 0 : index
    %19 = vector.load %arg4[%c0_3, %c0_4] : memref<1x256xf32, #tpu.memory_space<vmem>>, vector<1x256xf32>
    %20 = vector.broadcast %19 : vector<1x256xf32> to vector<142x256xf32>
    %21 = arith.addf %18, %20 : vector<142x256xf32>
    %cst_5 = arith.constant 0.000000e+00 : f32
    %22 = vector.broadcast %cst_5 : f32 to vector<142x256xf32>
    %23 = arith.maximumf %21, %22 : vector<142x256xf32>
    %c6_i32 = arith.constant 6 : i32
    %24 = arith.subi %1, %c6_i32 : i32
    %25 = tpu.iota {dimensions = array<i32: 0>} : vector<142x1xi32>
    %26 = vector.broadcast %24 : i32 to vector<142x1xi32>
    %27 = arith.addi %26, %25 : vector<142x1xi32>
    %c0_i32_6 = arith.constant 0 : i32
    %28 = vector.broadcast %c0_i32_6 : i32 to vector<142x1xi32>
    %29 = arith.cmpi sge, %27, %28 : vector<142x1xi32>
    %c240_i32 = arith.constant 240 : i32
    %30 = vector.broadcast %c240_i32 : i32 to vector<142x1xi32>
    %31 = arith.cmpi slt, %27, %30 : vector<142x1xi32>
    %32 = arith.andi %29, %31 : vector<142x1xi1>
    %cst_7 = arith.constant 0.000000e+00 : f32
    %33 = vector.shape_cast %32 : vector<142x1xi1> to vector<142x1xi1>
    %34 = vector.broadcast %33 : vector<142x1xi1> to vector<142x256xi1>
    %35 = vector.broadcast %cst_7 : f32 to vector<142x256xf32>
    %36 = arith.select %34, %23, %35 : vector<142x256xi1>, vector<142x256xf32>
    %37 = vector.extract_strided_slice %36 {offsets = [0, 0], sizes = [135, 256], strides = [1, 1]} : vector<142x256xf32> to vector<135x256xf32>
    %38 = vector.extract_strided_slice %36 {offsets = [1, 0], sizes = [135, 256], strides = [1, 1]} : vector<142x256xf32> to vector<135x256xf32>
    %39 = vector.extract_strided_slice %36 {offsets = [2, 0], sizes = [135, 256], strides = [1, 1]} : vector<142x256xf32> to vector<135x256xf32>
    %40 = vector.extract_strided_slice %36 {offsets = [3, 0], sizes = [135, 256], strides = [1, 1]} : vector<142x256xf32> to vector<135x256xf32>
    %41 = vector.extract_strided_slice %36 {offsets = [4, 0], sizes = [135, 256], strides = [1, 1]} : vector<142x256xf32> to vector<135x256xf32>
    %42 = vector.extract_strided_slice %36 {offsets = [5, 0], sizes = [135, 256], strides = [1, 1]} : vector<142x256xf32> to vector<135x256xf32>
    %43 = vector.extract_strided_slice %36 {offsets = [6, 0], sizes = [135, 256], strides = [1, 1]} : vector<142x256xf32> to vector<135x256xf32>
    %44 = vector.extract_strided_slice %36 {offsets = [7, 0], sizes = [135, 256], strides = [1, 1]} : vector<142x256xf32> to vector<135x256xf32>
    %45 = tpu.concatenate %37, %38, %39, %40, %41, %42, %43, %44 in 1 : vector<135x256xf32>, vector<135x256xf32>, vector<135x256xf32>, vector<135x256xf32>, vector<135x256xf32>, vector<135x256xf32>, vector<135x256xf32>, vector<135x256xf32> -> vector<135x2048xf32>
    %c0_8 = arith.constant 0 : index
    %c0_9 = arith.constant 0 : index
    %46 = vector.load %arg5[%c0_8, %c0_9] : memref<2048x128xf32, #tpu.memory_space<vmem>>, vector<2048x128xf32>
    %cst_10 = arith.constant dense<0.000000e+00> : vector<135x128xf32>
    %47 = tpu.matmul %45, %46, %cst_10 {dimension_numbers = #tpu.dot_dimension_numbers<[1], [0], [0], [1], [0, 0, 1, 1], [], []>} : vector<135x2048xf32>, vector<2048x128xf32>, vector<135x128xf32> -> vector<135x128xf32>
    %c0_11 = arith.constant 0 : index
    %c0_12 = arith.constant 0 : index
    %48 = vector.load %arg6[%c0_11, %c0_12] : memref<1x128xf32, #tpu.memory_space<vmem>>, vector<1x128xf32>
    %49 = vector.broadcast %48 : vector<1x128xf32> to vector<135x128xf32>
    %50 = arith.addf %47, %49 : vector<135x128xf32>
    %cst_13 = arith.constant 0.000000e+00 : f32
    %51 = vector.broadcast %cst_13 : f32 to vector<135x128xf32>
    %52 = arith.maximumf %50, %51 : vector<135x128xf32>
    %c3_i32 = arith.constant 3 : i32
    %53 = arith.subi %1, %c3_i32 : i32
    %54 = tpu.iota {dimensions = array<i32: 0>} : vector<135x1xi32>
    %55 = vector.broadcast %53 : i32 to vector<135x1xi32>
    %56 = arith.addi %55, %54 : vector<135x1xi32>
    %c0_i32_14 = arith.constant 0 : i32
    %57 = vector.broadcast %c0_i32_14 : i32 to vector<135x1xi32>
    %58 = arith.cmpi sge, %56, %57 : vector<135x1xi32>
    %c240_i32_15 = arith.constant 240 : i32
    %59 = vector.broadcast %c240_i32_15 : i32 to vector<135x1xi32>
    %60 = arith.cmpi slt, %56, %59 : vector<135x1xi32>
    %61 = arith.andi %58, %60 : vector<135x1xi1>
    %cst_16 = arith.constant 0.000000e+00 : f32
    %62 = vector.shape_cast %61 : vector<135x1xi1> to vector<135x1xi1>
    %63 = vector.broadcast %62 : vector<135x1xi1> to vector<135x128xi1>
    %64 = vector.broadcast %cst_16 : f32 to vector<135x128xf32>
    %65 = arith.select %63, %52, %64 : vector<135x128xi1>, vector<135x128xf32>
    %66 = vector.extract_strided_slice %65 {offsets = [0, 0], sizes = [128, 128], strides = [1, 1]} : vector<135x128xf32> to vector<128x128xf32>
    %67 = vector.extract_strided_slice %65 {offsets = [1, 0], sizes = [128, 128], strides = [1, 1]} : vector<135x128xf32> to vector<128x128xf32>
    %68 = vector.extract_strided_slice %65 {offsets = [2, 0], sizes = [128, 128], strides = [1, 1]} : vector<135x128xf32> to vector<128x128xf32>
    %69 = vector.extract_strided_slice %65 {offsets = [3, 0], sizes = [128, 128], strides = [1, 1]} : vector<135x128xf32> to vector<128x128xf32>
    %70 = vector.extract_strided_slice %65 {offsets = [4, 0], sizes = [128, 128], strides = [1, 1]} : vector<135x128xf32> to vector<128x128xf32>
    %71 = vector.extract_strided_slice %65 {offsets = [5, 0], sizes = [128, 128], strides = [1, 1]} : vector<135x128xf32> to vector<128x128xf32>
    %72 = vector.extract_strided_slice %65 {offsets = [6, 0], sizes = [128, 128], strides = [1, 1]} : vector<135x128xf32> to vector<128x128xf32>
    %73 = vector.extract_strided_slice %65 {offsets = [7, 0], sizes = [128, 128], strides = [1, 1]} : vector<135x128xf32> to vector<128x128xf32>
    %74 = tpu.concatenate %66, %67, %68, %69, %70, %71, %72, %73 in 1 : vector<128x128xf32>, vector<128x128xf32>, vector<128x128xf32>, vector<128x128xf32>, vector<128x128xf32>, vector<128x128xf32>, vector<128x128xf32>, vector<128x128xf32> -> vector<128x1024xf32>
    %c0_17 = arith.constant 0 : index
    %c0_18 = arith.constant 0 : index
    %75 = vector.load %arg7[%c0_17, %c0_18] : memref<1024x128xf32, #tpu.memory_space<vmem>>, vector<1024x128xf32>
    %cst_19 = arith.constant dense<0.000000e+00> : vector<128x128xf32>
    %76 = tpu.matmul %74, %75, %cst_19 {dimension_numbers = #tpu.dot_dimension_numbers<[1], [0], [0], [1], [0, 0, 1, 1], [], []>} : vector<128x1024xf32>, vector<1024x128xf32>, vector<128x128xf32> -> vector<128x128xf32>
    %c0_20 = arith.constant 0 : index
    %c0_21 = arith.constant 0 : index
    %77 = vector.load %arg8[%c0_20, %c0_21] : memref<1x128xf32, #tpu.memory_space<vmem>>, vector<1x128xf32>
    %78 = vector.broadcast %77 : vector<1x128xf32> to vector<128x128xf32>
    %79 = arith.addf %76, %78 : vector<128x128xf32>
    %cst_22 = arith.constant 0.000000e+00 : f32
    %80 = vector.broadcast %cst_22 : f32 to vector<128x128xf32>
    %81 = arith.maximumf %79, %80 : vector<128x128xf32>
    %c0_23 = arith.constant 0 : index
    %c0_24 = arith.constant 0 : index
    %c0_25 = arith.constant 0 : index
    %82 = vector.load %arg9[%c0_23, %c0_24, %c0_25] : memref<1x128x128xf32, #tpu.memory_space<vmem>>, vector<1x128x128xf32>
    %83 = vector.shape_cast %82 : vector<1x128x128xf32> to vector<128x128xf32>
    %84 = vector.shape_cast %81 : vector<128x128xf32> to vector<1x128x128xf32>
    tpu.vector_store %arg9[%c0_23, %c0_24, %c0_25], %84 {strides = array<i32>} : memref<1x128x128xf32, #tpu.memory_space<vmem>>, vector<1x128x128xf32>,
    return
  }
  func.func @transform_0(%arg0: i32, %arg1: i32) -> (i32, i32, i32) {
    %c0_i32 = arith.constant 0 : i32
    %c0_i32_0 = arith.constant 0 : i32
    %c0_i32_1 = arith.constant 0 : i32
    return %arg0, %c0_i32, %c0_i32_0 : i32, i32, i32
  }
  func.func @transform_1(%arg0: i32, %arg1: i32) -> (i32, i32) {
    %c0_i32 = arith.constant 0 : i32
    %c0_i32_0 = arith.constant 0 : i32
    %c0_i32_1 = arith.constant 0 : i32
    return %c0_i32, %c0_i32_0 : i32, i32
  }
  func.func @transform_2(%arg0: i32, %arg1: i32) -> (i32, i32) {
    %c0_i32 = arith.constant 0 : i32
    %c0_i32_0 = arith.constant 0 : i32
    %c0_i32_1 = arith.constant 0 : i32
    return %c0_i32, %c0_i32_0 : i32, i32
  }
  func.func @transform_3(%arg0: i32, %arg1: i32) -> (i32, i32) {
    %c0_i32 = arith.constant 0 : i32
    %c0_i32_0 = arith.constant 0 : i32
    %c0_i32_1 = arith.constant 0 : i32
    return %c0_i32, %c0_i32_0 : i32, i32
  }
  func.func @transform_4(%arg0: i32, %arg1: i32) -> (i32, i32) {
    %c0_i32 = arith.constant 0 : i32
    %c0_i32_0 = arith.constant 0 : i32
    %c0_i32_1 = arith.constant 0 : i32
    return %c0_i32, %c0_i32_0 : i32, i32
  }
  func.func @transform_5(%arg0: i32, %arg1: i32) -> (i32, i32) {
    %c0_i32 = arith.constant 0 : i32
    %c0_i32_0 = arith.constant 0 : i32
    %c0_i32_1 = arith.constant 0 : i32
    return %c0_i32, %c0_i32_0 : i32, i32
  }
  func.func @transform_6(%arg0: i32, %arg1: i32) -> (i32, i32) {
    %c0_i32 = arith.constant 0 : i32
    %c0_i32_0 = arith.constant 0 : i32
    %c0_i32_1 = arith.constant 0 : i32
    return %c0_i32, %c0_i32_0 : i32, i32
  }
  func.func @transform_7(%arg0: i32, %arg1: i32) -> (i32, i32, i32) {
    %c0_i32 = arith.constant 0 : i32
    %c0_i32_0 = arith.constant 0 : i32
    return %arg0, %arg1, %c0_i32 : i32, i32, i32
  }
}

</mosaic_0001>

<llo_original>
// kernel: tpu_custom_call.1
$region0: #{tpu_custom_call.1}
  #allocation0 [shape = 'u32[]', space=smem, size = 0x4, offset = 0x4, fixed_abs, tag = 'smem constant byte address 0x4 - core index']
  #allocation1 [shape = 'u32[144,128]{1,0:T(1,128)}', space=vmem, size = 0x12000, scoped, tag = 'internal scratch']
  #allocation2 [shape = 'f32[288,128]{1,0:T(8,128)}', space=vmem, size = 0x24000, scoped, tag = 'scratch operand']
  %s0 = inlined_call_operand.vmem [shape: f32[2,240,64], index: 0, kind: input, shape index: {}]
  %s1 = inlined_call_operand.hbm [shape: f32[1024,256], index: 1, kind: input, shape index: {}]
  %s2 = inlined_call_operand.vmem [shape: f32[1,256], index: 2, kind: input, shape index: {}]
  %s3 = inlined_call_operand.hbm [shape: f32[2048,128], index: 3, kind: input, shape index: {}]
  %s4 = inlined_call_operand.vmem [shape: f32[1,128], index: 4, kind: input, shape index: {}]
  %s5 = inlined_call_operand.hbm [shape: f32[1024,128], index: 5, kind: input, shape index: {}]
  %s6 = inlined_call_operand.vmem [shape: f32[1,128], index: 6, kind: input, shape index: {}]
  %s7 = inlined_call_operand.hbm [shape: f32[2,256,128], index: 7, kind: output, shape index: {}]
  %s8 = sld [smem:[#allocation0]]
  $region77: #{tpu_custom_call.1} parent=0
    _
  %s10 = ssub.s32 1, %s8
  %s11 = scalar_select 0, %s10, %s8
  $region1: #{tpu_custom_call.1} parent=0
    #allocation3 [shape = 'u8[1048576]{0}', space=vmem, size = 0x100000, scoped, tag = 'input window, operand 1, single buffered']
    #allocation4 [shape = 's32[2]{0}', space=sflag, size = 0x8, scoped, tag = 'scoped memory for tpu_custom_call.1']
    #allocation5 [shape = 's32[2]{0}', space=sflag, size = 0x8, scoped, tag = 'scoped memory for tpu_custom_call.1']
    #allocation6 [shape = 'u8[1048576]{0}', space=vmem, size = 0x100000, scoped, tag = 'input window, operand 3, single buffered']
    #allocation7 [shape = 's32[1]{0}', space=sflag, size = 0x4, scoped, tag = 'scoped memory for tpu_custom_call.1']
    #allocation8 [shape = 'u8[524288]{0}', space=vmem, size = 0x80000, scoped, tag = 'input window, operand 5, single buffered']
    #allocation9 [shape = 'u8[131072]{0}', space=vmem, size = 0x20000, scoped, tag = 'output window, operand 0']
    %12 = vsyncpa [#allocation4], 0
    %13 = vsyncpa [#allocation7], 0
    %14 = vsyncpa [#allocation5], 0
    %s15 = scalar_lea.sflag [#allocation5], 1
    %16 = vsyncpa %s15, 0
    loop: start=0, step=1, limit=6
    $region2: #{tpu_custom_call.1} parent=1 // loop_pre_header
      _
    $region3: #{tpu_custom_call.1} parent=1 // loop_header
      %s18 = sphi 0, %s22
      %p19 = scmp.ge.s32.totalorder %s18, 6
      %s25 = sphi 0, %s37
      %s26 = sphi 0, %s33
      %s27 = sphi 0, %s25
      %s28 = sphi 0, %s26
      %s29 = sphi 0, %s27
      %s30 = sphi 0, %s28
      %s40 = sphi 0, %s42
      %s43 = sphi 0, %s40
      %s44 = sphi 0, %s43
      %s60 = sphi 0, %s44
      %s64 = sphi 0, %s64
      %s66 = sphi 0, %s64
      %s67 = sphi 0, %s66
      %s81 = sphi 0, %s67
      %s85 = sphi 0, %s85
      %s87 = sphi 0, %s85
      %s88 = sphi 0, %s87
      %s102 = sphi 0, %s88
      %s106 = sphi 0, %s106
      %s108 = sphi 0, %s106
      %s109 = sphi 0, %s108
      %s123 = sphi 0, %s109
      %s127 = sphi 0, %s127
      %s129 = sphi 0, %s127
      %s130 = sphi 0, %s129
      %s144 = sphi 0, %s130
      %s148 = sphi 0, %s148
      %s150 = sphi 0, %s148
      %s151 = sphi 0, %s150
      %s165 = sphi 0, %s151
      %s169 = sphi 0, %s169
      %s171 = sphi 0, %s169
      %s172 = sphi 0, %s171
      %s186 = sphi 0, %s172
      %s194 = sphi 0, %s196
      %s197 = sphi 0, %s194
      %s198 = sphi 0, %s197
      %s214 = sphi 0, %s198
    $region4: #{tpu_custom_call.1} parent=1 // loop_header_branch
      %21 = sbr.rel (%p19) target = $region8
    $region5: #{tpu_custom_call.1} parent=1 // loop_body
      %s23 = ssub.s32 %s18, 1
      %s24 = ssub.s32 %s18, 2
      %s31 = sadd.s32 1, %s26
      %p32 = scmp.ge.s32.totalorder %s31, 2
      %s33 = scalar_select %p32, 0, %s31
      %s34 = sadd.s32 1, %s25
      %s35 = scalar_select %p32, %s34, %s25
      %p36 = scmp.ge.s32.totalorder %s35, 2
      %s37 = scalar_select %p36, 0, %s35
      %s38 = ssub.s32 %s25, %s37
      %p39 = scmp.eq.s32.totalorder %s38, 0
      %s41 = sadd.s32 %s40, 1
      %s42 = scalar_select %p39, %s40, %s41
      %p45 = pneg %p39
      %p46 = scmp.eq.s32.totalorder %s18, 3
      %p47 = por %p45, %p46
      %p48 = scmp.ne.s32.totalorder %s40, %s43
      %p49 = scmp.eq.s32.totalorder %s18, 0
      %p50 = por %p48, %p49
      %p51 = scmp.ne.s32.totalorder %s40, %s43
      %p52 = scmp.eq.s32.totalorder %s23, 3
      %p53 = por %p51, %p52
      %p54 = scmp.ne.s32.totalorder %s43, %s44
      %p55 = scmp.eq.s32.totalorder %s23, 0
      %p56 = por %p54, %p55
      %p57 = scmp.ne.s32.totalorder %s43, %s44
      %p58 = scmp.eq.s32.totalorder %s24, 3
      %p59 = por %p57, %p58
      %p61 = scmp.ne.s32.totalorder %s44, %s60
      %p62 = scmp.eq.s32.totalorder %s24, 0
      %p63 = por %p61, %p62
      %s65 = sadd.s32 %s64, 1
      %p68 = scmp.eq.s32.totalorder %s18, 3
      %p69 = scmp.ne.s32.totalorder %s64, %s66
      %p70 = scmp.eq.s32.totalorder %s18, 0
      %p71 = por %p69, %p70
      %p72 = scmp.ne.s32.totalorder %s64, %s66
      %p73 = scmp.eq.s32.totalorder %s23, 3
      %p74 = por %p72, %p73
      %p75 = scmp.ne.s32.totalorder %s66, %s67
      %p76 = scmp.eq.s32.totalorder %s23, 0
      %p77 = por %p75, %p76
      %p78 = scmp.ne.s32.totalorder %s66, %s67
      %p79 = scmp.eq.s32.totalorder %s24, 3
      %p80 = por %p78, %p79
      %p82 = scmp.ne.s32.totalorder %s67, %s81
      %p83 = scmp.eq.s32.totalorder %s24, 0
      %p84 = por %p82, %p83
      %s86 = sadd.s32 %s85, 1
      %p89 = scmp.eq.s32.totalorder %s18, 3
      %p90 = scmp.ne.s32.totalorder %s85, %s87
      %p91 = scmp.eq.s32.totalorder %s18, 0
      %p92 = por %p90, %p91
      %p93 = scmp.ne.s32.totalorder %s85, %s87
      %p94 = scmp.eq.s32.totalorder %s23, 3
      %p95 = por %p93, %p94
      %p96 = scmp.ne.s32.totalorder %s87, %s88
      %p97 = scmp.eq.s32.totalorder %s23, 0
      %p98 = por %p96, %p97
      %p99 = scmp.ne.s32.totalorder %s87, %s88
      %p100 = scmp.eq.s32.totalorder %s24, 3
      %p101 = por %p99, %p100
      %p103 = scmp.ne.s32.totalorder %s88, %s102
      %p104 = scmp.eq.s32.totalorder %s24, 0
      %p105 = por %p103, %p104
      %s107 = sadd.s32 %s106, 1
      %p110 = scmp.eq.s32.totalorder %s18, 3
      %p111 = scmp.ne.s32.totalorder %s106, %s108
      %p112 = scmp.eq.s32.totalorder %s18, 0
      %p113 = por %p111, %p112
      %p114 = scmp.ne.s32.totalorder %s106, %s108
      %p115 = scmp.eq.s32.totalorder %s23, 3
      %p116 = por %p114, %p115
      %p117 = scmp.ne.s32.totalorder %s108, %s109
      %p118 = scmp.eq.s32.totalorder %s23, 0
      %p119 = por %p117, %p118
      %p120 = scmp.ne.s32.totalorder %s108, %s109
      %p121 = scmp.eq.s32.totalorder %s24, 3
      %p122 = por %p120, %p121
      %p124 = scmp.ne.s32.totalorder %s109, %s123
      %p125 = scmp.eq.s32.totalorder %s24, 0
      %p126 = por %p124, %p125
      %s128 = sadd.s32 %s127, 1
      %p131 = scmp.eq.s32.totalorder %s18, 3
      %p132 = scmp.ne.s32.totalorder %s127, %s129
      %p133 = scmp.eq.s32.totalorder %s18, 0
      %p134 = por %p132, %p133
      %p135 = scmp.ne.s32.totalorder %s127, %s129
      %p136 = scmp.eq.s32.totalorder %s23, 3
      %p137 = por %p135, %p136
      %p138 = scmp.ne.s32.totalorder %s129, %s130
      %p139 = scmp.eq.s32.totalorder %s23, 0
      %p140 = por %p138, %p139
      %p141 = scmp.ne.s32.totalorder %s129, %s130
      %p142 = scmp.eq.s32.totalorder %s24, 3
      %p143 = por %p141, %p142
      %p145 = scmp.ne.s32.totalorder %s130, %s144
      %p146 = scmp.eq.s32.totalorder %s24, 0
      %p147 = por %p145, %p146
      %s149 = sadd.s32 %s148, 1
      %p152 = scmp.eq.s32.totalorder %s18, 3
      %p153 = scmp.ne.s32.totalorder %s148, %s150
      %p154 = scmp.eq.s32.totalorder %s18, 0
      %p155 = por %p153, %p154
      %p156 = scmp.ne.s32.totalorder %s148, %s150
      %p157 = scmp.eq.s32.totalorder %s23, 3
      %p158 = por %p156, %p157
      %p159 = scmp.ne.s32.totalorder %s150, %s151
      %p160 = scmp.eq.s32.totalorder %s23, 0
      %p161 = por %p159, %p160
      %p162 = scmp.ne.s32.totalorder %s150, %s151
      %p163 = scmp.eq.s32.totalorder %s24, 3
      %p164 = por %p162, %p163
      %p166 = scmp.ne.s32.totalorder %s151, %s165
      %p167 = scmp.eq.s32.totalorder %s24, 0
      %p168 = por %p166, %p167
      %s170 = sadd.s32 %s169, 1
      %p173 = scmp.eq.s32.totalorder %s18, 3
      %p174 = scmp.ne.s32.totalorder %s169, %s171
      %p175 = scmp.eq.s32.totalorder %s18, 0
      %p176 = por %p174, %p175
      %p177 = scmp.ne.s32.totalorder %s169, %s171
      %p178 = scmp.eq.s32.totalorder %s23, 3
      %p179 = por %p177, %p178
      %p180 = scmp.ne.s32.totalorder %s171, %s172
      %p181 = scmp.eq.s32.totalorder %s23, 0
      %p182 = por %p180, %p181
      %p183 = scmp.ne.s32.totalorder %s171, %s172
      %p184 = scmp.eq.s32.totalorder %s24, 3
      %p185 = por %p183, %p184
      %p187 = scmp.ne.s32.totalorder %s172, %s186
      %p188 = scmp.eq.s32.totalorder %s24, 0
      %p189 = por %p187, %p188
      %s190 = ssub.s32 %s25, %s37
      %s191 = ssub.s32 %s26, %s33
      %s192 = sor.u32 %s190, %s191
      %p193 = scmp.eq.s32.totalorder %s192, 0
      %s195 = sadd.s32 %s194, 1
      %s196 = scalar_select %p193, %s194, %s195
      %p199 = pneg %p193
      %p200 = scmp.eq.s32.totalorder %s18, 3
      %p201 = por %p199, %p200
      %p202 = scmp.ne.s32.totalorder %s194, %s197
      %p203 = scmp.eq.s32.totalorder %s18, 0
      %p204 = por %p202, %p203
      %p205 = scmp.ne.s32.totalorder %s194, %s197
      %p206 = scmp.eq.s32.totalorder %s23, 3
      %p207 = por %p205, %p206
      %p208 = scmp.ne.s32.totalorder %s197, %s198
      %p209 = scmp.eq.s32.totalorder %s23, 0
      %p210 = por %p208, %p209
      %p211 = scmp.ne.s32.totalorder %s197, %s198
      %p212 = scmp.eq.s32.totalorder %s24, 3
      %p213 = por %p211, %p212
      %p215 = scmp.ne.s32.totalorder %s198, %s214
      %p216 = scmp.eq.s32.totalorder %s24, 0
      %p217 = por %p215, %p216
      %p218 = scmp.le.s32.totalorder 1, %s18
      %p219 = scmp.lt.s32.totalorder %s18, 5
      %p220 = pnand %p218, %p219
      %p221 = pneg %p220
      // Predicated region
      $region9: #{tpu_custom_call.1} parent=5 // pred_check
        _
      $region10: #{tpu_custom_call.1} parent=5 // pred_check_branch
        %223 = sbr.rel (%p220) target = $region12
      $region11: #{tpu_custom_call.1} parent=5 // pred_region
        %s224 = ssub.s32 %s18, 1
        // Predicated region
        $region13: #{tpu_custom_call.1} parent=11 // pred_check
          %p225 = pneg %p77
        $region14: #{tpu_custom_call.1} parent=11 // pred_check_branch
          %227 = sbr.rel (%p225) target = $region16
        $region15: #{tpu_custom_call.1} parent=11 // pred_region
          %s229 = ssub.s32 32768, 32768
          %230 = vsyncadd [#allocation4], %s229
          %s231 = sshll.u32 [#allocation3], 4
          %s232 = int_to_ptr.vmem [resolvable:$true] %s231
          %237 = dma.hbm_to_vmem [thread:$0]  %s1, 32768, %s232, [#allocation4], 256, 256, 16
        $region16: #{tpu_custom_call.1} parent=11 // pred_fallthru
          _
        // Predicated region
        $region17: #{tpu_custom_call.1} parent=11 // pred_check
          %p238 = pneg %p98
        $region18: #{tpu_custom_call.1} parent=11 // pred_check_branch
          %240 = sbr.rel (%p238) target = $region20
        $region19: #{tpu_custom_call.1} parent=11 // pred_region
          _
        $region20: #{tpu_custom_call.1} parent=11 // pred_fallthru
          _
        // Predicated region
        $region21: #{tpu_custom_call.1} parent=11 // pred_check
          %p241 = pneg %p119
        $region22: #{tpu_custom_call.1} parent=11 // pred_check_branch
          %243 = sbr.rel (%p241) target = $region24
        $region23: #{tpu_custom_call.1} parent=11 // pred_region
          %s245 = ssub.s32 32768, 32768
          %246 = vsyncadd [#allocation7], %s245
          %s247 = sshll.u32 [#allocation6], 4
          %s248 = int_to_ptr.vmem [resolvable:$true] %s247
          %253 = dma.hbm_to_vmem [thread:$0]  %s3, 32768, %s248, [#allocation7], 128, 128, 8
        $region24: #{tpu_custom_call.1} parent=11 // pred_fallthru
          _
        // Predicated region
        $region25: #{tpu_custom_call.1} parent=11 // pred_check
          %p254 = pneg %p140
        $region26: #{tpu_custom_call.1} parent=11 // pred_check_branch
          %256 = sbr.rel (%p254) target = $region28
        $region27: #{tpu_custom_call.1} parent=11 // pred_region
          _
        $region28: #{tpu_custom_call.1} parent=11 // pred_fallthru
          _
        // Predicated region
        $region29: #{tpu_custom_call.1} parent=11 // pred_check
          %p257 = pneg %p161
        $region30: #{tpu_custom_call.1} parent=11 // pred_check_branch
          %259 = sbr.rel (%p257) target = $region32
        $region31: #{tpu_custom_call.1} parent=11 // pred_region
          %s261 = ssub.s32 16384, 16384
          %262 = vsyncadd [#allocation7], %s261
          %s263 = sshll.u32 [#allocation8], 4
          %s264 = int_to_ptr.vmem [resolvable:$true] %s263
          %269 = dma.hbm_to_vmem [thread:$0]  %s5, 16384, %s264, [#allocation7], 128, 128, 8
        $region32: #{tpu_custom_call.1} parent=11 // pred_fallthru
          _
        // Predicated region
        $region33: #{tpu_custom_call.1} parent=11 // pred_check
          %p270 = pneg %p182
        $region34: #{tpu_custom_call.1} parent=11 // pred_check_branch
          %272 = sbr.rel (%p270) target = $region36
        $region35: #{tpu_custom_call.1} parent=11 // pred_region
          _
        $region36: #{tpu_custom_call.1} parent=11 // pred_fallthru
          _
      $region12: #{tpu_custom_call.1} parent=5 // pred_fallthru
        _
      %p273 = scmp.lt.s32.totalorder %s18, 4
      // Predicated region
      $region37: #{tpu_custom_call.1} parent=5 // pred_check
        %p274 = pneg %p273
      $region38: #{tpu_custom_call.1} parent=5 // pred_check_branch
        %276 = sbr.rel (%p274) target = $region40
      $region39: #{tpu_custom_call.1} parent=5 // pred_region
        // Predicated region
        $region41: #{tpu_custom_call.1} parent=39 // pred_check
          %p277 = pneg %p50
        $region42: #{tpu_custom_call.1} parent=39 // pred_check_branch
          %279 = sbr.rel (%p277) target = $region44
        $region43: #{tpu_custom_call.1} parent=39 // pred_region
          %p280 = scmp.lt.s32.totalorder %s25, 1
          %s281 = scalar_select %p280, %s25, 1
          %s282 = smul.addr %s281, 30
          %s283 = smul.addr %s282, 8
          %s284 = scalar_lea.vmem %s0, %s283
        $region44: #{tpu_custom_call.1} parent=39 // pred_fallthru
          _
      $region40: #{tpu_custom_call.1} parent=5 // pred_fallthru
        _
      %p285 = scmp.le.s32.totalorder 1, %s18
      %p286 = scmp.lt.s32.totalorder %s18, 5
      %p287 = pnand %p285, %p286
      %p288 = pneg %p287
      // Predicated region
      $region45: #{tpu_custom_call.1} parent=5 // pred_check
        _
      $region46: #{tpu_custom_call.1} parent=5 // pred_check_branch
        %290 = sbr.rel (%p287) target = $region48
      $region47: #{tpu_custom_call.1} parent=5 // pred_region
        %s291 = ssub.s32 %s18, 1
        // Predicated region
        $region49: #{tpu_custom_call.1} parent=47 // pred_check
          %p292 = pneg %p77
        $region50: #{tpu_custom_call.1} parent=47 // pred_check_branch
          %294 = sbr.rel (%p292) target = $region52
        $region51: #{tpu_custom_call.1} parent=47 // pred_region
          %295 = dma.done [#allocation4], 32768
        $region52: #{tpu_custom_call.1} parent=47 // pred_fallthru
          _
        // Predicated region
        $region53: #{tpu_custom_call.1} parent=47 // pred_check
          %p296 = pneg %p119
        $region54: #{tpu_custom_call.1} parent=47 // pred_check_branch
          %298 = sbr.rel (%p296) target = $region56
        $region55: #{tpu_custom_call.1} parent=47 // pred_region
          %299 = dma.done [#allocation7], 32768
        $region56: #{tpu_custom_call.1} parent=47 // pred_fallthru
          _
        // Predicated region
        $region57: #{tpu_custom_call.1} parent=47 // pred_check
          %p300 = pneg %p161
        $region58: #{tpu_custom_call.1} parent=47 // pred_check_branch
          %302 = sbr.rel (%p300) target = $region60
        $region59: #{tpu_custom_call.1} parent=47 // pred_region
          %303 = dma.done [#allocation7], 16384
        $region60: #{tpu_custom_call.1} parent=47 // pred_fallthru
          _
        %p304 = scmp.lt.s32.totalorder %s27, 1
        %s305 = scalar_select %p304, %s27, 1
        %s306 = smul.addr %s305, 30
        %s307 = smul.addr %s306, 8
        %s308 = scalar_lea.vmem %s0, %s307
        %p309 = pneg %p56
        %p310 = pneg %p53
        %p311 = pneg %p77
        %p312 = pneg %p74
        %p313 = pneg %p98
        %p314 = pneg %p95
        %p315 = pneg %p119
        %p316 = pneg %p116
        %p317 = pneg %p140
        %p318 = pneg %p137
        %p319 = pneg %p161
        %p320 = pneg %p158
        %p321 = pneg %p182
        %p322 = pneg %p179
        %p323 = pneg %p210
        %p324 = pneg %p207
        %s325 = sand.u32 %s197, 1
        %s326 = scalar_lea.sflag [#allocation5], %s325
        %s327 = sand.u32 %s197, 1
        %s328 = smul.addr %s327, 128
        %s329 = scalar_lea.vmem [#allocation9], %s328
        %p330 = scmp.lt.s32.totalorder %s27, 1
        %s331 = scalar_select %p330, %s27, 1
        %s332 = smul.addr %s331, 30
        %s333 = smul.addr %s332, 8
        %s334 = scalar_lea.vmem %s0, %s333
        %s335 = smul.u32 16, %s28
        %s336 = smul.u32 %s28, 128
        %p337 = scmp.eq.s32.totalorder %s28, 0
        // Predicated region
        $region61: #{tpu_custom_call.1} parent=47 // pred_check
          %p338 = pneg %p337
        $region62: #{tpu_custom_call.1} parent=47 // pred_check_branch
          %340 = sbr.rel (%p338) target = $region64
        $region63: #{tpu_custom_call.1} parent=47 // pred_region
          %341 = vst [vmem:[#allocation2] sm:$0xff] 0.0
          %342 = vst [vmem:[#allocation2 + $0x8] sm:$0xff] 0.0
          %343 = vst [vmem:[#allocation2 + $0x10] sm:$0xff] 0.0
          %344 = vst [vmem:[#allocation2 + $0x18] sm:$0xff] 0.0
          %345 = vst [vmem:[#allocation2 + $0x20] sm:$0xff] 0.0
          %346 = vst [vmem:[#allocation2 + $0x28] sm:$0xff] 0.0
          %347 = vst [vmem:[#allocation2 + $0x30] sm:$0xff] 0.0
          %348 = vst [vmem:[#allocation2 + $0x38] sm:$0xff] 0.0
          %349 = vst [vmem:[#allocation2 + $0x40] sm:$0xff] 0.0
          %350 = vst [vmem:[#allocation2 + $0x48] sm:$0xff] 0.0
          %351 = vst [vmem:[#allocation2 + $0x50] sm:$0xff] 0.0
          %352 = vst [vmem:[#allocation2 + $0x58] sm:$0xff] 0.0
          %353 = vst [vmem:[#allocation2 + $0x60] sm:$0xff] 0.0
          %354 = vst [vmem:[#allocation2 + $0x68] sm:$0xff] 0.0
          %355 = vst [vmem:[#allocation2 + $0x70] sm:$0xff] 0.0
          %356 = vst [vmem:[#allocation2 + $0x78] sm:$0xff] 0.0
          %357 = vst [vmem:[#allocation2 + $0x80] sm:$0xff] 0.0
          %358 = vst [vmem:[#allocation2 + $0x88] sm:$0xff] 0.0
          %359 = vst [vmem:[#allocation2 + $0x90] sm:$0xff] 0.0
          %360 = vst [vmem:[#allocation2 + $0x98] sm:$0xff] 0.0
          %361 = vst [vmem:[#allocation2 + $0xa0] sm:$0xff] 0.0
          %362 = vst [vmem:[#allocation2 + $0xa8] sm:$0xff] 0.0
          %363 = vst [vmem:[#allocation2 + $0xb0] sm:$0xff] 0.0
          %364 = vst [vmem:[#allocation2 + $0xb8] sm:$0xff] 0.0
          %365 = vst [vmem:[#allocation2 + $0xc0] sm:$0xff] 0.0
          %366 = vst [vmem:[#allocation2 + $0xc8] sm:$0xff] 0.0
          %367 = vst [vmem:[#allocation2 + $0xd0] sm:$0xff] 0.0
          %368 = vst [vmem:[#allocation2 + $0xd8] sm:$0xff] 0.0
          %369 = vst [vmem:[#allocation2 + $0xe0] sm:$0xff] 0.0
          %370 = vst [vmem:[#allocation2 + $0xe8] sm:$0xff] 0.0
          %371 = vst [vmem:[#allocation2 + $0xf0] sm:$0xff] 0.0
          %372 = vst [vmem:[#allocation2 + $0xf8] sm:$0xff] 0.0
          %373 = vst [vmem:[#allocation2 + $0x100] sm:$0xff] 0.0
          %374 = vst [vmem:[#allocation2 + $0x108] sm:$0xff] 0.0
          %375 = vst [vmem:[#allocation2 + $0x110] sm:$0xff] 0.0
          %376 = vst [vmem:[#allocation2 + $0x118] sm:$0xff] 0.0
          %v377 = vld [vmem:[%s334] sm:$0xff]
          %v378 = vld [vmem:[%s334 + $0x8] sm:$0xff]
          %v379 = vld [vmem:[%s334 + $0x10] sm:$0xff]
          %v380 = vld [vmem:[%s334 + $0x18] sm:$0xff]
          %v381 = vld [vmem:[%s334 + $0x20] sm:$0xff]
          %v382 = vld [vmem:[%s334 + $0x28] sm:$0xff]
          %v383 = vld [vmem:[%s334 + $0x30] sm:$0xff]
          %v384 = vld [vmem:[%s334 + $0x38] sm:$0xff]
          %v385 = vld [vmem:[%s334 + $0x40] sm:$0xff]
          %v386 = vld [vmem:[%s334 + $0x48] sm:$0xff]
          %v387 = vld [vmem:[%s334 + $0x50] sm:$0xff]
          %v388 = vld [vmem:[%s334 + $0x58] sm:$0xff]
          %v389 = vld [vmem:[%s334 + $0x60] sm:$0xff]
          %v390 = vld [vmem:[%s334 + $0x68] sm:$0xff]
          %v391 = vld [vmem:[%s334 + $0x70] sm:$0xff]
          %v392 = vld [vmem:[%s334 + $0x78] sm:$0xff]
          %v393 = vld [vmem:[%s334 + $0x80] sm:$0xff]
          %v394 = vld [vmem:[%s334 + $0x88] sm:$0xff]
          %v395 = vld [vmem:[%s334 + $0x90] sm:$0xff]
          %v396 = vld [vmem:[%s334 + $0x98] sm:$0xff]
          %v397 = vld [vmem:[%s334 + $0xa0] sm:$0xff]
          %v398 = vld [vmem:[%s334 + $0xa8] sm:$0xff]
          %v399 = vld [vmem:[%s334 + $0xb0] sm:$0xff]
          %v400 = vld [vmem:[%s334 + $0xb8] sm:$0xff]
          %v401 = vld [vmem:[%s334 + $0xc0] sm:$0xff]
          %v402 = vld [vmem:[%s334 + $0xc8] sm:$0xff]
          %v403 = vld [vmem:[%s334 + $0xd0] sm:$0xff]
          %v404 = vld [vmem:[%s334 + $0xd8] sm:$0xff]
          %v405 = vld [vmem:[%s334 + $0xe0] sm:$0xff]
          %v406 = vld [vmem:[%s334 + $0xe8] sm:$0xff]
          %vm407 = vcmask 523264
          %v408 = vsel %vm407, %v377, 0.0
          %v409 = vsel %vm407, %v378, 0.0
          %v410 = vsel %vm407, %v379, 0.0
          %v411 = vsel %vm407, %v380, 0.0
          %v412 = vsel %vm407, %v381, 0.0
          %v413 = vsel %vm407, %v382, 0.0
          %v414 = vsel %vm407, %v383, 0.0
          %v415 = vsel %vm407, %v384, 0.0
          %v416 = vsel %vm407, %v385, 0.0
          %v417 = vsel %vm407, %v386, 0.0
          %v418 = vsel %vm407, %v387, 0.0
          %v419 = vsel %vm407, %v388, 0.0
          %v420 = vsel %vm407, %v389, 0.0
          %v421 = vsel %vm407, %v390, 0.0
          %v422 = vsel %vm407, %v391, 0.0
          %v423 = vsel %vm407, %v392, 0.0
          %v424 = vsel %vm407, %v393, 0.0
          %v425 = vsel %vm407, %v394, 0.0
          %v426 = vsel %vm407, %v395, 0.0
          %v427 = vsel %vm407, %v396, 0.0
          %v428 = vsel %vm407, %v397, 0.0
          %v429 = vsel %vm407, %v398, 0.0
          %v430 = vsel %vm407, %v399, 0.0
          %v431 = vsel %vm407, %v400, 0.0
          %v432 = vsel %vm407, %v401, 0.0
          %v433 = vsel %vm407, %v402, 0.0
          %v434 = vsel %vm407, %v403, 0.0
          %v435 = vsel %vm407, %v404, 0.0
          %v436 = vsel %vm407, %v405, 0.0
          %v437 = vsel %vm407, %v406, 0.0
          %438 = vst [vmem:[#allocation2 + $0x10] sm:$0xff] %v408
          %439 = vst [vmem:[#allocation2 + $0x18] sm:$0xff] %v409
          %440 = vst [vmem:[#allocation2 + $0x20] sm:$0xff] %v410
          %441 = vst [vmem:[#allocation2 + $0x28] sm:$0xff] %v411
          %442 = vst [vmem:[#allocation2 + $0x30] sm:$0xff] %v412
          %443 = vst [vmem:[#allocation2 + $0x38] sm:$0xff] %v413
          %444 = vst [vmem:[#allocation2 + $0x40] sm:$0xff] %v414
          %445 = vst [vmem:[#allocation2 + $0x48] sm:$0xff] %v415
          %446 = vst [vmem:[#allocation2 + $0x50] sm:$0xff] %v416
          %447 = vst [vmem:[#allocation2 + $0x58] sm:$0xff] %v417
          %448 = vst [vmem:[#allocation2 + $0x60] sm:$0xff] %v418
          %449 = vst [vmem:[#allocation2 + $0x68] sm:$0xff] %v419
          %450 = vst [vmem:[#allocation2 + $0x70] sm:$0xff] %v420
          %451 = vst [vmem:[#allocation2 + $0x78] sm:$0xff] %v421
          %452 = vst [vmem:[#allocation2 + $0x80] sm:$0xff] %v422
          %453 = vst [vmem:[#allocation2 + $0x88] sm:$0xff] %v423
          %454 = vst [vmem:[#allocation2 + $0x90] sm:$0xff] %v424
          %455 = vst [vmem:[#allocation2 + $0x98] sm:$0xff] %v425
          %456 = vst [vmem:[#allocation2 + $0xa0] sm:$0xff] %v426
          %457 = vst [vmem:[#allocation2 + $0xa8] sm:$0xff] %v427
          %458 = vst [vmem:[#allocation2 + $0xb0] sm:$0xff] %v428
          %459 = vst [vmem:[#allocation2 + $0xb8] sm:$0xff] %v429
          %460 = vst [vmem:[#allocation2 + $0xc0] sm:$0xff] %v430
          %461 = vst [vmem:[#allocation2 + $0xc8] sm:$0xff] %v431
          %462 = vst [vmem:[#allocation2 + $0xd0] sm:$0xff] %v432
          %463 = vst [vmem:[#allocation2 + $0xd8] sm:$0xff] %v433
          %464 = vst [vmem:[#allocation2 + $0xe0] sm:$0xff] %v434
          %465 = vst [vmem:[#allocation2 + $0xe8] sm:$0xff] %v435
          %466 = vst [vmem:[#allocation2 + $0xf0] sm:$0xff] %v436
          %467 = vst [vmem:[#allocation2 + $0xf8] sm:$0xff] %v437
        $region64: #{tpu_custom_call.1} parent=47 // pred_fallthru
          _
        %s468 = sadd.s32 %s336, 7
        %s469 = scalar_lea.vmem [#allocation2], %s468
        %v470 = vld [vmem:[%s469] sm:$0xff]
        %v471 = vld [vmem:[%s469 + $0x8] sm:$0xff]
        %v472 = vld [vmem:[%s469 + $0x10] sm:$0xff]
        %v473 = vld [vmem:[%s469 + $0x18] sm:$0xff]
        %v474 = vld [vmem:[%s469 + $0x20] sm:$0xff]
        %v475 = vld [vmem:[%s469 + $0x28] sm:$0xff]
        %v476 = vld [vmem:[%s469 + $0x30] sm:$0xff]
        %v477 = vld [vmem:[%s469 + $0x38] sm:$0xff]
        %v478 = vld [vmem:[%s469 + $0x40] sm:$0xff]
        %v479 = vld [vmem:[%s469 + $0x48] sm:$0xff]
        %v480 = vld [vmem:[%s469 + $0x50] sm:$0xff]
        %v481 = vld [vmem:[%s469 + $0x58] sm:$0xff]
        %v482 = vld [vmem:[%s469 + $0x60] sm:$0xff]
        %v483 = vld [vmem:[%s469 + $0x68] sm:$0xff]
        %v484 = vld [vmem:[%s469 + $0x70] sm:$0xff]
        %v485 = vld [vmem:[%s469 + $0x78] sm:$0xff]
        %v486 = vld [vmem:[%s469 + $0x80] sm:$0xff]
        %v487 = vld [vmem:[%s469 + $0x88] sm:$0xff]
        %v488 = vld [vmem:[%s469 + $0x90] sm:$0x1f]
        %vm507 = vcmask 1046528
        %v508 = vrot.slane %v470, 1
        %v509 = vrot.slane %v471, 1
        %v510 = vsel %vm507, %v508, %v509
        %v511 = vrot.slane %v472, 1
        %v512 = vsel %vm507, %v509, %v511
        %v513 = vrot.slane %v473, 1
        %v514 = vsel %vm507, %v511, %v513
        %v515 = vrot.slane %v474, 1
        %v516 = vsel %vm507, %v513, %v515
        %v517 = vrot.slane %v475, 1
        %v518 = vsel %vm507, %v515, %v517
        %v519 = vrot.slane %v476, 1
        %v520 = vsel %vm507, %v517, %v519
        %v521 = vrot.slane %v477, 1
        %v522 = vsel %vm507, %v519, %v521
        %v523 = vrot.slane %v478, 1
        %v524 = vsel %vm507, %v521, %v523
        %v525 = vrot.slane %v479, 1
        %v526 = vsel %vm507, %v523, %v525
        %v527 = vrot.slane %v480, 1
        %v528 = vsel %vm507, %v525, %v527
        %v529 = vrot.slane %v481, 1
        %v530 = vsel %vm507, %v527, %v529
        %v531 = vrot.slane %v482, 1
        %v532 = vsel %vm507, %v529, %v531
        %v533 = vrot.slane %v483, 1
        %v534 = vsel %vm507, %v531, %v533
        %v535 = vrot.slane %v484, 1
        %v536 = vsel %vm507, %v533, %v535
        %v537 = vrot.slane %v485, 1
        %v538 = vsel %vm507, %v535, %v537
        %v539 = vrot.slane %v486, 1
        %v540 = vsel %vm507, %v537, %v539
        %v541 = vrot.slane %v487, 1
        %v542 = vsel %vm507, %v539, %v541
        %vm561 = vcmask 1045504
        %v562 = vrot.slane %v470, 2
        %v563 = vrot.slane %v471, 2
        %v564 = vsel %vm561, %v562, %v563
        %v565 = vrot.slane %v472, 2
        %v566 = vsel %vm561, %v563, %v565
        %v567 = vrot.slane %v473, 2
        %v568 = vsel %vm561, %v565, %v567
        %v569 = vrot.slane %v474, 2
        %v570 = vsel %vm561, %v567, %v569
        %v571 = vrot.slane %v475, 2
        %v572 = vsel %vm561, %v569, %v571
        %v573 = vrot.slane %v476, 2
        %v574 = vsel %vm561, %v571, %v573
        %v575 = vrot.slane %v477, 2
        %v576 = vsel %vm561, %v573, %v575
        %v577 = vrot.slane %v478, 2
        %v578 = vsel %vm561, %v575, %v577
        %v579 = vrot.slane %v479, 2
        %v580 = vsel %vm561, %v577, %v579
        %v581 = vrot.slane %v480, 2
        %v582 = vsel %vm561, %v579, %v581
        %v583 = vrot.slane %v481, 2
        %v584 = vsel %vm561, %v581, %v583
        %v585 = vrot.slane %v482, 2
        %v586 = vsel %vm561, %v583, %v585
        %v587 = vrot.slane %v483, 2
        %v588 = vsel %vm561, %v585, %v587
        %v589 = vrot.slane %v484, 2
        %v590 = vsel %vm561, %v587, %v589
        %v591 = vrot.slane %v485, 2
        %v592 = vsel %vm561, %v589, %v591
        %v593 = vrot.slane %v486, 2
        %v594 = vsel %vm561, %v591, %v593
        %v595 = vrot.slane %v487, 2
        %v596 = vsel %vm561, %v593, %v595
        %vm616 = vcmask 1044480
        %v617 = vrot.slane %v470, 3
        %v618 = vrot.slane %v471, 3
        %v619 = vsel %vm616, %v617, %v618
        %v620 = vrot.slane %v472, 3
        %v621 = vsel %vm616, %v618, %v620
        %v622 = vrot.slane %v473, 3
        %v623 = vsel %vm616, %v620, %v622
        %v624 = vrot.slane %v474, 3
        %v625 = vsel %vm616, %v622, %v624
        %v626 = vrot.slane %v475, 3
        %v627 = vsel %vm616, %v624, %v626
        %v628 = vrot.slane %v476, 3
        %v629 = vsel %vm616, %v626, %v628
        %v630 = vrot.slane %v477, 3
        %v631 = vsel %vm616, %v628, %v630
        %v632 = vrot.slane %v478, 3
        %v633 = vsel %vm616, %v630, %v632
        %v634 = vrot.slane %v479, 3
        %v635 = vsel %vm616, %v632, %v634
        %v636 = vrot.slane %v480, 3
        %v637 = vsel %vm616, %v634, %v636
        %v638 = vrot.slane %v481, 3
        %v639 = vsel %vm616, %v636, %v638
        %v640 = vrot.slane %v482, 3
        %v641 = vsel %vm616, %v638, %v640
        %v642 = vrot.slane %v483, 3
        %v643 = vsel %vm616, %v640, %v642
        %v644 = vrot.slane %v484, 3
        %v645 = vsel %vm616, %v642, %v644
        %v646 = vrot.slane %v485, 3
        %v647 = vsel %vm616, %v644, %v646
        %v648 = vrot.slane %v486, 3
        %v649 = vsel %vm616, %v646, %v648
        %v650 = vrot.slane %v487, 3
        %v651 = vsel %vm616, %v648, %v650
        %v652 = vrot.slane %v488, 3
        %v653 = vsel %vm616, %v650, %v652
        %vm672 = vcmask 1043456
        %v673 = vrot.slane %v470, 4
        %v674 = vrot.slane %v471, 4
        %v675 = vsel %vm672, %v673, %v674
        %v676 = vrot.slane %v472, 4
        %v677 = vsel %vm672, %v674, %v676
        %v678 = vrot.slane %v473, 4
        %v679 = vsel %vm672, %v676, %v678
        %v680 = vrot.slane %v474, 4
        %v681 = vsel %vm672, %v678, %v680
        %v682 = vrot.slane %v475, 4
        %v683 = vsel %vm672, %v680, %v682
        %v684 = vrot.slane %v476, 4
        %v685 = vsel %vm672, %v682, %v684
        %v686 = vrot.slane %v477, 4
        %v687 = vsel %vm672, %v684, %v686
        %v688 = vrot.slane %v478, 4
        %v689 = vsel %vm672, %v686, %v688
        %v690 = vrot.slane %v479, 4
        %v691 = vsel %vm672, %v688, %v690
        %v692 = vrot.slane %v480, 4
        %v693 = vsel %vm672, %v690, %v692
        %v694 = vrot.slane %v481, 4
        %v695 = vsel %vm672, %v692, %v694
        %v696 = vrot.slane %v482, 4
        %v697 = vsel %vm672, %v694, %v696
        %v698 = vrot.slane %v483, 4
        %v699 = vsel %vm672, %v696, %v698
        %v700 = vrot.slane %v484, 4
        %v701 = vsel %vm672, %v698, %v700
        %v702 = vrot.slane %v485, 4
        %v703 = vsel %vm672, %v700, %v702
        %v704 = vrot.slane %v486, 4
        %v705 = vsel %vm672, %v702, %v704
        %v706 = vrot.slane %v487, 4
        %v707 = vsel %vm672, %v704, %v706
        %v708 = vrot.slane %v488, 4
        %v709 = vsel %vm672, %v706, %v708
        %vm728 = vcmask 1042432
        %v729 = vrot.slane %v470, 5
        %v730 = vrot.slane %v471, 5
        %v731 = vsel %vm728, %v729, %v730
        %v732 = vrot.slane %v472, 5
        %v733 = vsel %vm728, %v730, %v732
        %v734 = vrot.slane %v473, 5
        %v735 = vsel %vm728, %v732, %v734
        %v736 = vrot.slane %v474, 5
        %v737 = vsel %vm728, %v734, %v736
        %v738 = vrot.slane %v475, 5
        %v739 = vsel %vm728, %v736, %v738
        %v740 = vrot.slane %v476, 5
        %v741 = vsel %vm728, %v738, %v740
        %v742 = vrot.slane %v477, 5
        %v743 = vsel %vm728, %v740, %v742
        %v744 = vrot.slane %v478, 5
        %v745 = vsel %vm728, %v742, %v744
        %v746 = vrot.slane %v479, 5
        %v747 = vsel %vm728, %v744, %v746
        %v748 = vrot.slane %v480, 5
        %v749 = vsel %vm728, %v746, %v748
        %v750 = vrot.slane %v481, 5
        %v751 = vsel %vm728, %v748, %v750
        %v752 = vrot.slane %v482, 5
        %v753 = vsel %vm728, %v750, %v752
        %v754 = vrot.slane %v483, 5
        %v755 = vsel %vm728, %v752, %v754
        %v756 = vrot.slane %v484, 5
        %v757 = vsel %vm728, %v754, %v756
        %v758 = vrot.slane %v485, 5
        %v759 = vsel %vm728, %v756, %v758
        %v760 = vrot.slane %v486, 5
        %v761 = vsel %vm728, %v758, %v760
        %v762 = vrot.slane %v487, 5
        %v763 = vsel %vm728, %v760, %v762
        %v764 = vrot.slane %v488, 5
        %v765 = vsel %vm728, %v762, %v764
        %vm784 = vcmask 1041408
        %v785 = vrot.slane %v470, 6
        %v786 = vrot.slane %v471, 6
        %v787 = vsel %vm784, %v785, %v786
        %v788 = vrot.slane %v472, 6
        %v789 = vsel %vm784, %v786, %v788
        %v790 = vrot.slane %v473, 6
        %v791 = vsel %vm784, %v788, %v790
        %v792 = vrot.slane %v474, 6
        %v793 = vsel %vm784, %v790, %v792
        %v794 = vrot.slane %v475, 6
        %v795 = vsel %vm784, %v792, %v794
        %v796 = vrot.slane %v476, 6
        %v797 = vsel %vm784, %v794, %v796
        %v798 = vrot.slane %v477, 6
        %v799 = vsel %vm784, %v796, %v798
        %v800 = vrot.slane %v478, 6
        %v801 = vsel %vm784, %v798, %v800
        %v802 = vrot.slane %v479, 6
        %v803 = vsel %vm784, %v800, %v802
        %v804 = vrot.slane %v480, 6
        %v805 = vsel %vm784, %v802, %v804
        %v806 = vrot.slane %v481, 6
        %v807 = vsel %vm784, %v804, %v806
        %v808 = vrot.slane %v482, 6
        %v809 = vsel %vm784, %v806, %v808
        %v810 = vrot.slane %v483, 6
        %v811 = vsel %vm784, %v808, %v810
        %v812 = vrot.slane %v484, 6
        %v813 = vsel %vm784, %v810, %v812
        %v814 = vrot.slane %v485, 6
        %v815 = vsel %vm784, %v812, %v814
        %v816 = vrot.slane %v486, 6
        %v817 = vsel %vm784, %v814, %v816
        %v818 = vrot.slane %v487, 6
        %v819 = vsel %vm784, %v816, %v818
        %v820 = vrot.slane %v488, 6
        %v821 = vsel %vm784, %v818, %v820
        %vm840 = vcmask 1040384
        %v841 = vrot.slane %v470, 7
        %v842 = vrot.slane %v471, 7
        %v843 = vsel %vm840, %v841, %v842
        %v844 = vrot.slane %v472, 7
        %v845 = vsel %vm840, %v842, %v844
        %v846 = vrot.slane %v473, 7
        %v847 = vsel %vm840, %v844, %v846
        %v848 = vrot.slane %v474, 7
        %v849 = vsel %vm840, %v846, %v848
        %v850 = vrot.slane %v475, 7
        %v851 = vsel %vm840, %v848, %v850
        %v852 = vrot.slane %v476, 7
        %v853 = vsel %vm840, %v850, %v852
        %v854 = vrot.slane %v477, 7
        %v855 = vsel %vm840, %v852, %v854
        %v856 = vrot.slane %v478, 7
        %v857 = vsel %vm840, %v854, %v856
        %v858 = vrot.slane %v479, 7
        %v859 = vsel %vm840, %v856, %v858
        %v860 = vrot.slane %v480, 7
        %v861 = vsel %vm840, %v858, %v860
        %v862 = vrot.slane %v481, 7
        %v863 = vsel %vm840, %v860, %v862
        %v864 = vrot.slane %v482, 7
        %v865 = vsel %vm840, %v862, %v864
        %v866 = vrot.slane %v483, 7
        %v867 = vsel %vm840, %v864, %v866
        %v868 = vrot.slane %v484, 7
        %v869 = vsel %vm840, %v866, %v868
        %v870 = vrot.slane %v485, 7
        %v871 = vsel %vm840, %v868, %v870
        %v872 = vrot.slane %v486, 7
        %v873 = vsel %vm840, %v870, %v872
        %v874 = vrot.slane %v487, 7
        %v875 = vsel %vm840, %v872, %v874
        %v876 = vrot.slane %v488, 7
        %v877 = vsel %vm840, %v874, %v876
        %v896 = vld [vmem:[#allocation3] sm:$0xff]
        %v897 = vld [vmem:[#allocation3 + $0x8] sm:$0xff]
        %v898 = vld [vmem:[#allocation3 + $0x10] sm:$0xff]
        %v899 = vld [vmem:[#allocation3 + $0x18] sm:$0xff]
        %v900 = vld [vmem:[#allocation3 + $0x20] sm:$0xff]
        %v901 = vld [vmem:[#allocation3 + $0x28] sm:$0xff]
        %v902 = vld [vmem:[#allocation3 + $0x30] sm:$0xff]
        %v903 = vld [vmem:[#allocation3 + $0x38] sm:$0xff]
        %v904 = vld [vmem:[#allocation3 + $0x40] sm:$0xff]
        %v905 = vld [vmem:[#allocation3 + $0x48] sm:$0xff]
        %v906 = vld [vmem:[#allocation3 + $0x50] sm:$0xff]
        %v907 = vld [vmem:[#allocation3 + $0x58] sm:$0xff]
        %v908 = vld [vmem:[#allocation3 + $0x60] sm:$0xff]
        %v909 = vld [vmem:[#allocation3 + $0x68] sm:$0xff]
        %v910 = vld [vmem:[#allocation3 + $0x70] sm:$0xff]
        %v911 = vld [vmem:[#allocation3 + $0x78] sm:$0xff]
        %v912 = vld [vmem:[#allocation3 + $0x80] sm:$0xff]
        %v913 = vld [vmem:[#allocation3 + $0x88] sm:$0xff]
        %v914 = vld [vmem:[#allocation3 + $0x90] sm:$0xff]
        %v915 = vld [vmem:[#allocation3 + $0x98] sm:$0xff]
        %v916 = vld [vmem:[#allocation3 + $0xa0] sm:$0xff]
        %v917 = vld [vmem:[#allocation3 + $0xa8] sm:$0xff]
        %v918 = vld [vmem:[#allocation3 + $0xb0] sm:$0xff]
        %v919 = vld [vmem:[#allocation3 + $0xb8] sm:$0xff]
        %v920 = vld [vmem:[#allocation3 + $0xc0] sm:$0xff]
        %v921 = vld [vmem:[#allocation3 + $0xc8] sm:$0xff]
        %v922 = vld [vmem:[#allocation3 + $0xd0] sm:$0xff]
        %v923 = vld [vmem:[#allocation3 + $0xd8] sm:$0xff]
        %v924 = vld [vmem:[#allocation3 + $0xe0] sm:$0xff]
        %v925 = vld [vmem:[#allocation3 + $0xe8] sm:$0xff]
        %v926 = vld [vmem:[#allocation3 + $0xf0] sm:$0xff]
        %v927 = vld [vmem:[#allocation3 + $0xf8] sm:$0xff]
        %v928 = vld [vmem:[#allocation3 + $0x100] sm:$0xff]
        %v929 = vld [vmem:[#allocation3 + $0x108] sm:$0xff]
        %v930 = vld [vmem:[#allocation3 + $0x110] sm:$0xff]
        %v931 = vld [vmem:[#allocation3 + $0x118] sm:$0xff]
        %v932 = vld [vmem:[#allocation3 + $0x120] sm:$0xff]
        %v933 = vld [vmem:[#allocation3 + $0x128] sm:$0xff]
        %v934 = vld [vmem:[#allocation3 + $0x130] sm:$0xff]
        %v935 = vld [vmem:[#allocation3 + $0x138] sm:$0xff]
        %v936 = vld [vmem:[#allocation3 + $0x140] sm:$0xff]
        %v937 = vld [vmem:[#allocation3 + $0x148] sm:$0xff]
        %v938 = vld [vmem:[#allocation3 + $0x150] sm:$0xff]
        %v939 = vld [vmem:[#allocation3 + $0x158] sm:$0xff]
        %v940 = vld [vmem:[#allocation3 + $0x160] sm:$0xff]
        %v941 = vld [vmem:[#allocation3 + $0x168] sm:$0xff]
        %v942 = vld [vmem:[#allocation3 + $0x170] sm:$0xff]
        %v943 = vld [vmem:[#allocation3 + $0x178] sm:$0xff]
        %v944 = vld [vmem:[#allocation3 + $0x180] sm:$0xff]
        %v945 = vld [vmem:[#allocation3 + $0x188] sm:$0xff]
        %v946 = vld [vmem:[#allocation3 + $0x190] sm:$0xff]
        %v947 = vld [vmem:[#allocation3 + $0x198] sm:$0xff]
        %v948 = vld [vmem:[#allocation3 + $0x1a0] sm:$0xff]
        %v949 = vld [vmem:[#allocation3 + $0x1a8] sm:$0xff]
        %v950 = vld [vmem:[#allocation3 + $0x1b0] sm:$0xff]
        %v951 = vld [vmem:[#allocation3 + $0x1b8] sm:$0xff]
        %v952 = vld [vmem:[#allocation3 + $0x1c0] sm:$0xff]
        %v953 = vld [vmem:[#allocation3 + $0x1c8] sm:$0xff]
        %v954 = vld [vmem:[#allocation3 + $0x1d0] sm:$0xff]
        %v955 = vld [vmem:[#allocation3 + $0x1d8] sm:$0xff]
        %v956 = vld [vmem:[#allocation3 + $0x1e0] sm:$0xff]
        %v957 = vld [vmem:[#allocation3 + $0x1e8] sm:$0xff]
        %v958 = vld [vmem:[#allocation3 + $0x1f0] sm:$0xff]
        %v959 = vld [vmem:[#allocation3 + $0x1f8] sm:$0xff]
        %v960 = vld [vmem:[#allocation3 + $0x200] sm:$0xff]
        %v961 = vld [vmem:[#allocation3 + $0x208] sm:$0xff]
        %v962 = vld [vmem:[#allocation3 + $0x210] sm:$0xff]
        %v963 = vld [vmem:[#allocation3 + $0x218] sm:$0xff]
        %v964 = vld [vmem:[#allocation3 + $0x220] sm:$0xff]
        %v965 = vld [vmem:[#allocation3 + $0x228] sm:$0xff]
        %v966 = vld [vmem:[#allocation3 + $0x230] sm:$0xff]
        %v967 = vld [vmem:[#allocation3 + $0x238] sm:$0xff]
        %v968 = vld [vmem:[#allocation3 + $0x240] sm:$0xff]
        %v969 = vld [vmem:[#allocation3 + $0x248] sm:$0xff]
        %v970 = vld [vmem:[#allocation3 + $0x250] sm:$0xff]
        %v971 = vld [vmem:[#allocation3 + $0x258] sm:$0xff]
        %v972 = vld [vmem:[#allocation3 + $0x260] sm:$0xff]
        %v973 = vld [vmem:[#allocation3 + $0x268] sm:$0xff]
        %v974 = vld [vmem:[#allocation3 + $0x270] sm:$0xff]
        %v975 = vld [vmem:[#allocation3 + $0x278] sm:$0xff]
        %v976 = vld [vmem:[#allocation3 + $0x280] sm:$0xff]
        %v977 = vld [vmem:[#allocation3 + $0x288] sm:$0xff]
        %v978 = vld [vmem:[#allocation3 + $0x290] sm:$0xff]
        %v979 = vld [vmem:[#allocation3 + $0x298] sm:$0xff]
        %v980 = vld [vmem:[#allocation3 + $0x2a0] sm:$0xff]
        %v981 = vld [vmem:[#allocation3 + $0x2a8] sm:$0xff]
        %v982 = vld [vmem:[#allocation3 + $0x2b0] sm:$0xff]
        %v983 = vld [vmem:[#allocation3 + $0x2b8] sm:$0xff]
        %v984 = vld [vmem:[#allocation3 + $0x2c0] sm:$0xff]
        %v985 = vld [vmem:[#allocation3 + $0x2c8] sm:$0xff]
        %v986 = vld [vmem:[#allocation3 + $0x2d0] sm:$0xff]
        %v987 = vld [vmem:[#allocation3 + $0x2d8] sm:$0xff]
        %v988 = vld [vmem:[#allocation3 + $0x2e0] sm:$0xff]
        %v989 = vld [vmem:[#allocation3 + $0x2e8] sm:$0xff]
        %v990 = vld [vmem:[#allocation3 + $0x2f0] sm:$0xff]
        %v991 = vld [vmem:[#allocation3 + $0x2f8] sm:$0xff]
        %v992 = vld [vmem:[#allocation3 + $0x300] sm:$0xff]
        %v993 = vld [vmem:[#allocation3 + $0x308] sm:$0xff]
        %v994 = vld [vmem:[#allocation3 + $0x310] sm:$0xff]
        %v995 = vld [vmem:[#allocation3 + $0x318] sm:$0xff]
        %v996 = vld [vmem:[#allocation3 + $0x320] sm:$0xff]
        %v997 = vld [vmem:[#allocation3 + $0x328] sm:$0xff]
        %v998 = vld [vmem:[#allocation3 + $0x330] sm:$0xff]
        %v999 = vld [vmem:[#allocation3 + $0x338] sm:$0xff]
        %v1000 = vld [vmem:[#allocation3 + $0x340] sm:$0xff]
        %v1001 = vld [vmem:[#allocation3 + $0x348] sm:$0xff]
        %v1002 = vld [vmem:[#allocation3 + $0x350] sm:$0xff]
        %v1003 = vld [vmem:[#allocation3 + $0x358] sm:$0xff]
        %v1004 = vld [vmem:[#allocation3 + $0x360] sm:$0xff]
        %v1005 = vld [vmem:[#allocation3 + $0x368] sm:$0xff]
        %v1006 = vld [vmem:[#allocation3 + $0x370] sm:$0xff]
        %v1007 = vld [vmem:[#allocation3 + $0x378] sm:$0xff]
        %v1008 = vld [vmem:[#allocation3 + $0x380] sm:$0xff]
        %v1009 = vld [vmem:[#allocation3 + $0x388] sm:$0xff]
        %v1010 = vld [vmem:[#allocation3 + $0x390] sm:$0xff]
        %v1011 = vld [vmem:[#allocation3 + $0x398] sm:$0xff]
        %v1012 = vld [vmem:[#allocation3 + $0x3a0] sm:$0xff]
        %v1013 = vld [vmem:[#allocation3 + $0x3a8] sm:$0xff]
        %v1014 = vld [vmem:[#allocation3 + $0x3b0] sm:$0xff]
        %v1015 = vld [vmem:[#allocation3 + $0x3b8] sm:$0xff]
        %v1016 = vld [vmem:[#allocation3 + $0x3c0] sm:$0xff]
        %v1017 = vld [vmem:[#allocation3 + $0x3c8] sm:$0xff]
        %v1018 = vld [vmem:[#allocation3 + $0x3d0] sm:$0xff]
        %v1019 = vld [vmem:[#allocation3 + $0x3d8] sm:$0xff]
        %v1020 = vld [vmem:[#allocation3 + $0x3e0] sm:$0xff]
        %v1021 = vld [vmem:[#allocation3 + $0x3e8] sm:$0xff]
        %v1022 = vld [vmem:[#allocation3 + $0x3f0] sm:$0xff]
        %v1023 = vld [vmem:[#allocation3 + $0x3f8] sm:$0xff]
        %v1024 = vld [vmem:[#allocation3 + $0x400] sm:$0xff]
        %v1025 = vld [vmem:[#allocation3 + $0x408] sm:$0xff]
        %v1026 = vld [vmem:[#allocation3 + $0x410] sm:$0xff]
        %v1027 = vld [vmem:[#allocation3 + $0x418] sm:$0xff]
        %v1028 = vld [vmem:[#allocation3 + $0x420] sm:$0xff]
        %v1029 = vld [vmem:[#allocation3 + $0x428] sm:$0xff]
        %v1030 = vld [vmem:[#allocation3 + $0x430] sm:$0xff]
        %v1031 = vld [vmem:[#allocation3 + $0x438] sm:$0xff]
        %v1032 = vld [vmem:[#allocation3 + $0x440] sm:$0xff]
        %v1033 = vld [vmem:[#allocation3 + $0x448] sm:$0xff]
        %v1034 = vld [vmem:[#allocation3 + $0x450] sm:$0xff]
        %v1035 = vld [vmem:[#allocation3 + $0x458] sm:$0xff]
        %v1036 = vld [vmem:[#allocation3 + $0x460] sm:$0xff]
        %v1037 = vld [vmem:[#allocation3 + $0x468] sm:$0xff]
        %v1038 = vld [vmem:[#allocation3 + $0x470] sm:$0xff]
        %v1039 = vld [vmem:[#allocation3 + $0x478] sm:$0xff]
        %v1040 = vld [vmem:[#allocation3 + $0x480] sm:$0xff]
        %v1041 = vld [vmem:[#allocation3 + $0x488] sm:$0xff]
        %v1042 = vld [vmem:[#allocation3 + $0x490] sm:$0xff]
        %v1043 = vld [vmem:[#allocation3 + $0x498] sm:$0xff]
        %v1044 = vld [vmem:[#allocation3 + $0x4a0] sm:$0xff]
        %v1045 = vld [vmem:[#allocation3 + $0x4a8] sm:$0xff]
        %v1046 = vld [vmem:[#allocation3 + $0x4b0] sm:$0xff]
        %v1047 = vld [vmem:[#allocation3 + $0x4b8] sm:$0xff]
        %v1048 = vld [vmem:[#allocation3 + $0x4c0] sm:$0xff]
        %v1049 = vld [vmem:[#allocation3 + $0x4c8] sm:$0xff]
        %v1050 = vld [vmem:[#allocation3 + $0x4d0] sm:$0xff]
        %v1051 = vld [vmem:[#allocation3 + $0x4d8] sm:$0xff]
        %v1052 = vld [vmem:[#allocation3 + $0x4e0] sm:$0xff]
        %v1053 = vld [vmem:[#allocation3 + $0x4e8] sm:$0xff]
        %v1054 = vld [vmem:[#allocation3 + $0x4f0] sm:$0xff]
        %v1055 = vld [vmem:[#allocation3 + $0x4f8] sm:$0xff]
        %v1056 = vld [vmem:[#allocation3 + $0x500] sm:$0xff]
        %v1057 = vld [vmem:[#allocation3 + $0x508] sm:$0xff]
        %v1058 = vld [vmem:[#allocation3 + $0x510] sm:$0xff]
        %v1059 = vld [vmem:[#allocation3 + $0x518] sm:$0xff]
        %v1060 = vld [vmem:[#allocation3 + $0x520] sm:$0xff]
        %v1061 = vld [vmem:[#allocation3 + $0x528] sm:$0xff]
        %v1062 = vld [vmem:[#allocation3 + $0x530] sm:$0xff]
        %v1063 = vld [vmem:[#allocation3 + $0x538] sm:$0xff]
        %v1064 = vld [vmem:[#allocation3 + $0x540] sm:$0xff]
        %v1065 = vld [vmem:[#allocation3 + $0x548] sm:$0xff]
        %v1066 = vld [vmem:[#allocation3 + $0x550] sm:$0xff]
        %v1067 = vld [vmem:[#allocation3 + $0x558] sm:$0xff]
        %v1068 = vld [vmem:[#allocation3 + $0x560] sm:$0xff]
        %v1069 = vld [vmem:[#allocation3 + $0x568] sm:$0xff]
        %v1070 = vld [vmem:[#allocation3 + $0x570] sm:$0xff]
        %v1071 = vld [vmem:[#allocation3 + $0x578] sm:$0xff]
        %v1072 = vld [vmem:[#allocation3 + $0x580] sm:$0xff]
        %v1073 = vld [vmem:[#allocation3 + $0x588] sm:$0xff]
        %v1074 = vld [vmem:[#allocation3 + $0x590] sm:$0xff]
        %v1075 = vld [vmem:[#allocation3 + $0x598] sm:$0xff]
        %v1076 = vld [vmem:[#allocation3 + $0x5a0] sm:$0xff]
        %v1077 = vld [vmem:[#allocation3 + $0x5a8] sm:$0xff]
        %v1078 = vld [vmem:[#allocation3 + $0x5b0] sm:$0xff]
        %v1079 = vld [vmem:[#allocation3 + $0x5b8] sm:$0xff]
        %v1080 = vld [vmem:[#allocation3 + $0x5c0] sm:$0xff]
        %v1081 = vld [vmem:[#allocation3 + $0x5c8] sm:$0xff]
        %v1082 = vld [vmem:[#allocation3 + $0x5d0] sm:$0xff]
        %v1083 = vld [vmem:[#allocation3 + $0x5d8] sm:$0xff]
        %v1084 = vld [vmem:[#allocation3 + $0x5e0] sm:$0xff]
        %v1085 = vld [vmem:[#allocation3 + $0x5e8] sm:$0xff]
        %v1086 = vld [vmem:[#allocation3 + $0x5f0] sm:$0xff]
        %v1087 = vld [vmem:[#allocation3 + $0x5f8] sm:$0xff]
        %v1088 = vld [vmem:[#allocation3 + $0x600] sm:$0xff]
        %v1089 = vld [vmem:[#allocation3 + $0x608] sm:$0xff]
        %v1090 = vld [vmem:[#allocation3 + $0x610] sm:$0xff]
        %v1091 = vld [vmem:[#allocation3 + $0x618] sm:$0xff]
        %v1092 = vld [vmem:[#allocation3 + $0x620] sm:$0xff]
        %v1093 = vld [vmem:[#allocation3 + $0x628] sm:$0xff]
        %v1094 = vld [vmem:[#allocation3 + $0x630] sm:$0xff]
        %v1095 = vld [vmem:[#allocation3 + $0x638] sm:$0xff]
        %v1096 = vld [vmem:[#allocation3 + $0x640] sm:$0xff]
        %v1097 = vld [vmem:[#allocation3 + $0x648] sm:$0xff]
        %v1098 = vld [vmem:[#allocation3 + $0x650] sm:$0xff]
        %v1099 = vld [vmem:[#allocation3 + $0x658] sm:$0xff]
        %v1100 = vld [vmem:[#allocation3 + $0x660] sm:$0xff]
        %v1101 = vld [vmem:[#allocation3 + $0x668] sm:$0xff]
        %v1102 = vld [vmem:[#allocation3 + $0x670] sm:$0xff]
        %v1103 = vld [vmem:[#allocation3 + $0x678] sm:$0xff]
        %v1104 = vld [vmem:[#allocation3 + $0x680] sm:$0xff]
        %v1105 = vld [vmem:[#allocation3 + $0x688] sm:$0xff]
        %v1106 = vld [vmem:[#allocation3 + $0x690] sm:$0xff]
        %v1107 = vld [vmem:[#allocation3 + $0x698] sm:$0xff]
        %v1108 = vld [vmem:[#allocation3 + $0x6a0] sm:$0xff]
        %v1109 = vld [vmem:[#allocation3 + $0x6a8] sm:$0xff]
        %v1110 = vld [vmem:[#allocation3 + $0x6b0] sm:$0xff]
        %v1111 = vld [vmem:[#allocation3 + $0x6b8] sm:$0xff]
        %v1112 = vld [vmem:[#allocation3 + $0x6c0] sm:$0xff]
        %v1113 = vld [vmem:[#allocation3 + $0x6c8] sm:$0xff]
        %v1114 = vld [vmem:[#allocation3 + $0x6d0] sm:$0xff]
        %v1115 = vld [vmem:[#allocation3 + $0x6d8] sm:$0xff]
        %v1116 = vld [vmem:[#allocation3 + $0x6e0] sm:$0xff]
        %v1117 = vld [vmem:[#allocation3 + $0x6e8] sm:$0xff]
        %v1118 = vld [vmem:[#allocation3 + $0x6f0] sm:$0xff]
        %v1119 = vld [vmem:[#allocation3 + $0x6f8] sm:$0xff]
        %v1120 = vld [vmem:[#allocation3 + $0x700] sm:$0xff]
        %v1121 = vld [vmem:[#allocation3 + $0x708] sm:$0xff]
        %v1122 = vld [vmem:[#allocation3 + $0x710] sm:$0xff]
        %v1123 = vld [vmem:[#allocation3 + $0x718] sm:$0xff]
        %v1124 = vld [vmem:[#allocation3 + $0x720] sm:$0xff]
        %v1125 = vld [vmem:[#allocation3 + $0x728] sm:$0xff]
        %v1126 = vld [vmem:[#allocation3 + $0x730] sm:$0xff]
        %v1127 = vld [vmem:[#allocation3 + $0x738] sm:$0xff]
        %v1128 = vld [vmem:[#allocation3 + $0x740] sm:$0xff]
        %v1129 = vld [vmem:[#allocation3 + $0x748] sm:$0xff]
        %v1130 = vld [vmem:[#allocation3 + $0x750] sm:$0xff]
        %v1131 = vld [vmem:[#allocation3 + $0x758] sm:$0xff]
        %v1132 = vld [vmem:[#allocation3 + $0x760] sm:$0xff]
        %v1133 = vld [vmem:[#allocation3 + $0x768] sm:$0xff]
        %v1134 = vld [vmem:[#allocation3 + $0x770] sm:$0xff]
        %v1135 = vld [vmem:[#allocation3 + $0x778] sm:$0xff]
        %v1136 = vld [vmem:[#allocation3 + $0x780] sm:$0xff]
        %v1137 = vld [vmem:[#allocation3 + $0x788] sm:$0xff]
        %v1138 = vld [vmem:[#allocation3 + $0x790] sm:$0xff]
        %v1139 = vld [vmem:[#allocation3 + $0x798] sm:$0xff]
        %v1140 = vld [vmem:[#allocation3 + $0x7a0] sm:$0xff]
        %v1141 = vld [vmem:[#allocation3 + $0x7a8] sm:$0xff]
        %v1142 = vld [vmem:[#allocation3 + $0x7b0] sm:$0xff]
        %v1143 = vld [vmem:[#allocation3 + $0x7b8] sm:$0xff]
        %v1144 = vld [vmem:[#allocation3 + $0x7c0] sm:$0xff]
        %v1145 = vld [vmem:[#allocation3 + $0x7c8] sm:$0xff]
        %v1146 = vld [vmem:[#allocation3 + $0x7d0] sm:$0xff]
        %v1147 = vld [vmem:[#allocation3 + $0x7d8] sm:$0xff]
        %v1148 = vld [vmem:[#allocation3 + $0x7e0] sm:$0xff]
        %v1149 = vld [vmem:[#allocation3 + $0x7e8] sm:$0xff]
        %v1150 = vld [vmem:[#allocation3 + $0x7f0] sm:$0xff]
        %v1151 = vld [vmem:[#allocation3 + $0x7f8] sm:$0xff]
        %v1152 = vld [vmem:[%s2] sm:$0x3]
        %v1154 = vlaneseq
        %v1155 = vshrl.u32 %v1154, 7
        %v1156 = vsub.s32 0, %v1155
        %v1157 = vrot.slane %v1152, %v1156
        %v1158 = vlaneseq
        %v1159 = vshrl.u32 %v1158, 7
        %v1160 = vsub.s32 1, %v1159
        %v1161 = vrot.slane %v1152, %v1160
        %1164 = vmatprep.subr.mxu0 %v897
        %1165 = vmatpush1.msra.mxu0 %v896
        %1166 = vmatprep.subr.mxu0 %v899
        %1167 = vmatpush1.msra.mxu0 %v898
        %1168 = vmatprep.subr.mxu0 %v901
        %1169 = vmatpush1.msra.mxu0 %v900
        %1170 = vmatprep.subr.mxu0 %v903
        %1171 = vmatpush1.msra.mxu0 %v902
        %1172 = vmatprep.subr.mxu0 %v905
        %1173 = vmatpush1.msra.mxu0 %v904
        %1174 = vmatprep.subr.mxu0 %v907
        %1175 = vmatpush1.msra.mxu0 %v906
        %1176 = vmatprep.subr.mxu0 %v909
        %1177 = vmatpush1.msra.mxu0 %v908
        %1178 = vmatprep.subr.mxu0 %v911
        %1179 = vmatpush1.msra.mxu0 %v910
        %1180 = vmatprep.subr.mxu0 %v913
        %1181 = vmatpush1.msra.mxu0 %v912
        %1182 = vmatprep.subr.mxu0 %v915
        %1183 = vmatpush1.msra.mxu0 %v914
        %1184 = vmatprep.subr.mxu0 %v917
        %1185 = vmatpush1.msra.mxu0 %v916
        %1186 = vmatprep.subr.mxu0 %v919
        %1187 = vmatpush1.msra.mxu0 %v918
        %1188 = vmatprep.subr.mxu0 %v921
        %1189 = vmatpush1.msra.mxu0 %v920
        %1190 = vmatprep.subr.mxu0 %v923
        %1191 = vmatpush1.msra.mxu0 %v922
        %1192 = vmatprep.subr.mxu0 %v925
        %1193 = vmatpush1.msra.mxu0 %v924
        %1194 = vmatprep.subr.mxu0 %v927
        %1195 = vmatpush1.msra.mxu0 %v926
        %1196 = vmatprep.subr.mxu0 %v929
        %1197 = vmatpush1.msra.mxu0 %v928
        %1198 = vmatprep.subr.mxu0 %v931
        %1199 = vmatpush1.msra.mxu0 %v930
        %1200 = vmatprep.subr.mxu0 %v933
        %1201 = vmatpush1.msra.mxu0 %v932
        %1202 = vmatprep.subr.mxu0 %v935
        %1203 = vmatpush1.msra.mxu0 %v934
        %1204 = vmatprep.subr.mxu0 %v937
        %1205 = vmatpush1.msra.mxu0 %v936
        %1206 = vmatprep.subr.mxu0 %v939
        %1207 = vmatpush1.msra.mxu0 %v938
        %1208 = vmatprep.subr.mxu0 %v941
        %1209 = vmatpush1.msra.mxu0 %v940
        %1210 = vmatprep.subr.mxu0 %v943
        %1211 = vmatpush1.msra.mxu0 %v942
        %1212 = vmatprep.subr.mxu0 %v945
        %1213 = vmatpush1.msra.mxu0 %v944
        %1214 = vmatprep.subr.mxu0 %v947
        %1215 = vmatpush1.msra.mxu0 %v946
        %1216 = vmatprep.subr.mxu0 %v949
        %1217 = vmatpush1.msra.mxu0 %v948
        %1218 = vmatprep.subr.mxu0 %v951
        %1219 = vmatpush1.msra.mxu0 %v950
        %1220 = vmatprep.subr.mxu0 %v953
        %1221 = vmatpush1.msra.mxu0 %v952
        %1222 = vmatprep.subr.mxu0 %v955
        %1223 = vmatpush1.msra.mxu0 %v954
        %1224 = vmatprep.subr.mxu0 %v957
        %1225 = vmatpush1.msra.mxu0 %v956
        %1226 = vmatprep.subr.mxu0 %v959
        %1227 = vmatpush1.msra.mxu0 %v958
        %1228 = vmatprep.mubr.f32.mxu0 %v510
        %1229 = vmatmul.mubr.f32.gmra.mrb[0].mxu0 %v470
        %v1230 = vpop.f32.mrb[0].mxu0
        %v1231 = vadd.f32 %v1157, %v1230
        %v1232 = vpop.f32.mrb[0].mxu0
        %v1233 = vadd.f32 %v1161, %v1232
        %1234 = vmatprep.mubr.f32.mxu0 %v512
        %1235 = vmatmul.mubr.f32.gmra.mrb[0].mxu0 %v471
        %v1236 = vpop.f32.mrb[0].mxu0
        %v1237 = vadd.f32 %v1157, %v1236
        %v1238 = vpop.f32.mrb[0].mxu0
        %v1239 = vadd.f32 %v1161, %v1238
        %1240 = vmatprep.mubr.f32.mxu0 %v514
        %1241 = vmatmul.mubr.f32.gmra.mrb[0].mxu0 %v472
        %v1242 = vpop.f32.mrb[0].mxu0
        %v1243 = vadd.f32 %v1157, %v1242
        %v1244 = vpop.f32.mrb[0].mxu0
        %v1245 = vadd.f32 %v1161, %v1244
        %1246 = vmatprep.mubr.f32.mxu0 %v516
        %1247 = vmatmul.mubr.f32.gmra.mrb[0].mxu0 %v473
        %v1248 = vpop.f32.mrb[0].mxu0
        %v1249 = vadd.f32 %v1157, %v1248
        %v1250 = vpop.f32.mrb[0].mxu0
        %v1251 = vadd.f32 %v1161, %v1250
        %1252 = vmatprep.mubr.f32.mxu0 %v518
        %1253 = vmatmul.mubr.f32.gmra.mrb[0].mxu0 %v474
        %v1254 = vpop.f32.mrb[0].mxu0
        %v1255 = vadd.f32 %v1157, %v1254
        %v1256 = vpop.f32.mrb[0].mxu0
        %v1257 = vadd.f32 %v1161, %v1256
        %1258 = vmatprep.mubr.f32.mxu0 %v520
        %1259 = vmatmul.mubr.f32.gmra.mrb[0].mxu0 %v475
        %v1260 = vpop.f32.mrb[0].mxu0
        %v1261 = vadd.f32 %v1157, %v1260
        %v1262 = vpop.f32.mrb[0].mxu0
        %v1263 = vadd.f32 %v1161, %v1262
        %1264 = vmatprep.mubr.f32.mxu0 %v522
        %1265 = vmatmul.mubr.f32.gmra.mrb[0].mxu0 %v476
        %v1266 = vpop.f32.mrb[0].mxu0
        %v1267 = vadd.f32 %v1157, %v1266
        %v1268 = vpop.f32.mrb[0].mxu0
        %v1269 = vadd.f32 %v1161, %v1268
        %1270 = vmatprep.mubr.f32.mxu0 %v524
        %1271 = vmatmul.mubr.f32.gmra.mrb[0].mxu0 %v477
        %v1272 = vpop.f32.mrb[0].mxu0
        %v1273 = vadd.f32 %v1157, %v1272
        %v1274 = vpop.f32.mrb[0].mxu0
        %v1275 = vadd.f32 %v1161, %v1274
        %1276 = vmatprep.mubr.f32.mxu0 %v526
        %1277 = vmatmul.mubr.f32.gmra.mrb[0].mxu0 %v478
        %v1278 = vpop.f32.mrb[0].mxu0
        %v1279 = vadd.f32 %v1157, %v1278
        %v1280 = vpop.f32.mrb[0].mxu0
        %v1281 = vadd.f32 %v1161, %v1280
        %1282 = vmatprep.mubr.f32.mxu0 %v528
        %1283 = vmatmul.mubr.f32.gmra.mrb[0].mxu0 %v479
        %v1284 = vpop.f32.mrb[0].mxu0
        %v1285 = vadd.f32 %v1157, %v1284
        %v1286 = vpop.f32.mrb[0].mxu0
        %v1287 = vadd.f32 %v1161, %v1286
        %1288 = vmatprep.mubr.f32.mxu0 %v530
        %1289 = vmatmul.mubr.f32.gmra.mrb[0].mxu0 %v480
        %v1290 = vpop.f32.mrb[0].mxu0
        %v1291 = vadd.f32 %v1157, %v1290
        %v1292 = vpop.f32.mrb[0].mxu0
        %v1293 = vadd.f32 %v1161, %v1292
        %1294 = vmatprep.mubr.f32.mxu0 %v532
        %1295 = vmatmul.mubr.f32.gmra.mrb[0].mxu0 %v481
        %v1296 = vpop.f32.mrb[0].mxu0
        %v1297 = vadd.f32 %v1157, %v1296
        %v1298 = vpop.f32.mrb[0].mxu0
        %v1299 = vadd.f32 %v1161, %v1298
        %1300 = vmatprep.mubr.f32.mxu0 %v534
        %1301 = vmatmul.mubr.f32.gmra.mrb[0].mxu0 %v482
        %v1302 = vpop.f32.mrb[0].mxu0
        %v1303 = vadd.f32 %v1157, %v1302
        %v1304 = vpop.f32.mrb[0].mxu0
        %v1305 = vadd.f32 %v1161, %v1304
        %1306 = vmatprep.mubr.f32.mxu0 %v536
        %1307 = vmatmul.mubr.f32.gmra.mrb[0].mxu0 %v483
        %v1308 = vpop.f32.mrb[0].mxu0
        %v1309 = vadd.f32 %v1157, %v1308
        %v1310 = vpop.f32.mrb[0].mxu0
        %v1311 = vadd.f32 %v1161, %v1310
        %1312 = vmatprep.mubr.f32.mxu0 %v538
        %1313 = vmatmul.mubr.f32.gmra.mrb[0].mxu0 %v484
        %v1314 = vpop.f32.mrb[0].mxu0
        %v1315 = vadd.f32 %v1157, %v1314
        %v1316 = vpop.f32.mrb[0].mxu0
        %v1317 = vadd.f32 %v1161, %v1316
        %1318 = vmatprep.mubr.f32.mxu0 %v540
        %1319 = vmatmul.mubr.f32.gmra.mrb[0].mxu0 %v485
        %v1320 = vpop.f32.mrb[0].mxu0
        %v1321 = vadd.f32 %v1157, %v1320
        %v1322 = vpop.f32.mrb[0].mxu0
        %v1323 = vadd.f32 %v1161, %v1322
        %1324 = vmatprep.mubr.f32.mxu0 %v542
        %1325 = vmatmul.mubr.f32.gmra.mrb[0].mxu0 %v486
        %v1326 = vpop.f32.mrb[0].mxu0
        %v1327 = vadd.f32 %v1157, %v1326
        %v1328 = vpop.f32.mrb[0].mxu0
        %v1329 = vadd.f32 %v1161, %v1328
        %1330 = vmatprep.mubr.f32.mxu0 %v541
        %1331 = vmatmul.mubr.f32.gmra.mrb[0].mxu0 %v487
        %v1332 = vpop.f32.mrb[0].mxu0
        %v1333 = vadd.f32 %v1157, %v1332
        %v1334 = vpop.f32.mrb[0].mxu0
        %v1335 = vadd.f32 %v1161, %v1334
        %1336 = vdwg.mxu0
        %1337 = vmatprep.subr.mxu0 %v961
        %1338 = vmatpush1.msra.mxu0 %v960
        %1339 = vmatprep.subr.mxu0 %v963
        %1340 = vmatpush1.msra.mxu0 %v962
        %1341 = vmatprep.subr.mxu0 %v965
        %1342 = vmatpush1.msra.mxu0 %v964
        %1343 = vmatprep.subr.mxu0 %v967
        %1344 = vmatpush1.msra.mxu0 %v966
        %1345 = vmatprep.subr.mxu0 %v969
        %1346 = vmatpush1.msra.mxu0 %v968
        %1347 = vmatprep.subr.mxu0 %v971
        %1348 = vmatpush1.msra.mxu0 %v970
        %1349 = vmatprep.subr.mxu0 %v973
        %1350 = vmatpush1.msra.mxu0 %v972
        %1351 = vmatprep.subr.mxu0 %v975
        %1352 = vmatpush1.msra.mxu0 %v974
        %1353 = vmatprep.subr.mxu0 %v977
        %1354 = vmatpush1.msra.mxu0 %v976
        %1355 = vmatprep.subr.mxu0 %v979
        %1356 = vmatpush1.msra.mxu0 %v978
        %1357 = vmatprep.subr.mxu0 %v981
        %1358 = vmatpush1.msra.mxu0 %v980
        %1359 = vmatprep.subr.mxu0 %v983
        %1360 = vmatpush1.msra.mxu0 %v982
        %1361 = vmatprep.subr.mxu0 %v985
        %1362 = vmatpush1.msra.mxu0 %v984
        %1363 = vmatprep.subr.mxu0 %v987
        %1364 = vmatpush1.msra.mxu0 %v986
        %1365 = vmatprep.subr.mxu0 %v989
        %1366 = vmatpush1.msra.mxu0 %v988
        %1367 = vmatprep.subr.mxu0 %v991
        %1368 = vmatpush1.msra.mxu0 %v990
        %1369 = vmatprep.subr.mxu0 %v993
        %1370 = vmatpush1.msra.mxu0 %v992
        %1371 = vmatprep.subr.mxu0 %v995
        %1372 = vmatpush1.msra.mxu0 %v994
        %1373 = vmatprep.subr.mxu0 %v997
        %1374 = vmatpush1.msra.mxu0 %v996
        %1375 = vmatprep.subr.mxu0 %v999
        %1376 = vmatpush1.msra.mxu0 %v998
        %1377 = vmatprep.subr.mxu0 %v1001
        %1378 = vmatpush1.msra.mxu0 %v1000
        %1379 = vmatprep.subr.mxu0 %v1003
        %1380 = vmatpush1.msra.mxu0 %v1002
        %1381 = vmatprep.subr.mxu0 %v1005
        %1382 = vmatpush1.msra.mxu0 %v1004
        %1383 = vmatprep.subr.mxu0 %v1007
        %1384 = vmatpush1.msra.mxu0 %v1006
        %1385 = vmatprep.subr.mxu0 %v1009
        %1386 = vmatpush1.msra.mxu0 %v1008
        %1387 = vmatprep.subr.mxu0 %v1011
        %1388 = vmatpush1.msra.mxu0 %v1010
        %1389 = vmatprep.subr.mxu0 %v1013
        %1390 = vmatpush1.msra.mxu0 %v1012
        %1391 = vmatprep.subr.mxu0 %v1015
        %1392 = vmatpush1.msra.mxu0 %v1014
        %1393 = vmatprep.subr.mxu0 %v1017
        %1394 = vmatpush1.msra.mxu0 %v1016
        %1395 = vmatprep.subr.mxu0 %v1019
        %1396 = vmatpush1.msra.mxu0 %v1018
        %1397 = vmatprep.subr.mxu0 %v1021
        %1398 = vmatpush1.msra.mxu0 %v1020
        %1399 = vmatprep.subr.mxu0 %v1023
        %1400 = vmatpush1.msra.mxu0 %v1022
        %1401 = vmatprep.mubr.f32.mxu0 %v619
        %1402 = vmatmul.mubr.f32.gmra.mrb[0].mxu0 %v564
        %v1403 = vpop.f32.mrb[0].mxu0
        %v1404 = vadd.f32 %v1231, %v1403
        %v1405 = vpop.f32.mrb[0].mxu0
        %v1406 = vadd.f32 %v1233, %v1405
        %1407 = vmatprep.mubr.f32.mxu0 %v621
        %1408 = vmatmul.mubr.f32.gmra.mrb[0].mxu0 %v566
        %v1409 = vpop.f32.mrb[0].mxu0
        %v1410 = vadd.f32 %v1237, %v1409
        %v1411 = vpop.f32.mrb[0].mxu0
        %v1412 = vadd.f32 %v1239, %v1411
        %1413 = vmatprep.mubr.f32.mxu0 %v623
        %1414 = vmatmul.mubr.f32.gmra.mrb[0].mxu0 %v568
        %v1415 = vpop.f32.mrb[0].mxu0
        %v1416 = vadd.f32 %v1243, %v1415
        %v1417 = vpop.f32.mrb[0].mxu0
        %v1418 = vadd.f32 %v1245, %v1417
        %1419 = vmatprep.mubr.f32.mxu0 %v625
        %1420 = vmatmul.mubr.f32.gmra.mrb[0].mxu0 %v570
        %v1421 = vpop.f32.mrb[0].mxu0
        %v1422 = vadd.f32 %v1249, %v1421
        %v1423 = vpop.f32.mrb[0].mxu0
        %v1424 = vadd.f32 %v1251, %v1423
        %1425 = vmatprep.mubr.f32.mxu0 %v627
        %1426 = vmatmul.mubr.f32.gmra.mrb[0].mxu0 %v572
        %v1427 = vpop.f32.mrb[0].mxu0
        %v1428 = vadd.f32 %v1255, %v1427
        %v1429 = vpop.f32.mrb[0].mxu0
        %v1430 = vadd.f32 %v1257, %v1429
        %1431 = vmatprep.mubr.f32.mxu0 %v629
        %1432 = vmatmul.mubr.f32.gmra.mrb[0].mxu0 %v574
        %v1433 = vpop.f32.mrb[0].mxu0
        %v1434 = vadd.f32 %v1261, %v1433
        %v1435 = vpop.f32.mrb[0].mxu0
        %v1436 = vadd.f32 %v1263, %v1435
        %1437 = vmatprep.mubr.f32.mxu0 %v631
        %1438 = vmatmul.mubr.f32.gmra.mrb[0].mxu0 %v576
        %v1439 = vpop.f32.mrb[0].mxu0
        %v1440 = vadd.f32 %v1267, %v1439
        %v1441 = vpop.f32.mrb[0].mxu0
        %v1442 = vadd.f32 %v1269, %v1441
        %1443 = vmatprep.mubr.f32.mxu0 %v633
        %1444 = vmatmul.mubr.f32.gmra.mrb[0].mxu0 %v578
        %v1445 = vpop.f32.mrb[0].mxu0
        %v1446 = vadd.f32 %v1273, %v1445
        %v1447 = vpop.f32.mrb[0].mxu0
        %v1448 = vadd.f32 %v1275, %v1447
        %1449 = vmatprep.mubr.f32.mxu0 %v635
        %1450 = vmatmul.mubr.f32.gmra.mrb[0].mxu0 %v580
        %v1451 = vpop.f32.mrb[0].mxu0
        %v1452 = vadd.f32 %v1279, %v1451
        %v1453 = vpop.f32.mrb[0].mxu0
        %v1454 = vadd.f32 %v1281, %v1453
        %1455 = vmatprep.mubr.f32.mxu0 %v637
        %1456 = vmatmul.mubr.f32.gmra.mrb[0].mxu0 %v582
        %v1457 = vpop.f32.mrb[0].mxu0
        %v1458 = vadd.f32 %v1285, %v1457
        %v1459 = vpop.f32.mrb[0].mxu0
        %v1460 = vadd.f32 %v1287, %v1459
        %1461 = vmatprep.mubr.f32.mxu0 %v639
        %1462 = vmatmul.mubr.f32.gmra.mrb[0].mxu0 %v584
        %v1463 = vpop.f32.mrb[0].mxu0
        %v1464 = vadd.f32 %v1291, %v1463
        %v1465 = vpop.f32.mrb[0].mxu0
        %v1466 = vadd.f32 %v1293, %v1465
        %1467 = vmatprep.mubr.f32.mxu0 %v641
        %1468 = vmatmul.mubr.f32.gmra.mrb[0].mxu0 %v586
        %v1469 = vpop.f32.mrb[0].mxu0
        %v1470 = vadd.f32 %v1297, %v1469
        %v1471 = vpop.f32.mrb[0].mxu0
        %v1472 = vadd.f32 %v1299, %v1471
        %1473 = vmatprep.mubr.f32.mxu0 %v643
        %1474 = vmatmul.mubr.f32.gmra.mrb[0].mxu0 %v588
        %v1475 = vpop.f32.mrb[0].mxu0
        %v1476 = vadd.f32 %v1303, %v1475
        %v1477 = vpop.f32.mrb[0].mxu0
        %v1478 = vadd.f32 %v1305, %v1477
        %1479 = vmatprep.mubr.f32.mxu0 %v645
        %1480 = vmatmul.mubr.f32.gmra.mrb[0].mxu0 %v590
        %v1481 = vpop.f32.mrb[0].mxu0
        %v1482 = vadd.f32 %v1309, %v1481
        %v1483 = vpop.f32.mrb[0].mxu0
        %v1484 = vadd.f32 %v1311, %v1483
        %1485 = vmatprep.mubr.f32.mxu0 %v647
        %1486 = vmatmul.mubr.f32.gmra.mrb[0].mxu0 %v592
        %v1487 = vpop.f32.mrb[0].mxu0
        %v1488 = vadd.f32 %v1315, %v1487
        %v1489 = vpop.f32.mrb[0].mxu0
        %v1490 = vadd.f32 %v1317, %v1489
        %1491 = vmatprep.mubr.f32.mxu0 %v649
        %1492 = vmatmul.mubr.f32.gmra.mrb[0].mxu0 %v594
        %v1493 = vpop.f32.mrb[0].mxu0
        %v1494 = vadd.f32 %v1321, %v1493
        %v1495 = vpop.f32.mrb[0].mxu0
        %v1496 = vadd.f32 %v1323, %v1495
        %1497 = vmatprep.mubr.f32.mxu0 %v651
        %1498 = vmatmul.mubr.f32.gmra.mrb[0].mxu0 %v596
        %v1499 = vpop.f32.mrb[0].mxu0
        %v1500 = vadd.f32 %v1327, %v1499
        %v1501 = vpop.f32.mrb[0].mxu0
        %v1502 = vadd.f32 %v1329, %v1501
        %1503 = vmatprep.mubr.f32.mxu0 %v653
        %1504 = vmatmul.mubr.f32.gmra.mrb[0].mxu0 %v595
        %v1505 = vpop.f32.mrb[0].mxu0
        %v1506 = vadd.f32 %v1333, %v1505
        %v1507 = vpop.f32.mrb[0].mxu0
        %v1508 = vadd.f32 %v1335, %v1507
        %1509 = vdwg.mxu0
        %1510 = vmatprep.subr.mxu0 %v1025
        %1511 = vmatpush1.msra.mxu0 %v1024
        %1512 = vmatprep.subr.mxu0 %v1027
        %1513 = vmatpush1.msra.mxu0 %v1026
        %1514 = vmatprep.subr.mxu0 %v1029
        %1515 = vmatpush1.msra.mxu0 %v1028
        %1516 = vmatprep.subr.mxu0 %v1031
        %1517 = vmatpush1.msra.mxu0 %v1030
        %1518 = vmatprep.subr.mxu0 %v1033
        %1519 = vmatpush1.msra.mxu0 %v1032
        %1520 = vmatprep.subr.mxu0 %v1035
        %1521 = vmatpush1.msra.mxu0 %v1034
        %1522 = vmatprep.subr.mxu0 %v1037
        %1523 = vmatpush1.msra.mxu0 %v1036
        %1524 = vmatprep.subr.mxu0 %v1039
        %1525 = vmatpush1.msra.mxu0 %v1038
        %1526 = vmatprep.subr.mxu0 %v1041
        %1527 = vmatpush1.msra.mxu0 %v1040
        %1528 = vmatprep.subr.mxu0 %v1043
        %1529 = vmatpush1.msra.mxu0 %v1042
        %1530 = vmatprep.subr.mxu0 %v1045
        %1531 = vmatpush1.msra.mxu0 %v1044
        %1532 = vmatprep.subr.mxu0 %v1047
        %1533 = vmatpush1.msra.mxu0 %v1046
        %1534 = vmatprep.subr.mxu0 %v1049
        %1535 = vmatpush1.msra.mxu0 %v1048
        %1536 = vmatprep.subr.mxu0 %v1051
        %1537 = vmatpush1.msra.mxu0 %v1050
        %1538 = vmatprep.subr.mxu0 %v1053
        %1539 = vmatpush1.msra.mxu0 %v1052
        %1540 = vmatprep.subr.mxu0 %v1055
        %1541 = vmatpush1.msra.mxu0 %v1054
        %1542 = vmatprep.subr.mxu0 %v1057
        %1543 = vmatpush1.msra.mxu0 %v1056
        %1544 = vmatprep.subr.mxu0 %v1059
        %1545 = vmatpush1.msra.mxu0 %v1058
        %1546 = vmatprep.subr.mxu0 %v1061
        %1547 = vmatpush1.msra.mxu0 %v1060
        %1548 = vmatprep.subr.mxu0 %v1063
        %1549 = vmatpush1.msra.mxu0 %v1062
        %1550 = vmatprep.subr.mxu0 %v1065
        %1551 = vmatpush1.msra.mxu0 %v1064
        %1552 = vmatprep.subr.mxu0 %v1067
        %1553 = vmatpush1.msra.mxu0 %v1066
        %1554 = vmatprep.subr.mxu0 %v1069
        %1555 = vmatpush1.msra.mxu0 %v1068
        %1556 = vmatprep.subr.mxu0 %v1071
        %1557 = vmatpush1.msra.mxu0 %v1070
        %1558 = vmatprep.subr.mxu0 %v1073
        %1559 = vmatpush1.msra.mxu0 %v1072
        %1560 = vmatprep.subr.mxu0 %v1075
        %1561 = vmatpush1.msra.mxu0 %v1074
        %1562 = vmatprep.subr.mxu0 %v1077
        %1563 = vmatpush1.msra.mxu0 %v1076
        %1564 = vmatprep.subr.mxu0 %v1079
        %1565 = vmatpush1.msra.mxu0 %v1078
        %1566 = vmatprep.subr.mxu0 %v1081
        %1567 = vmatpush1.msra.mxu0 %v1080
        %1568 = vmatprep.subr.mxu0 %v1083
        %1569 = vmatpush1.msra.mxu0 %v1082
        %1570 = vmatprep.subr.mxu0 %v1085
        %1571 = vmatpush1.msra.mxu0 %v1084
        %1572 = vmatprep.subr.mxu0 %v1087
        %1573 = vmatpush1.msra.mxu0 %v1086
        %1574 = vmatprep.mubr.f32.mxu0 %v731
        %1575 = vmatmul.mubr.f32.gmra.mrb[0].mxu0 %v675
        %v1576 = vpop.f32.mrb[0].mxu0
        %v1577 = vadd.f32 %v1404, %v1576
        %v1578 = vpop.f32.mrb[0].mxu0
        %v1579 = vadd.f32 %v1406, %v1578
        %1580 = vmatprep.mubr.f32.mxu0 %v733
        %1581 = vmatmul.mubr.f32.gmra.mrb[0].mxu0 %v677
        %v1582 = vpop.f32.mrb[0].mxu0
        %v1583 = vadd.f32 %v1410, %v1582
        %v1584 = vpop.f32.mrb[0].mxu0
        %v1585 = vadd.f32 %v1412, %v1584
        %1586 = vmatprep.mubr.f32.mxu0 %v735
        %1587 = vmatmul.mubr.f32.gmra.mrb[0].mxu0 %v679
        %v1588 = vpop.f32.mrb[0].mxu0
        %v1589 = vadd.f32 %v1416, %v1588
        %v1590 = vpop.f32.mrb[0].mxu0
        %v1591 = vadd.f32 %v1418, %v1590
        %1592 = vmatprep.mubr.f32.mxu0 %v737
        %1593 = vmatmul.mubr.f32.gmra.mrb[0].mxu0 %v681
        %v1594 = vpop.f32.mrb[0].mxu0
        %v1595 = vadd.f32 %v1422, %v1594
        %v1596 = vpop.f32.mrb[0].mxu0
        %v1597 = vadd.f32 %v1424, %v1596
        %1598 = vmatprep.mubr.f32.mxu0 %v739
        %1599 = vmatmul.mubr.f32.gmra.mrb[0].mxu0 %v683
        %v1600 = vpop.f32.mrb[0].mxu0
        %v1601 = vadd.f32 %v1428, %v1600
        %v1602 = vpop.f32.mrb[0].mxu0
        %v1603 = vadd.f32 %v1430, %v1602
        %1604 = vmatprep.mubr.f32.mxu0 %v741
        %1605 = vmatmul.mubr.f32.gmra.mrb[0].mxu0 %v685
        %v1606 = vpop.f32.mrb[0].mxu0
        %v1607 = vadd.f32 %v1434, %v1606
        %v1608 = vpop.f32.mrb[0].mxu0
        %v1609 = vadd.f32 %v1436, %v1608
        %1610 = vmatprep.mubr.f32.mxu0 %v743
        %1611 = vmatmul.mubr.f32.gmra.mrb[0].mxu0 %v687
        %v1612 = vpop.f32.mrb[0].mxu0
        %v1613 = vadd.f32 %v1440, %v1612
        %v1614 = vpop.f32.mrb[0].mxu0
        %v1615 = vadd.f32 %v1442, %v1614
        %1616 = vmatprep.mubr.f32.mxu0 %v745
        %1617 = vmatmul.mubr.f32.gmra.mrb[0].mxu0 %v689
        %v1618 = vpop.f32.mrb[0].mxu0
        %v1619 = vadd.f32 %v1446, %v1618
        %v1620 = vpop.f32.mrb[0].mxu0
        %v1621 = vadd.f32 %v1448, %v1620
        %1622 = vmatprep.mubr.f32.mxu0 %v747
        %1623 = vmatmul.mubr.f32.gmra.mrb[0].mxu0 %v691
        %v1624 = vpop.f32.mrb[0].mxu0
        %v1625 = vadd.f32 %v1452, %v1624
        %v1626 = vpop.f32.mrb[0].mxu0
        %v1627 = vadd.f32 %v1454, %v1626
        %1628 = vmatprep.mubr.f32.mxu0 %v749
        %1629 = vmatmul.mubr.f32.gmra.mrb[0].mxu0 %v693
        %v1630 = vpop.f32.mrb[0].mxu0
        %v1631 = vadd.f32 %v1458, %v1630
        %v1632 = vpop.f32.mrb[0].mxu0
        %v1633 = vadd.f32 %v1460, %v1632
        %1634 = vmatprep.mubr.f32.mxu0 %v751
        %1635 = vmatmul.mubr.f32.gmra.mrb[0].mxu0 %v695
        %v1636 = vpop.f32.mrb[0].mxu0
        %v1637 = vadd.f32 %v1464, %v1636
        %v1638 = vpop.f32.mrb[0].mxu0
        %v1639 = vadd.f32 %v1466, %v1638
        %1640 = vmatprep.mubr.f32.mxu0 %v753
        %1641 = vmatmul.mubr.f32.gmra.mrb[0].mxu0 %v697
        %v1642 = vpop.f32.mrb[0].mxu0
        %v1643 = vadd.f32 %v1470, %v1642
        %v1644 = vpop.f32.mrb[0].mxu0
        %v1645 = vadd.f32 %v1472, %v1644
        %1646 = vmatprep.mubr.f32.mxu0 %v755
        %1647 = vmatmul.mubr.f32.gmra.mrb[0].mxu0 %v699
        %v1648 = vpop.f32.mrb[0].mxu0
        %v1649 = vadd.f32 %v1476, %v1648
        %v1650 = vpop.f32.mrb[0].mxu0
        %v1651 = vadd.f32 %v1478, %v1650
        %1652 = vmatprep.mubr.f32.mxu0 %v757
        %1653 = vmatmul.mubr.f32.gmra.mrb[0].mxu0 %v701
        %v1654 = vpop.f32.mrb[0].mxu0
        %v1655 = vadd.f32 %v1482, %v1654
        %v1656 = vpop.f32.mrb[0].mxu0
        %v1657 = vadd.f32 %v1484, %v1656
        %1658 = vmatprep.mubr.f32.mxu0 %v759
        %1659 = vmatmul.mubr.f32.gmra.mrb[0].mxu0 %v703
        %v1660 = vpop.f32.mrb[0].mxu0
        %v1661 = vadd.f32 %v1488, %v1660
        %v1662 = vpop.f32.mrb[0].mxu0
        %v1663 = vadd.f32 %v1490, %v1662
        %1664 = vmatprep.mubr.f32.mxu0 %v761
        %1665 = vmatmul.mubr.f32.gmra.mrb[0].mxu0 %v705
        %v1666 = vpop.f32.mrb[0].mxu0
        %v1667 = vadd.f32 %v1494, %v1666
        %v1668 = vpop.f32.mrb[0].mxu0
        %v1669 = vadd.f32 %v1496, %v1668
        %1670 = vmatprep.mubr.f32.mxu0 %v763
        %1671 = vmatmul.mubr.f32.gmra.mrb[0].mxu0 %v707
        %v1672 = vpop.f32.mrb[0].mxu0
        %v1673 = vadd.f32 %v1500, %v1672
        %v1674 = vpop.f32.mrb[0].mxu0
        %v1675 = vadd.f32 %v1502, %v1674
        %1676 = vmatprep.mubr.f32.mxu0 %v765
        %1677 = vmatmul.mubr.f32.gmra.mrb[0].mxu0 %v709
        %v1678 = vpop.f32.mrb[0].mxu0
        %v1679 = vadd.f32 %v1506, %v1678
        %v1680 = vpop.f32.mrb[0].mxu0
        %v1681 = vadd.f32 %v1508, %v1680
        %1682 = vdwg.mxu0
        %1683 = vmatprep.subr.mxu0 %v1089
        %1684 = vmatpush1.msra.mxu0 %v1088
        %1685 = vmatprep.subr.mxu0 %v1091
        %1686 = vmatpush1.msra.mxu0 %v1090
        %1687 = vmatprep.subr.mxu0 %v1093
        %1688 = vmatpush1.msra.mxu0 %v1092
        %1689 = vmatprep.subr.mxu0 %v1095
        %1690 = vmatpush1.msra.mxu0 %v1094
        %1691 = vmatprep.subr.mxu0 %v1097
        %1692 = vmatpush1.msra.mxu0 %v1096
        %1693 = vmatprep.subr.mxu0 %v1099
        %1694 = vmatpush1.msra.mxu0 %v1098
        %1695 = vmatprep.subr.mxu0 %v1101
        %1696 = vmatpush1.msra.mxu0 %v1100
        %1697 = vmatprep.subr.mxu0 %v1103
        %1698 = vmatpush1.msra.mxu0 %v1102
        %1699 = vmatprep.subr.mxu0 %v1105
        %1700 = vmatpush1.msra.mxu0 %v1104
        %1701 = vmatprep.subr.mxu0 %v1107
        %1702 = vmatpush1.msra.mxu0 %v1106
        %1703 = vmatprep.subr.mxu0 %v1109
        %1704 = vmatpush1.msra.mxu0 %v1108
        %1705 = vmatprep.subr.mxu0 %v1111
        %1706 = vmatpush1.msra.mxu0 %v1110
        %1707 = vmatprep.subr.mxu0 %v1113
        %1708 = vmatpush1.msra.mxu0 %v1112
        %1709 = vmatprep.subr.mxu0 %v1115
        %1710 = vmatpush1.msra.mxu0 %v1114
        %1711 = vmatprep.subr.mxu0 %v1117
        %1712 = vmatpush1.msra.mxu0 %v1116
        %1713 = vmatprep.subr.mxu0 %v1119
        %1714 = vmatpush1.msra.mxu0 %v1118
        %1715 = vmatprep.subr.mxu0 %v1121
        %1716 = vmatpush1.msra.mxu0 %v1120
        %1717 = vmatprep.subr.mxu0 %v1123
        %1718 = vmatpush1.msra.mxu0 %v1122
        %1719 = vmatprep.subr.mxu0 %v1125
        %1720 = vmatpush1.msra.mxu0 %v1124
        %1721 = vmatprep.subr.mxu0 %v1127
        %1722 = vmatpush1.msra.mxu0 %v1126
        %1723 = vmatprep.subr.mxu0 %v1129
        %1724 = vmatpush1.msra.mxu0 %v1128
        %1725 = vmatprep.subr.mxu0 %v1131
        %1726 = vmatpush1.msra.mxu0 %v1130
        %1727 = vmatprep.subr.mxu0 %v1133
        %1728 = vmatpush1.msra.mxu0 %v1132
        %1729 = vmatprep.subr.mxu0 %v1135
        %1730 = vmatpush1.msra.mxu0 %v1134
        %1731 = vmatprep.subr.mxu0 %v1137
        %1732 = vmatpush1.msra.mxu0 %v1136
        %1733 = vmatprep.subr.mxu0 %v1139
        %1734 = vmatpush1.msra.mxu0 %v1138
        %1735 = vmatprep.subr.mxu0 %v1141
        %1736 = vmatpush1.msra.mxu0 %v1140
        %1737 = vmatprep.subr.mxu0 %v1143
        %1738 = vmatpush1.msra.mxu0 %v1142
        %1739 = vmatprep.subr.mxu0 %v1145
        %1740 = vmatpush1.msra.mxu0 %v1144
        %1741 = vmatprep.subr.mxu0 %v1147
        %1742 = vmatpush1.msra.mxu0 %v1146
        %1743 = vmatprep.subr.mxu0 %v1149
        %1744 = vmatpush1.msra.mxu0 %v1148
        %1745 = vmatprep.subr.mxu0 %v1151
        %1746 = vmatpush1.msra.mxu0 %v1150
        %1747 = vmatprep.mubr.f32.mxu0 %v843
        %1748 = vmatmul.mubr.f32.gmra.mrb[0].mxu0 %v787
        %v1749 = vpop.f32.mrb[0].mxu0
        %v1750 = vadd.f32 %v1577, %v1749
        %v1751 = vpop.f32.mrb[0].mxu0
        %v1752 = vadd.f32 %v1579, %v1751
        %1753 = vmatprep.mubr.f32.mxu0 %v845
        %1754 = vmatmul.mubr.f32.gmra.mrb[0].mxu0 %v789
        %v1755 = vpop.f32.mrb[0].mxu0
        %v1756 = vadd.f32 %v1583, %v1755
        %v1757 = vpop.f32.mrb[0].mxu0
        %v1758 = vadd.f32 %v1585, %v1757
        %1759 = vmatprep.mubr.f32.mxu0 %v847
        %1760 = vmatmul.mubr.f32.gmra.mrb[0].mxu0 %v791
        %v1761 = vpop.f32.mrb[0].mxu0
        %v1762 = vadd.f32 %v1589, %v1761
        %v1763 = vpop.f32.mrb[0].mxu0
        %v1764 = vadd.f32 %v1591, %v1763
        %1765 = vmatprep.mubr.f32.mxu0 %v849
        %1766 = vmatmul.mubr.f32.gmra.mrb[0].mxu0 %v793
        %v1767 = vpop.f32.mrb[0].mxu0
        %v1768 = vadd.f32 %v1595, %v1767
        %v1769 = vpop.f32.mrb[0].mxu0
        %v1770 = vadd.f32 %v1597, %v1769
        %1771 = vmatprep.mubr.f32.mxu0 %v851
        %1772 = vmatmul.mubr.f32.gmra.mrb[0].mxu0 %v795
        %v1773 = vpop.f32.mrb[0].mxu0
        %v1774 = vadd.f32 %v1601, %v1773
        %v1775 = vpop.f32.mrb[0].mxu0
        %v1776 = vadd.f32 %v1603, %v1775
        %1777 = vmatprep.mubr.f32.mxu0 %v853
        %1778 = vmatmul.mubr.f32.gmra.mrb[0].mxu0 %v797
        %v1779 = vpop.f32.mrb[0].mxu0
        %v1780 = vadd.f32 %v1607, %v1779
        %v1781 = vpop.f32.mrb[0].mxu0
        %v1782 = vadd.f32 %v1609, %v1781
        %1783 = vmatprep.mubr.f32.mxu0 %v855
        %1784 = vmatmul.mubr.f32.gmra.mrb[0].mxu0 %v799
        %v1785 = vpop.f32.mrb[0].mxu0
        %v1786 = vadd.f32 %v1613, %v1785
        %v1787 = vpop.f32.mrb[0].mxu0
        %v1788 = vadd.f32 %v1615, %v1787
        %1789 = vmatprep.mubr.f32.mxu0 %v857
        %1790 = vmatmul.mubr.f32.gmra.mrb[0].mxu0 %v801
        %v1791 = vpop.f32.mrb[0].mxu0
        %v1792 = vadd.f32 %v1619, %v1791
        %v1793 = vpop.f32.mrb[0].mxu0
        %v1794 = vadd.f32 %v1621, %v1793
        %1795 = vmatprep.mubr.f32.mxu0 %v859
        %1796 = vmatmul.mubr.f32.gmra.mrb[0].mxu0 %v803
        %v1797 = vpop.f32.mrb[0].mxu0
        %v1798 = vadd.f32 %v1625, %v1797
        %v1799 = vpop.f32.mrb[0].mxu0
        %v1800 = vadd.f32 %v1627, %v1799
        %1801 = vmatprep.mubr.f32.mxu0 %v861
        %1802 = vmatmul.mubr.f32.gmra.mrb[0].mxu0 %v805
        %v1803 = vpop.f32.mrb[0].mxu0
        %v1804 = vadd.f32 %v1631, %v1803
        %v1805 = vpop.f32.mrb[0].mxu0
        %v1806 = vadd.f32 %v1633, %v1805
        %1807 = vmatprep.mubr.f32.mxu0 %v863
        %1808 = vmatmul.mubr.f32.gmra.mrb[0].mxu0 %v807
        %v1809 = vpop.f32.mrb[0].mxu0
        %v1810 = vadd.f32 %v1637, %v1809
        %v1811 = vpop.f32.mrb[0].mxu0
        %v1812 = vadd.f32 %v1639, %v1811
        %1813 = vmatprep.mubr.f32.mxu0 %v865
        %1814 = vmatmul.mubr.f32.gmra.mrb[0].mxu0 %v809
        %v1815 = vpop.f32.mrb[0].mxu0
        %v1816 = vadd.f32 %v1643, %v1815
        %v1817 = vpop.f32.mrb[0].mxu0
        %v1818 = vadd.f32 %v1645, %v1817
        %1819 = vmatprep.mubr.f32.mxu0 %v867
        %1820 = vmatmul.mubr.f32.gmra.mrb[0].mxu0 %v811
        %v1821 = vpop.f32.mrb[0].mxu0
        %v1822 = vadd.f32 %v1649, %v1821
        %v1823 = vpop.f32.mrb[0].mxu0
        %v1824 = vadd.f32 %v1651, %v1823
        %1825 = vmatprep.mubr.f32.mxu0 %v869
        %1826 = vmatmul.mubr.f32.gmra.mrb[0].mxu0 %v813
        %v1827 = vpop.f32.mrb[0].mxu0
        %v1828 = vadd.f32 %v1655, %v1827
        %v1829 = vpop.f32.mrb[0].mxu0
        %v1830 = vadd.f32 %v1657, %v1829
        %1831 = vmatprep.mubr.f32.mxu0 %v871
        %1832 = vmatmul.mubr.f32.gmra.mrb[0].mxu0 %v815
        %v1833 = vpop.f32.mrb[0].mxu0
        %v1834 = vadd.f32 %v1661, %v1833
        %v1835 = vpop.f32.mrb[0].mxu0
        %v1836 = vadd.f32 %v1663, %v1835
        %1837 = vmatprep.mubr.f32.mxu0 %v873
        %1838 = vmatmul.mubr.f32.gmra.mrb[0].mxu0 %v817
        %v1839 = vpop.f32.mrb[0].mxu0
        %v1840 = vadd.f32 %v1667, %v1839
        %v1841 = vpop.f32.mrb[0].mxu0
        %v1842 = vadd.f32 %v1669, %v1841
        %1843 = vmatprep.mubr.f32.mxu0 %v875
        %1844 = vmatmul.mubr.f32.gmra.mrb[0].mxu0 %v819
        %v1845 = vpop.f32.mrb[0].mxu0
        %v1846 = vadd.f32 %v1673, %v1845
        %v1847 = vpop.f32.mrb[0].mxu0
        %v1848 = vadd.f32 %v1675, %v1847
        %1849 = vmatprep.mubr.f32.mxu0 %v877
        %1850 = vmatmul.mubr.f32.gmra.mrb[0].mxu0 %v821
        %v1851 = vpop.f32.mrb[0].mxu0
        %v1852 = vadd.f32 %v1679, %v1851
        %v1853 = vpop.f32.mrb[0].mxu0
        %v1854 = vadd.f32 %v1681, %v1853
        %1855 = vdwg.mxu0
        %v1856 = vmax.f32 %v1750, 0.0
        %v1857 = vmax.f32 %v1752, 0.0
        %v1858 = vmax.f32 %v1756, 0.0
        %v1859 = vmax.f32 %v1758, 0.0
        %v1860 = vmax.f32 %v1762, 0.0
        %v1861 = vmax.f32 %v1764, 0.0
        %v1862 = vmax.f32 %v1768, 0.0
        %v1863 = vmax.f32 %v1770, 0.0
        %v1864 = vmax.f32 %v1774, 0.0
        %v1865 = vmax.f32 %v1776, 0.0
        %v1866 = vmax.f32 %v1780, 0.0
        %v1867 = vmax.f32 %v1782, 0.0
        %v1868 = vmax.f32 %v1786, 0.0
        %v1869 = vmax.f32 %v1788, 0.0
        %v1870 = vmax.f32 %v1792, 0.0
        %v1871 = vmax.f32 %v1794, 0.0
        %v1872 = vmax.f32 %v1798, 0.0
        %v1873 = vmax.f32 %v1800, 0.0
        %v1874 = vmax.f32 %v1804, 0.0
        %v1875 = vmax.f32 %v1806, 0.0
        %v1876 = vmax.f32 %v1810, 0.0
        %v1877 = vmax.f32 %v1812, 0.0
        %v1878 = vmax.f32 %v1816, 0.0
        %v1879 = vmax.f32 %v1818, 0.0
        %v1880 = vmax.f32 %v1822, 0.0
        %v1881 = vmax.f32 %v1824, 0.0
        %v1882 = vmax.f32 %v1828, 0.0
        %v1883 = vmax.f32 %v1830, 0.0
        %v1884 = vmax.f32 %v1834, 0.0
        %v1885 = vmax.f32 %v1836, 0.0
        %v1886 = vmax.f32 %v1840, 0.0
        %v1887 = vmax.f32 %v1842, 0.0
        %v1888 = vmax.f32 %v1846, 0.0
        %v1889 = vmax.f32 %v1848, 0.0
        %v1890 = vmax.f32 %v1852, 0.0
        %v1891 = vmax.f32 %v1854, 0.0
        %s1892 = ssub.s32 %s336, 6
        %v1893 = vlaneseq
        %v1894 = vshrl.u32 %v1893, 7
        %v1895 = vadd.s32 %v1894, 8
        %v1896 = vadd.s32 %v1894, 16
        %v1897 = vadd.s32 %v1894, 24
        %v1898 = vadd.s32 %v1894, 32
        %v1899 = vadd.s32 %v1894, 40
        %v1900 = vadd.s32 %v1894, 48
        %v1901 = vadd.s32 %v1894, 56
        %v1902 = vadd.s32 %v1894, 64
        %v1903 = vadd.s32 %v1894, 72
        %v1904 = vadd.s32 %v1894, 80
        %v1905 = vadd.s32 %v1894, 88
        %v1906 = vadd.s32 %v1894, 96
        %v1907 = vadd.s32 %v1894, 104
        %v1908 = vadd.s32 %v1894, 112
        %v1909 = vadd.s32 %v1894, 120
        %v1910 = vadd.s32 %v1894, 128
        %v1911 = vadd.s32 %v1894, 136
        %v1912 = vstv %s1892
        %v1913 = vadd.s32 %v1912, %v1894
        %v1914 = vadd.s32 %v1912, %v1895
        %v1915 = vadd.s32 %v1912, %v1896
        %v1916 = vadd.s32 %v1912, %v1897
        %v1917 = vadd.s32 %v1912, %v1898
        %v1918 = vadd.s32 %v1912, %v1899
        %v1919 = vadd.s32 %v1912, %v1900
        %v1920 = vadd.s32 %v1912, %v1901
        %v1921 = vadd.s32 %v1912, %v1902
        %v1922 = vadd.s32 %v1912, %v1903
        %v1923 = vadd.s32 %v1912, %v1904
        %v1924 = vadd.s32 %v1912, %v1905
        %v1925 = vadd.s32 %v1912, %v1906
        %v1926 = vadd.s32 %v1912, %v1907
        %v1927 = vadd.s32 %v1912, %v1908
        %v1928 = vadd.s32 %v1912, %v1909
        %v1929 = vadd.s32 %v1912, %v1910
        %v1930 = vadd.s32 %v1912, %v1911
        %vm1931 = vcmp.ge.s32.totalorder %v1913, 0
        %vm1932 = vcmp.ge.s32.totalorder %v1914, 0
        %vm1933 = vcmp.ge.s32.totalorder %v1915, 0
        %vm1934 = vcmp.ge.s32.totalorder %v1916, 0
        %vm1935 = vcmp.ge.s32.totalorder %v1917, 0
        %vm1936 = vcmp.ge.s32.totalorder %v1918, 0
        %vm1937 = vcmp.ge.s32.totalorder %v1919, 0
        %vm1938 = vcmp.ge.s32.totalorder %v1920, 0
        %vm1939 = vcmp.ge.s32.totalorder %v1921, 0
        %vm1940 = vcmp.ge.s32.totalorder %v1922, 0
        %vm1941 = vcmp.ge.s32.totalorder %v1923, 0
        %vm1942 = vcmp.ge.s32.totalorder %v1924, 0
        %vm1943 = vcmp.ge.s32.totalorder %v1925, 0
        %vm1944 = vcmp.ge.s32.totalorder %v1926, 0
        %vm1945 = vcmp.ge.s32.totalorder %v1927, 0
        %vm1946 = vcmp.ge.s32.totalorder %v1928, 0
        %vm1947 = vcmp.ge.s32.totalorder %v1929, 0
        %vm1948 = vcmp.ge.s32.totalorder %v1930, 0
        %vm1949 = vcmp.lt.s32.totalorder %v1913, 240
        %vm1950 = vcmp.lt.s32.totalorder %v1914, 240
        %vm1951 = vcmp.lt.s32.totalorder %v1915, 240
        %vm1952 = vcmp.lt.s32.totalorder %v1916, 240
        %vm1953 = vcmp.lt.s32.totalorder %v1917, 240
        %vm1954 = vcmp.lt.s32.totalorder %v1918, 240
        %vm1955 = vcmp.lt.s32.totalorder %v1919, 240
        %vm1956 = vcmp.lt.s32.totalorder %v1920, 240
        %vm1957 = vcmp.lt.s32.totalorder %v1921, 240
        %vm1958 = vcmp.lt.s32.totalorder %v1922, 240
        %vm1959 = vcmp.lt.s32.totalorder %v1923, 240
        %vm1960 = vcmp.lt.s32.totalorder %v1924, 240
        %vm1961 = vcmp.lt.s32.totalorder %v1925, 240
        %vm1962 = vcmp.lt.s32.totalorder %v1926, 240
        %vm1963 = vcmp.lt.s32.totalorder %v1927, 240
        %vm1964 = vcmp.lt.s32.totalorder %v1928, 240
        %vm1965 = vcmp.lt.s32.totalorder %v1929, 240
        %vm1966 = vcmp.lt.s32.totalorder %v1930, 240
        %vm1967 = vmand %vm1931, %vm1949
        %vm1968 = vmand %vm1932, %vm1950
        %vm1969 = vmand %vm1933, %vm1951
        %vm1970 = vmand %vm1934, %vm1952
        %vm1971 = vmand %vm1935, %vm1953
        %vm1972 = vmand %vm1936, %vm1954
        %vm1973 = vmand %vm1937, %vm1955
        %vm1974 = vmand %vm1938, %vm1956
        %vm1975 = vmand %vm1939, %vm1957
        %vm1976 = vmand %vm1940, %vm1958
        %vm1977 = vmand %vm1941, %vm1959
        %vm1978 = vmand %vm1942, %vm1960
        %vm1979 = vmand %vm1943, %vm1961
        %vm1980 = vmand %vm1944, %vm1962
        %vm1981 = vmand %vm1945, %vm1963
        %vm1982 = vmand %vm1946, %vm1964
        %vm1983 = vmand %vm1947, %vm1965
        %vm1984 = vmand %vm1948, %vm1966
        %v1985 = vsel %vm1967, 1, 0
        %v1986 = vsel %vm1968, 1, 0
        %v1987 = vsel %vm1969, 1, 0
        %v1988 = vsel %vm1970, 1, 0
        %v1989 = vsel %vm1971, 1, 0
        %v1990 = vsel %vm1972, 1, 0
        %v1991 = vsel %vm1973, 1, 0
        %v1992 = vsel %vm1974, 1, 0
        %v1993 = vsel %vm1975, 1, 0
        %v1994 = vsel %vm1976, 1, 0
        %v1995 = vsel %vm1977, 1, 0
        %v1996 = vsel %vm1978, 1, 0
        %v1997 = vsel %vm1979, 1, 0
        %v1998 = vsel %vm1980, 1, 0
        %v1999 = vsel %vm1981, 1, 0
        %v2000 = vsel %vm1982, 1, 0
        %v2001 = vsel %vm1983, 1, 0
        %v2002 = vsel %vm1984, 1, 0
        %vm2003 = vcmp.eq.s32.totalorder %v1985, 1
        %vm2004 = vcmp.eq.s32.totalorder %v1986, 1
        %vm2005 = vcmp.eq.s32.totalorder %v1987, 1
        %vm2006 = vcmp.eq.s32.totalorder %v1988, 1
        %vm2007 = vcmp.eq.s32.totalorder %v1989, 1
        %vm2008 = vcmp.eq.s32.totalorder %v1990, 1
        %vm2009 = vcmp.eq.s32.totalorder %v1991, 1
        %vm2010 = vcmp.eq.s32.totalorder %v1992, 1
        %vm2011 = vcmp.eq.s32.totalorder %v1993, 1
        %vm2012 = vcmp.eq.s32.totalorder %v1994, 1
        %vm2013 = vcmp.eq.s32.totalorder %v1995, 1
        %vm2014 = vcmp.eq.s32.totalorder %v1996, 1
        %vm2015 = vcmp.eq.s32.totalorder %v1997, 1
        %vm2016 = vcmp.eq.s32.totalorder %v1998, 1
        %vm2017 = vcmp.eq.s32.totalorder %v1999, 1
        %vm2018 = vcmp.eq.s32.totalorder %v2000, 1
        %vm2019 = vcmp.eq.s32.totalorder %v2001, 1
        %vm2020 = vcmp.eq.s32.totalorder %v2002, 1
        %v2021 = vsel %vm2003, %v1856, 0.0
        %v2022 = vsel %vm2003, %v1857, 0.0
        %v2023 = vsel %vm2004, %v1858, 0.0
        %v2024 = vsel %vm2004, %v1859, 0.0
        %v2025 = vsel %vm2005, %v1860, 0.0
        %v2026 = vsel %vm2005, %v1861, 0.0
        %v2027 = vsel %vm2006, %v1862, 0.0
        %v2028 = vsel %vm2006, %v1863, 0.0
        %v2029 = vsel %vm2007, %v1864, 0.0
        %v2030 = vsel %vm2007, %v1865, 0.0
        %v2031 = vsel %vm2008, %v1866, 0.0
        %v2032 = vsel %vm2008, %v1867, 0.0
        %v2033 = vsel %vm2009, %v1868, 0.0
        %v2034 = vsel %vm2009, %v1869, 0.0
        %v2035 = vsel %vm2010, %v1870, 0.0
        %v2036 = vsel %vm2010, %v1871, 0.0
        %v2037 = vsel %vm2011, %v1872, 0.0
        %v2038 = vsel %vm2011, %v1873, 0.0
        %v2039 = vsel %vm2012, %v1874, 0.0
        %v2040 = vsel %vm2012, %v1875, 0.0
        %v2041 = vsel %vm2013, %v1876, 0.0
        %v2042 = vsel %vm2013, %v1877, 0.0
        %v2043 = vsel %vm2014, %v1878, 0.0
        %v2044 = vsel %vm2014, %v1879, 0.0
        %v2045 = vsel %vm2015, %v1880, 0.0
        %v2046 = vsel %vm2015, %v1881, 0.0
        %v2047 = vsel %vm2016, %v1882, 0.0
        %v2048 = vsel %vm2016, %v1883, 0.0
        %v2049 = vsel %vm2017, %v1884, 0.0
        %v2050 = vsel %vm2017, %v1885, 0.0
        %v2051 = vsel %vm2018, %v1886, 0.0
        %v2052 = vsel %vm2018, %v1887, 0.0
        %v2053 = vsel %vm2019, %v1888, 0.0
        %v2054 = vsel %vm2019, %v1889, 0.0
        %v2055 = vsel %vm2020, %v1890, 0.0
        %v2056 = vsel %vm2020, %v1891, 0.0
        %v2091 = vrot.slane %v2021, 1
        %v2092 = vrot.slane %v2023, 1
        %v2093 = vsel %vm507, %v2091, %v2092
        %v2094 = vrot.slane %v2022, 1
        %v2095 = vrot.slane %v2024, 1
        %v2096 = vsel %vm507, %v2094, %v2095
        %v2097 = vrot.slane %v2025, 1
        %v2098 = vsel %vm507, %v2092, %v2097
        %v2099 = vrot.slane %v2026, 1
        %v2100 = vsel %vm507, %v2095, %v2099
        %v2101 = vrot.slane %v2027, 1
        %v2102 = vsel %vm507, %v2097, %v2101
        %v2103 = vrot.slane %v2028, 1
        %v2104 = vsel %vm507, %v2099, %v2103
        %v2105 = vrot.slane %v2029, 1
        %v2106 = vsel %vm507, %v2101, %v2105
        %v2107 = vrot.slane %v2030, 1
        %v2108 = vsel %vm507, %v2103, %v2107
        %v2109 = vrot.slane %v2031, 1
        %v2110 = vsel %vm507, %v2105, %v2109
        %v2111 = vrot.slane %v2032, 1
        %v2112 = vsel %vm507, %v2107, %v2111
        %v2113 = vrot.slane %v2033, 1
        %v2114 = vsel %vm507, %v2109, %v2113
        %v2115 = vrot.slane %v2034, 1
        %v2116 = vsel %vm507, %v2111, %v2115
        %v2117 = vrot.slane %v2035, 1
        %v2118 = vsel %vm507, %v2113, %v2117
        %v2119 = vrot.slane %v2036, 1
        %v2120 = vsel %vm507, %v2115, %v2119
        %v2121 = vrot.slane %v2037, 1
        %v2122 = vsel %vm507, %v2117, %v2121
        %v2123 = vrot.slane %v2038, 1
        %v2124 = vsel %vm507, %v2119, %v2123
        %v2125 = vrot.slane %v2039, 1
        %v2126 = vsel %vm507, %v2121, %v2125
        %v2127 = vrot.slane %v2040, 1
        %v2128 = vsel %vm507, %v2123, %v2127
        %v2129 = vrot.slane %v2041, 1
        %v2130 = vsel %vm507, %v2125, %v2129
        %v2131 = vrot.slane %v2042, 1
        %v2132 = vsel %vm507, %v2127, %v2131
        %v2133 = vrot.slane %v2043, 1
        %v2134 = vsel %vm507, %v2129, %v2133
        %v2135 = vrot.slane %v2044, 1
        %v2136 = vsel %vm507, %v2131, %v2135
        %v2137 = vrot.slane %v2045, 1
        %v2138 = vsel %vm507, %v2133, %v2137
        %v2139 = vrot.slane %v2046, 1
        %v2140 = vsel %vm507, %v2135, %v2139
        %v2141 = vrot.slane %v2047, 1
        %v2142 = vsel %vm507, %v2137, %v2141
        %v2143 = vrot.slane %v2048, 1
        %v2144 = vsel %vm507, %v2139, %v2143
        %v2145 = vrot.slane %v2049, 1
        %v2146 = vsel %vm507, %v2141, %v2145
        %v2147 = vrot.slane %v2050, 1
        %v2148 = vsel %vm507, %v2143, %v2147
        %v2149 = vrot.slane %v2051, 1
        %v2150 = vsel %vm507, %v2145, %v2149
        %v2151 = vrot.slane %v2052, 1
        %v2152 = vsel %vm507, %v2147, %v2151
        %v2153 = vrot.slane %v2053, 1
        %v2154 = vsel %vm507, %v2149, %v2153
        %v2155 = vrot.slane %v2054, 1
        %v2156 = vsel %vm507, %v2151, %v2155
        %v2193 = vrot.slane %v2021, 2
        %v2194 = vrot.slane %v2023, 2
        %v2195 = vsel %vm561, %v2193, %v2194
        %v2196 = vrot.slane %v2022, 2
        %v2197 = vrot.slane %v2024, 2
        %v2198 = vsel %vm561, %v2196, %v2197
        %v2199 = vrot.slane %v2025, 2
        %v2200 = vsel %vm561, %v2194, %v2199
        %v2201 = vrot.slane %v2026, 2
        %v2202 = vsel %vm561, %v2197, %v2201
        %v2203 = vrot.slane %v2027, 2
        %v2204 = vsel %vm561, %v2199, %v2203
        %v2205 = vrot.slane %v2028, 2
        %v2206 = vsel %vm561, %v2201, %v2205
        %v2207 = vrot.slane %v2029, 2
        %v2208 = vsel %vm561, %v2203, %v2207
        %v2209 = vrot.slane %v2030, 2
        %v2210 = vsel %vm561, %v2205, %v2209
        %v2211 = vrot.slane %v2031, 2
        %v2212 = vsel %vm561, %v2207, %v2211
        %v2213 = vrot.slane %v2032, 2
        %v2214 = vsel %vm561, %v2209, %v2213
        %v2215 = vrot.slane %v2033, 2
        %v2216 = vsel %vm561, %v2211, %v2215
        %v2217 = vrot.slane %v2034, 2
        %v2218 = vsel %vm561, %v2213, %v2217
        %v2219 = vrot.slane %v2035, 2
        %v2220 = vsel %vm561, %v2215, %v2219
        %v2221 = vrot.slane %v2036, 2
        %v2222 = vsel %vm561, %v2217, %v2221
        %v2223 = vrot.slane %v2037, 2
        %v2224 = vsel %vm561, %v2219, %v2223
        %v2225 = vrot.slane %v2038, 2
        %v2226 = vsel %vm561, %v2221, %v2225
        %v2227 = vrot.slane %v2039, 2
        %v2228 = vsel %vm561, %v2223, %v2227
        %v2229 = vrot.slane %v2040, 2
        %v2230 = vsel %vm561, %v2225, %v2229
        %v2231 = vrot.slane %v2041, 2
        %v2232 = vsel %vm561, %v2227, %v2231
        %v2233 = vrot.slane %v2042, 2
        %v2234 = vsel %vm561, %v2229, %v2233
        %v2235 = vrot.slane %v2043, 2
        %v2236 = vsel %vm561, %v2231, %v2235
        %v2237 = vrot.slane %v2044, 2
        %v2238 = vsel %vm561, %v2233, %v2237
        %v2239 = vrot.slane %v2045, 2
        %v2240 = vsel %vm561, %v2235, %v2239
        %v2241 = vrot.slane %v2046, 2
        %v2242 = vsel %vm561, %v2237, %v2241
        %v2243 = vrot.slane %v2047, 2
        %v2244 = vsel %vm561, %v2239, %v2243
        %v2245 = vrot.slane %v2048, 2
        %v2246 = vsel %vm561, %v2241, %v2245
        %v2247 = vrot.slane %v2049, 2
        %v2248 = vsel %vm561, %v2243, %v2247
        %v2249 = vrot.slane %v2050, 2
        %v2250 = vsel %vm561, %v2245, %v2249
        %v2251 = vrot.slane %v2051, 2
        %v2252 = vsel %vm561, %v2247, %v2251
        %v2253 = vrot.slane %v2052, 2
        %v2254 = vsel %vm561, %v2249, %v2253
        %v2255 = vrot.slane %v2053, 2
        %v2256 = vsel %vm561, %v2251, %v2255
        %v2257 = vrot.slane %v2054, 2
        %v2258 = vsel %vm561, %v2253, %v2257
        %v2259 = vrot.slane %v2055, 2
        %v2260 = vsel %vm561, %v2255, %v2259
        %v2261 = vrot.slane %v2056, 2
        %v2262 = vsel %vm561, %v2257, %v2261
        %v2297 = vrot.slane %v2021, 3
        %v2298 = vrot.slane %v2023, 3
        %v2299 = vsel %vm616, %v2297, %v2298
        %v2300 = vrot.slane %v2022, 3
        %v2301 = vrot.slane %v2024, 3
        %v2302 = vsel %vm616, %v2300, %v2301
        %v2303 = vrot.slane %v2025, 3
        %v2304 = vsel %vm616, %v2298, %v2303
        %v2305 = vrot.slane %v2026, 3
        %v2306 = vsel %vm616, %v2301, %v2305
        %v2307 = vrot.slane %v2027, 3
        %v2308 = vsel %vm616, %v2303, %v2307
        %v2309 = vrot.slane %v2028, 3
        %v2310 = vsel %vm616, %v2305, %v2309
        %v2311 = vrot.slane %v2029, 3
        %v2312 = vsel %vm616, %v2307, %v2311
        %v2313 = vrot.slane %v2030, 3
        %v2314 = vsel %vm616, %v2309, %v2313
        %v2315 = vrot.slane %v2031, 3
        %v2316 = vsel %vm616, %v2311, %v2315
        %v2317 = vrot.slane %v2032, 3
        %v2318 = vsel %vm616, %v2313, %v2317
        %v2319 = vrot.slane %v2033, 3
        %v2320 = vsel %vm616, %v2315, %v2319
        %v2321 = vrot.slane %v2034, 3
        %v2322 = vsel %vm616, %v2317, %v2321
        %v2323 = vrot.slane %v2035, 3
        %v2324 = vsel %vm616, %v2319, %v2323
        %v2325 = vrot.slane %v2036, 3
        %v2326 = vsel %vm616, %v2321, %v2325
        %v2327 = vrot.slane %v2037, 3
        %v2328 = vsel %vm616, %v2323, %v2327
        %v2329 = vrot.slane %v2038, 3
        %v2330 = vsel %vm616, %v2325, %v2329
        %v2331 = vrot.slane %v2039, 3
        %v2332 = vsel %vm616, %v2327, %v2331
        %v2333 = vrot.slane %v2040, 3
        %v2334 = vsel %vm616, %v2329, %v2333
        %v2335 = vrot.slane %v2041, 3
        %v2336 = vsel %vm616, %v2331, %v2335
        %v2337 = vrot.slane %v2042, 3
        %v2338 = vsel %vm616, %v2333, %v2337
        %v2339 = vrot.slane %v2043, 3
        %v2340 = vsel %vm616, %v2335, %v2339
        %v2341 = vrot.slane %v2044, 3
        %v2342 = vsel %vm616, %v2337, %v2341
        %v2343 = vrot.slane %v2045, 3
        %v2344 = vsel %vm616, %v2339, %v2343
        %v2345 = vrot.slane %v2046, 3
        %v2346 = vsel %vm616, %v2341, %v2345
        %v2347 = vrot.slane %v2047, 3
        %v2348 = vsel %vm616, %v2343, %v2347
        %v2349 = vrot.slane %v2048, 3
        %v2350 = vsel %vm616, %v2345, %v2349
        %v2351 = vrot.slane %v2049, 3
        %v2352 = vsel %vm616, %v2347, %v2351
        %v2353 = vrot.slane %v2050, 3
        %v2354 = vsel %vm616, %v2349, %v2353
        %v2355 = vrot.slane %v2051, 3
        %v2356 = vsel %vm616, %v2351, %v2355
        %v2357 = vrot.slane %v2052, 3
        %v2358 = vsel %vm616, %v2353, %v2357
        %v2359 = vrot.slane %v2053, 3
        %v2360 = vsel %vm616, %v2355, %v2359
        %v2361 = vrot.slane %v2054, 3
        %v2362 = vsel %vm616, %v2357, %v2361
        %v2363 = vrot.slane %v2055, 3
        %v2364 = vsel %vm616, %v2359, %v2363
        %v2365 = vrot.slane %v2056, 3
        %v2366 = vsel %vm616, %v2361, %v2365
        %v2401 = vrot.slane %v2021, 4
        %v2402 = vrot.slane %v2023, 4
        %v2403 = vsel %vm672, %v2401, %v2402
        %v2404 = vrot.slane %v2022, 4
        %v2405 = vrot.slane %v2024, 4
        %v2406 = vsel %vm672, %v2404, %v2405
        %v2407 = vrot.slane %v2025, 4
        %v2408 = vsel %vm672, %v2402, %v2407
        %v2409 = vrot.slane %v2026, 4
        %v2410 = vsel %vm672, %v2405, %v2409
        %v2411 = vrot.slane %v2027, 4
        %v2412 = vsel %vm672, %v2407, %v2411
        %v2413 = vrot.slane %v2028, 4
        %v2414 = vsel %vm672, %v2409, %v2413
        %v2415 = vrot.slane %v2029, 4
        %v2416 = vsel %vm672, %v2411, %v2415
        %v2417 = vrot.slane %v2030, 4
        %v2418 = vsel %vm672, %v2413, %v2417
        %v2419 = vrot.slane %v2031, 4
        %v2420 = vsel %vm672, %v2415, %v2419
        %v2421 = vrot.slane %v2032, 4
        %v2422 = vsel %vm672, %v2417, %v2421
        %v2423 = vrot.slane %v2033, 4
        %v2424 = vsel %vm672, %v2419, %v2423
        %v2425 = vrot.slane %v2034, 4
        %v2426 = vsel %vm672, %v2421, %v2425
        %v2427 = vrot.slane %v2035, 4
        %v2428 = vsel %vm672, %v2423, %v2427
        %v2429 = vrot.slane %v2036, 4
        %v2430 = vsel %vm672, %v2425, %v2429
        %v2431 = vrot.slane %v2037, 4
        %v2432 = vsel %vm672, %v2427, %v2431
        %v2433 = vrot.slane %v2038, 4
        %v2434 = vsel %vm672, %v2429, %v2433
        %v2435 = vrot.slane %v2039, 4
        %v2436 = vsel %vm672, %v2431, %v2435
        %v2437 = vrot.slane %v2040, 4
        %v2438 = vsel %vm672, %v2433, %v2437
        %v2439 = vrot.slane %v2041, 4
        %v2440 = vsel %vm672, %v2435, %v2439
        %v2441 = vrot.slane %v2042, 4
        %v2442 = vsel %vm672, %v2437, %v2441
        %v2443 = vrot.slane %v2043, 4
        %v2444 = vsel %vm672, %v2439, %v2443
        %v2445 = vrot.slane %v2044, 4
        %v2446 = vsel %vm672, %v2441, %v2445
        %v2447 = vrot.slane %v2045, 4
        %v2448 = vsel %vm672, %v2443, %v2447
        %v2449 = vrot.slane %v2046, 4
        %v2450 = vsel %vm672, %v2445, %v2449
        %v2451 = vrot.slane %v2047, 4
        %v2452 = vsel %vm672, %v2447, %v2451
        %v2453 = vrot.slane %v2048, 4
        %v2454 = vsel %vm672, %v2449, %v2453
        %v2455 = vrot.slane %v2049, 4
        %v2456 = vsel %vm672, %v2451, %v2455
        %v2457 = vrot.slane %v2050, 4
        %v2458 = vsel %vm672, %v2453, %v2457
        %v2459 = vrot.slane %v2051, 4
        %v2460 = vsel %vm672, %v2455, %v2459
        %v2461 = vrot.slane %v2052, 4
        %v2462 = vsel %vm672, %v2457, %v2461
        %v2463 = vrot.slane %v2053, 4
        %v2464 = vsel %vm672, %v2459, %v2463
        %v2465 = vrot.slane %v2054, 4
        %v2466 = vsel %vm672, %v2461, %v2465
        %v2467 = vrot.slane %v2055, 4
        %v2468 = vsel %vm672, %v2463, %v2467
        %v2469 = vrot.slane %v2056, 4
        %v2470 = vsel %vm672, %v2465, %v2469
        %v2505 = vrot.slane %v2021, 5
        %v2506 = vrot.slane %v2023, 5
        %v2507 = vsel %vm728, %v2505, %v2506
        %v2508 = vrot.slane %v2022, 5
        %v2509 = vrot.slane %v2024, 5
        %v2510 = vsel %vm728, %v2508, %v2509
        %v2511 = vrot.slane %v2025, 5
        %v2512 = vsel %vm728, %v2506, %v2511
        %v2513 = vrot.slane %v2026, 5
        %v2514 = vsel %vm728, %v2509, %v2513
        %v2515 = vrot.slane %v2027, 5
        %v2516 = vsel %vm728, %v2511, %v2515
        %v2517 = vrot.slane %v2028, 5
        %v2518 = vsel %vm728, %v2513, %v2517
        %v2519 = vrot.slane %v2029, 5
        %v2520 = vsel %vm728, %v2515, %v2519
        %v2521 = vrot.slane %v2030, 5
        %v2522 = vsel %vm728, %v2517, %v2521
        %v2523 = vrot.slane %v2031, 5
        %v2524 = vsel %vm728, %v2519, %v2523
        %v2525 = vrot.slane %v2032, 5
        %v2526 = vsel %vm728, %v2521, %v2525
        %v2527 = vrot.slane %v2033, 5
        %v2528 = vsel %vm728, %v2523, %v2527
        %v2529 = vrot.slane %v2034, 5
        %v2530 = vsel %vm728, %v2525, %v2529
        %v2531 = vrot.slane %v2035, 5
        %v2532 = vsel %vm728, %v2527, %v2531
        %v2533 = vrot.slane %v2036, 5
        %v2534 = vsel %vm728, %v2529, %v2533
        %v2535 = vrot.slane %v2037, 5
        %v2536 = vsel %vm728, %v2531, %v2535
        %v2537 = vrot.slane %v2038, 5
        %v2538 = vsel %vm728, %v2533, %v2537
        %v2539 = vrot.slane %v2039, 5
        %v2540 = vsel %vm728, %v2535, %v2539
        %v2541 = vrot.slane %v2040, 5
        %v2542 = vsel %vm728, %v2537, %v2541
        %v2543 = vrot.slane %v2041, 5
        %v2544 = vsel %vm728, %v2539, %v2543
        %v2545 = vrot.slane %v2042, 5
        %v2546 = vsel %vm728, %v2541, %v2545
        %v2547 = vrot.slane %v2043, 5
        %v2548 = vsel %vm728, %v2543, %v2547
        %v2549 = vrot.slane %v2044, 5
        %v2550 = vsel %vm728, %v2545, %v2549
        %v2551 = vrot.slane %v2045, 5
        %v2552 = vsel %vm728, %v2547, %v2551
        %v2553 = vrot.slane %v2046, 5
        %v2554 = vsel %vm728, %v2549, %v2553
        %v2555 = vrot.slane %v2047, 5
        %v2556 = vsel %vm728, %v2551, %v2555
        %v2557 = vrot.slane %v2048, 5
        %v2558 = vsel %vm728, %v2553, %v2557
        %v2559 = vrot.slane %v2049, 5
        %v2560 = vsel %vm728, %v2555, %v2559
        %v2561 = vrot.slane %v2050, 5
        %v2562 = vsel %vm728, %v2557, %v2561
        %v2563 = vrot.slane %v2051, 5
        %v2564 = vsel %vm728, %v2559, %v2563
        %v2565 = vrot.slane %v2052, 5
        %v2566 = vsel %vm728, %v2561, %v2565
        %v2567 = vrot.slane %v2053, 5
        %v2568 = vsel %vm728, %v2563, %v2567
        %v2569 = vrot.slane %v2054, 5
        %v2570 = vsel %vm728, %v2565, %v2569
        %v2571 = vrot.slane %v2055, 5
        %v2572 = vsel %vm728, %v2567, %v2571
        %v2573 = vrot.slane %v2056, 5
        %v2574 = vsel %vm728, %v2569, %v2573
        %v2609 = vrot.slane %v2021, 6
        %v2610 = vrot.slane %v2023, 6
        %v2611 = vsel %vm784, %v2609, %v2610
        %v2612 = vrot.slane %v2022, 6
        %v2613 = vrot.slane %v2024, 6
        %v2614 = vsel %vm784, %v2612, %v2613
        %v2615 = vrot.slane %v2025, 6
        %v2616 = vsel %vm784, %v2610, %v2615
        %v2617 = vrot.slane %v2026, 6
        %v2618 = vsel %vm784, %v2613, %v2617
        %v2619 = vrot.slane %v2027, 6
        %v2620 = vsel %vm784, %v2615, %v2619
        %v2621 = vrot.slane %v2028, 6
        %v2622 = vsel %vm784, %v2617, %v2621
        %v2623 = vrot.slane %v2029, 6
        %v2624 = vsel %vm784, %v2619, %v2623
        %v2625 = vrot.slane %v2030, 6
        %v2626 = vsel %vm784, %v2621, %v2625
        %v2627 = vrot.slane %v2031, 6
        %v2628 = vsel %vm784, %v2623, %v2627
        %v2629 = vrot.slane %v2032, 6
        %v2630 = vsel %vm784, %v2625, %v2629
        %v2631 = vrot.slane %v2033, 6
        %v2632 = vsel %vm784, %v2627, %v2631
        %v2633 = vrot.slane %v2034, 6
        %v2634 = vsel %vm784, %v2629, %v2633
        %v2635 = vrot.slane %v2035, 6
        %v2636 = vsel %vm784, %v2631, %v2635
        %v2637 = vrot.slane %v2036, 6
        %v2638 = vsel %vm784, %v2633, %v2637
        %v2639 = vrot.slane %v2037, 6
        %v2640 = vsel %vm784, %v2635, %v2639
        %v2641 = vrot.slane %v2038, 6
        %v2642 = vsel %vm784, %v2637, %v2641
        %v2643 = vrot.slane %v2039, 6
        %v2644 = vsel %vm784, %v2639, %v2643
        %v2645 = vrot.slane %v2040, 6
        %v2646 = vsel %vm784, %v2641, %v2645
        %v2647 = vrot.slane %v2041, 6
        %v2648 = vsel %vm784, %v2643, %v2647
        %v2649 = vrot.slane %v2042, 6
        %v2650 = vsel %vm784, %v2645, %v2649
        %v2651 = vrot.slane %v2043, 6
        %v2652 = vsel %vm784, %v2647, %v2651
        %v2653 = vrot.slane %v2044, 6
        %v2654 = vsel %vm784, %v2649, %v2653
        %v2655 = vrot.slane %v2045, 6
        %v2656 = vsel %vm784, %v2651, %v2655
        %v2657 = vrot.slane %v2046, 6
        %v2658 = vsel %vm784, %v2653, %v2657
        %v2659 = vrot.slane %v2047, 6
        %v2660 = vsel %vm784, %v2655, %v2659
        %v2661 = vrot.slane %v2048, 6
        %v2662 = vsel %vm784, %v2657, %v2661
        %v2663 = vrot.slane %v2049, 6
        %v2664 = vsel %vm784, %v2659, %v2663
        %v2665 = vrot.slane %v2050, 6
        %v2666 = vsel %vm784, %v2661, %v2665
        %v2667 = vrot.slane %v2051, 6
        %v2668 = vsel %vm784, %v2663, %v2667
        %v2669 = vrot.slane %v2052, 6
        %v2670 = vsel %vm784, %v2665, %v2669
        %v2671 = vrot.slane %v2053, 6
        %v2672 = vsel %vm784, %v2667, %v2671
        %v2673 = vrot.slane %v2054, 6
        %v2674 = vsel %vm784, %v2669, %v2673
        %v2675 = vrot.slane %v2055, 6
        %v2676 = vsel %vm784, %v2671, %v2675
        %v2677 = vrot.slane %v2056, 6
        %v2678 = vsel %vm784, %v2673, %v2677
        %v2713 = vrot.slane %v2021, 7
        %v2714 = vrot.slane %v2023, 7
        %v2715 = vsel %vm840, %v2713, %v2714
        %v2716 = vrot.slane %v2022, 7
        %v2717 = vrot.slane %v2024, 7
        %v2718 = vsel %vm840, %v2716, %v2717
        %v2719 = vrot.slane %v2025, 7
        %v2720 = vsel %vm840, %v2714, %v2719
        %v2721 = vrot.slane %v2026, 7
        %v2722 = vsel %vm840, %v2717, %v2721
        %v2723 = vrot.slane %v2027, 7
        %v2724 = vsel %vm840, %v2719, %v2723
        %v2725 = vrot.slane %v2028, 7
        %v2726 = vsel %vm840, %v2721, %v2725
        %v2727 = vrot.slane %v2029, 7
        %v2728 = vsel %vm840, %v2723, %v2727
        %v2729 = vrot.slane %v2030, 7
        %v2730 = vsel %vm840, %v2725, %v2729
        %v2731 = vrot.slane %v2031, 7
        %v2732 = vsel %vm840, %v2727, %v2731
        %v2733 = vrot.slane %v2032, 7
        %v2734 = vsel %vm840, %v2729, %v2733
        %v2735 = vrot.slane %v2033, 7
        %v2736 = vsel %vm840, %v2731, %v2735
        %v2737 = vrot.slane %v2034, 7
        %v2738 = vsel %vm840, %v2733, %v2737
        %v2739 = vrot.slane %v2035, 7
        %v2740 = vsel %vm840, %v2735, %v2739
        %v2741 = vrot.slane %v2036, 7
        %v2742 = vsel %vm840, %v2737, %v2741
        %v2743 = vrot.slane %v2037, 7
        %v2744 = vsel %vm840, %v2739, %v2743
        %v2745 = vrot.slane %v2038, 7
        %v2746 = vsel %vm840, %v2741, %v2745
        %v2747 = vrot.slane %v2039, 7
        %v2748 = vsel %vm840, %v2743, %v2747
        %v2749 = vrot.slane %v2040, 7
        %v2750 = vsel %vm840, %v2745, %v2749
        %v2751 = vrot.slane %v2041, 7
        %v2752 = vsel %vm840, %v2747, %v2751
        %v2753 = vrot.slane %v2042, 7
        %v2754 = vsel %vm840, %v2749, %v2753
        %v2755 = vrot.slane %v2043, 7
        %v2756 = vsel %vm840, %v2751, %v2755
        %v2757 = vrot.slane %v2044, 7
        %v2758 = vsel %vm840, %v2753, %v2757
        %v2759 = vrot.slane %v2045, 7
        %v2760 = vsel %vm840, %v2755, %v2759
        %v2761 = vrot.slane %v2046, 7
        %v2762 = vsel %vm840, %v2757, %v2761
        %v2763 = vrot.slane %v2047, 7
        %v2764 = vsel %vm840, %v2759, %v2763
        %v2765 = vrot.slane %v2048, 7
        %v2766 = vsel %vm840, %v2761, %v2765
        %v2767 = vrot.slane %v2049, 7
        %v2768 = vsel %vm840, %v2763, %v2767
        %v2769 = vrot.slane %v2050, 7
        %v2770 = vsel %vm840, %v2765, %v2769
        %v2771 = vrot.slane %v2051, 7
        %v2772 = vsel %vm840, %v2767, %v2771
        %v2773 = vrot.slane %v2052, 7
        %v2774 = vsel %vm840, %v2769, %v2773
        %v2775 = vrot.slane %v2053, 7
        %v2776 = vsel %vm840, %v2771, %v2775
        %v2777 = vrot.slane %v2054, 7
        %v2778 = vsel %vm840, %v2773, %v2777
        %v2779 = vrot.slane %v2055, 7
        %v2780 = vsel %vm840, %v2775, %v2779
        %v2781 = vrot.slane %v2056, 7
        %v2782 = vsel %vm840, %v2777, %v2781
        %v2817 = vld [vmem:[#allocation6] sm:$0xff]
        %v2818 = vld [vmem:[#allocation6 + $0x8] sm:$0xff]
        %v2819 = vld [vmem:[#allocation6 + $0x10] sm:$0xff]
        %v2820 = vld [vmem:[#allocation6 + $0x18] sm:$0xff]
        %v2821 = vld [vmem:[#allocation6 + $0x20] sm:$0xff]
        %v2822 = vld [vmem:[#allocation6 + $0x28] sm:$0xff]
        %v2823 = vld [vmem:[#allocation6 + $0x30] sm:$0xff]
        %v2824 = vld [vmem:[#allocation6 + $0x38] sm:$0xff]
        %v2825 = vld [vmem:[#allocation6 + $0x40] sm:$0xff]
        %v2826 = vld [vmem:[#allocation6 + $0x48] sm:$0xff]
        %v2827 = vld [vmem:[#allocation6 + $0x50] sm:$0xff]
        %v2828 = vld [vmem:[#allocation6 + $0x58] sm:$0xff]
        %v2829 = vld [vmem:[#allocation6 + $0x60] sm:$0xff]
        %v2830 = vld [vmem:[#allocation6 + $0x68] sm:$0xff]
        %v2831 = vld [vmem:[#allocation6 + $0x70] sm:$0xff]
        %v2832 = vld [vmem:[#allocation6 + $0x78] sm:$0xff]
        %v2833 = vld [vmem:[#allocation6 + $0x80] sm:$0xff]
        %v2834 = vld [vmem:[#allocation6 + $0x88] sm:$0xff]
        %v2835 = vld [vmem:[#allocation6 + $0x90] sm:$0xff]
        %v2836 = vld [vmem:[#allocation6 + $0x98] sm:$0xff]
        %v2837 = vld [vmem:[#allocation6 + $0xa0] sm:$0xff]
        %v2838 = vld [vmem:[#allocation6 + $0xa8] sm:$0xff]
        %v2839 = vld [vmem:[#allocation6 + $0xb0] sm:$0xff]
        %v2840 = vld [vmem:[#allocation6 + $0xb8] sm:$0xff]
        %v2841 = vld [vmem:[#allocation6 + $0xc0] sm:$0xff]
        %v2842 = vld [vmem:[#allocation6 + $0xc8] sm:$0xff]
        %v2843 = vld [vmem:[#allocation6 + $0xd0] sm:$0xff]
        %v2844 = vld [vmem:[#allocation6 + $0xd8] sm:$0xff]
        %v2845 = vld [vmem:[#allocation6 + $0xe0] sm:$0xff]
        %v2846 = vld [vmem:[#allocation6 + $0xe8] sm:$0xff]
        %v2847 = vld [vmem:[#allocation6 + $0xf0] sm:$0xff]
        %v2848 = vld [vmem:[#allocation6 + $0xf8] sm:$0xff]
        %v2849 = vld [vmem:[#allocation6 + $0x100] sm:$0xff]
        %v2850 = vld [vmem:[#allocation6 + $0x108] sm:$0xff]
        %v2851 = vld [vmem:[#allocation6 + $0x110] sm:$0xff]
        %v2852 = vld [vmem:[#allocation6 + $0x118] sm:$0xff]
        %v2853 = vld [vmem:[#allocation6 + $0x120] sm:$0xff]
        %v2854 = vld [vmem:[#allocation6 + $0x128] sm:$0xff]
        %v2855 = vld [vmem:[#allocation6 + $0x130] sm:$0xff]
        %v2856 = vld [vmem:[#allocation6 + $0x138] sm:$0xff]
        %v2857 = vld [vmem:[#allocation6 + $0x140] sm:$0xff]
        %v2858 = vld [vmem:[#allocation6 + $0x148] sm:$0xff]
        %v2859 = vld [vmem:[#allocation6 + $0x150] sm:$0xff]
        %v2860 = vld [vmem:[#allocation6 + $0x158] sm:$0xff]
        %v2861 = vld [vmem:[#allocation6 + $0x160] sm:$0xff]
        %v2862 = vld [vmem:[#allocation6 + $0x168] sm:$0xff]
        %v2863 = vld [vmem:[#allocation6 + $0x170] sm:$0xff]
        %v2864 = vld [vmem:[#allocation6 + $0x178] sm:$0xff]
        %v2865 = vld [vmem:[#allocation6 + $0x180] sm:$0xff]
        %v2866 = vld [vmem:[#allocation6 + $0x188] sm:$0xff]
        %v2867 = vld [vmem:[#allocation6 + $0x190] sm:$0xff]
        %v2868 = vld [vmem:[#allocation6 + $0x198] sm:$0xff]
        %v2869 = vld [vmem:[#allocation6 + $0x1a0] sm:$0xff]
        %v2870 = vld [vmem:[#allocation6 + $0x1a8] sm:$0xff]
        %v2871 = vld [vmem:[#allocation6 + $0x1b0] sm:$0xff]
        %v2872 = vld [vmem:[#allocation6 + $0x1b8] sm:$0xff]
        %v2873 = vld [vmem:[#allocation6 + $0x1c0] sm:$0xff]
        %v2874 = vld [vmem:[#allocation6 + $0x1c8] sm:$0xff]
        %v2875 = vld [vmem:[#allocation6 + $0x1d0] sm:$0xff]
        %v2876 = vld [vmem:[#allocation6 + $0x1d8] sm:$0xff]
        %v2877 = vld [vmem:[#allocation6 + $0x1e0] sm:$0xff]
        %v2878 = vld [vmem:[#allocation6 + $0x1e8] sm:$0xff]
        %v2879 = vld [vmem:[#allocation6 + $0x1f0] sm:$0xff]
        %v2880 = vld [vmem:[#allocation6 + $0x1f8] sm:$0xff]
        %v2881 = vld [vmem:[#allocation6 + $0x200] sm:$0xff]
        %v2882 = vld [vmem:[#allocation6 + $0x208] sm:$0xff]
        %v2883 = vld [vmem:[#allocation6 + $0x210] sm:$0xff]
        %v2884 = vld [vmem:[#allocation6 + $0x218] sm:$0xff]
        %v2885 = vld [vmem:[#allocation6 + $0x220] sm:$0xff]
        %v2886 = vld [vmem:[#allocation6 + $0x228] sm:$0xff]
        %v2887 = vld [vmem:[#allocation6 + $0x230] sm:$0xff]
        %v2888 = vld [vmem:[#allocation6 + $0x238] sm:$0xff]
        %v2889 = vld [vmem:[#allocation6 + $0x240] sm:$0xff]
        %v2890 = vld [vmem:[#allocation6 + $0x248] sm:$0xff]
        %v2891 = vld [vmem:[#allocation6 + $0x250] sm:$0xff]
        %v2892 = vld [vmem:[#allocation6 + $0x258] sm:$0xff]
        %v2893 = vld [vmem:[#allocation6 + $0x260] sm:$0xff]
        %v2894 = vld [vmem:[#allocation6 + $0x268] sm:$0xff]
        %v2895 = vld [vmem:[#allocation6 + $0x270] sm:$0xff]
        %v2896 = vld [vmem:[#allocation6 + $0x278] sm:$0xff]
        %v2897 = vld [vmem:[#allocation6 + $0x280] sm:$0xff]
        %v2898 = vld [vmem:[#allocation6 + $0x288] sm:$0xff]
        %v2899 = vld [vmem:[#allocation6 + $0x290] sm:$0xff]
        %v2900 = vld [vmem:[#allocation6 + $0x298] sm:$0xff]
        %v2901 = vld [vmem:[#allocation6 + $0x2a0] sm:$0xff]
        %v2902 = vld [vmem:[#allocation6 + $0x2a8] sm:$0xff]
        %v2903 = vld [vmem:[#allocation6 + $0x2b0] sm:$0xff]
        %v2904 = vld [vmem:[#allocation6 + $0x2b8] sm:$0xff]
        %v2905 = vld [vmem:[#allocation6 + $0x2c0] sm:$0xff]
        %v2906 = vld [vmem:[#allocation6 + $0x2c8] sm:$0xff]
        %v2907 = vld [vmem:[#allocation6 + $0x2d0] sm:$0xff]
        %v2908 = vld [vmem:[#allocation6 + $0x2d8] sm:$0xff]
        %v2909 = vld [vmem:[#allocation6 + $0x2e0] sm:$0xff]
        %v2910 = vld [vmem:[#allocation6 + $0x2e8] sm:$0xff]
        %v2911 = vld [vmem:[#allocation6 + $0x2f0] sm:$0xff]
        %v2912 = vld [vmem:[#allocation6 + $0x2f8] sm:$0xff]
        %v2913 = vld [vmem:[#allocation6 + $0x300] sm:$0xff]
        %v2914 = vld [vmem:[#allocation6 + $0x308] sm:$0xff]
        %v2915 = vld [vmem:[#allocation6 + $0x310] sm:$0xff]
        %v2916 = vld [vmem:[#allocation6 + $0x318] sm:$0xff]
        %v2917 = vld [vmem:[#allocation6 + $0x320] sm:$0xff]
        %v2918 = vld [vmem:[#allocation6 + $0x328] sm:$0xff]
        %v2919 = vld [vmem:[#allocation6 + $0x330] sm:$0xff]
        %v2920 = vld [vmem:[#allocation6 + $0x338] sm:$0xff]
        %v2921 = vld [vmem:[#allocation6 + $0x340] sm:$0xff]
        %v2922 = vld [vmem:[#allocation6 + $0x348] sm:$0xff]
        %v2923 = vld [vmem:[#allocation6 + $0x350] sm:$0xff]
        %v2924 = vld [vmem:[#allocation6 + $0x358] sm:$0xff]
        %v2925 = vld [vmem:[#allocation6 + $0x360] sm:$0xff]
        %v2926 = vld [vmem:[#allocation6 + $0x368] sm:$0xff]
        %v2927 = vld [vmem:[#allocation6 + $0x370] sm:$0xff]
        %v2928 = vld [vmem:[#allocation6 + $0x378] sm:$0xff]
        %v2929 = vld [vmem:[#allocation6 + $0x380] sm:$0xff]
        %v2930 = vld [vmem:[#allocation6 + $0x388] sm:$0xff]
        %v2931 = vld [vmem:[#allocation6 + $0x390] sm:$0xff]
        %v2932 = vld [vmem:[#allocation6 + $0x398] sm:$0xff]
        %v2933 = vld [vmem:[#allocation6 + $0x3a0] sm:$0xff]
        %v2934 = vld [vmem:[#allocation6 + $0x3a8] sm:$0xff]
        %v2935 = vld [vmem:[#allocation6 + $0x3b0] sm:$0xff]
        %v2936 = vld [vmem:[#allocation6 + $0x3b8] sm:$0xff]
        %v2937 = vld [vmem:[#allocation6 + $0x3c0] sm:$0xff]
        %v2938 = vld [vmem:[#allocation6 + $0x3c8] sm:$0xff]
        %v2939 = vld [vmem:[#allocation6 + $0x3d0] sm:$0xff]
        %v2940 = vld [vmem:[#allocation6 + $0x3d8] sm:$0xff]
        %v2941 = vld [vmem:[#allocation6 + $0x3e0] sm:$0xff]
        %v2942 = vld [vmem:[#allocation6 + $0x3e8] sm:$0xff]
        %v2943 = vld [vmem:[#allocation6 + $0x3f0] sm:$0xff]
        %v2944 = vld [vmem:[#allocation6 + $0x3f8] sm:$0xff]
        %v2945 = vld [vmem:[#allocation6 + $0x400] sm:$0xff]
        %v2946 = vld [vmem:[#allocation6 + $0x408] sm:$0xff]
        %v2947 = vld [vmem:[#allocation6 + $0x410] sm:$0xff]
        %v2948 = vld [vmem:[#allocation6 + $0x418] sm:$0xff]
        %v2949 = vld [vmem:[#allocation6 + $0x420] sm:$0xff]
        %v2950 = vld [vmem:[#allocation6 + $0x428] sm:$0xff]
        %v2951 = vld [vmem:[#allocation6 + $0x430] sm:$0xff]
        %v2952 = vld [vmem:[#allocation6 + $0x438] sm:$0xff]
        %v2953 = vld [vmem:[#allocation6 + $0x440] sm:$0xff]
        %v2954 = vld [vmem:[#allocation6 + $0x448] sm:$0xff]
        %v2955 = vld [vmem:[#allocation6 + $0x450] sm:$0xff]
        %v2956 = vld [vmem:[#allocation6 + $0x458] sm:$0xff]
        %v2957 = vld [vmem:[#allocation6 + $0x460] sm:$0xff]
        %v2958 = vld [vmem:[#allocation6 + $0x468] sm:$0xff]
        %v2959 = vld [vmem:[#allocation6 + $0x470] sm:$0xff]
        %v2960 = vld [vmem:[#allocation6 + $0x478] sm:$0xff]
        %v2961 = vld [vmem:[#allocation6 + $0x480] sm:$0xff]
        %v2962 = vld [vmem:[#allocation6 + $0x488] sm:$0xff]
        %v2963 = vld [vmem:[#allocation6 + $0x490] sm:$0xff]
        %v2964 = vld [vmem:[#allocation6 + $0x498] sm:$0xff]
        %v2965 = vld [vmem:[#allocation6 + $0x4a0] sm:$0xff]
        %v2966 = vld [vmem:[#allocation6 + $0x4a8] sm:$0xff]
        %v2967 = vld [vmem:[#allocation6 + $0x4b0] sm:$0xff]
        %v2968 = vld [vmem:[#allocation6 + $0x4b8] sm:$0xff]
        %v2969 = vld [vmem:[#allocation6 + $0x4c0] sm:$0xff]
        %v2970 = vld [vmem:[#allocation6 + $0x4c8] sm:$0xff]
        %v2971 = vld [vmem:[#allocation6 + $0x4d0] sm:$0xff]
        %v2972 = vld [vmem:[#allocation6 + $0x4d8] sm:$0xff]
        %v2973 = vld [vmem:[#allocation6 + $0x4e0] sm:$0xff]
        %v2974 = vld [vmem:[#allocation6 + $0x4e8] sm:$0xff]
        %v2975 = vld [vmem:[#allocation6 + $0x4f0] sm:$0xff]
        %v2976 = vld [vmem:[#allocation6 + $0x4f8] sm:$0xff]
        %v2977 = vld [vmem:[#allocation6 + $0x500] sm:$0xff]
        %v2978 = vld [vmem:[#allocation6 + $0x508] sm:$0xff]
        %v2979 = vld [vmem:[#allocation6 + $0x510] sm:$0xff]
        %v2980 = vld [vmem:[#allocation6 + $0x518] sm:$0xff]
        %v2981 = vld [vmem:[#allocation6 + $0x520] sm:$0xff]
        %v2982 = vld [vmem:[#allocation6 + $0x528] sm:$0xff]
        %v2983 = vld [vmem:[#allocation6 + $0x530] sm:$0xff]
        %v2984 = vld [vmem:[#allocation6 + $0x538] sm:$0xff]
        %v2985 = vld [vmem:[#allocation6 + $0x540] sm:$0xff]
        %v2986 = vld [vmem:[#allocation6 + $0x548] sm:$0xff]
        %v2987 = vld [vmem:[#allocation6 + $0x550] sm:$0xff]
        %v2988 = vld [vmem:[#allocation6 + $0x558] sm:$0xff]
        %v2989 = vld [vmem:[#allocation6 + $0x560] sm:$0xff]
        %v2990 = vld [vmem:[#allocation6 + $0x568] sm:$0xff]
        %v2991 = vld [vmem:[#allocation6 + $0x570] sm:$0xff]
        %v2992 = vld [vmem:[#allocation6 + $0x578] sm:$0xff]
        %v2993 = vld [vmem:[#allocation6 + $0x580] sm:$0xff]
        %v2994 = vld [vmem:[#allocation6 + $0x588] sm:$0xff]
        %v2995 = vld [vmem:[#allocation6 + $0x590] sm:$0xff]
        %v2996 = vld [vmem:[#allocation6 + $0x598] sm:$0xff]
        %v2997 = vld [vmem:[#allocation6 + $0x5a0] sm:$0xff]
        %v2998 = vld [vmem:[#allocation6 + $0x5a8] sm:$0xff]
        %v2999 = vld [vmem:[#allocation6 + $0x5b0] sm:$0xff]
        %v3000 = vld [vmem:[#allocation6 + $0x5b8] sm:$0xff]
        %v3001 = vld [vmem:[#allocation6 + $0x5c0] sm:$0xff]
        %v3002 = vld [vmem:[#allocation6 + $0x5c8] sm:$0xff]
        %v3003 = vld [vmem:[#allocation6 + $0x5d0] sm:$0xff]
        %v3004 = vld [vmem:[#allocation6 + $0x5d8] sm:$0xff]
        %v3005 = vld [vmem:[#allocation6 + $0x5e0] sm:$0xff]
        %v3006 = vld [vmem:[#allocation6 + $0x5e8] sm:$0xff]
        %v3007 = vld [vmem:[#allocation6 + $0x5f0] sm:$0xff]
        %v3008 = vld [vmem:[#allocation6 + $0x5f8] sm:$0xff]
        %v3009 = vld [vmem:[#allocation6 + $0x600] sm:$0xff]
        %v3010 = vld [vmem:[#allocation6 + $0x608] sm:$0xff]
        %v3011 = vld [vmem:[#allocation6 + $0x610] sm:$0xff]
        %v3012 = vld [vmem:[#allocation6 + $0x618] sm:$0xff]
        %v3013 = vld [vmem:[#allocation6 + $0x620] sm:$0xff]
        %v3014 = vld [vmem:[#allocation6 + $0x628] sm:$0xff]
        %v3015 = vld [vmem:[#allocation6 + $0x630] sm:$0xff]
        %v3016 = vld [vmem:[#allocation6 + $0x638] sm:$0xff]
        %v3017 = vld [vmem:[#allocation6 + $0x640] sm:$0xff]
        %v3018 = vld [vmem:[#allocation6 + $0x648] sm:$0xff]
        %v3019 = vld [vmem:[#allocation6 + $0x650] sm:$0xff]
        %v3020 = vld [vmem:[#allocation6 + $0x658] sm:$0xff]
        %v3021 = vld [vmem:[#allocation6 + $0x660] sm:$0xff]
        %v3022 = vld [vmem:[#allocation6 + $0x668] sm:$0xff]
        %v3023 = vld [vmem:[#allocation6 + $0x670] sm:$0xff]
        %v3024 = vld [vmem:[#allocation6 + $0x678] sm:$0xff]
        %v3025 = vld [vmem:[#allocation6 + $0x680] sm:$0xff]
        %v3026 = vld [vmem:[#allocation6 + $0x688] sm:$0xff]
        %v3027 = vld [vmem:[#allocation6 + $0x690] sm:$0xff]
        %v3028 = vld [vmem:[#allocation6 + $0x698] sm:$0xff]
        %v3029 = vld [vmem:[#allocation6 + $0x6a0] sm:$0xff]
        %v3030 = vld [vmem:[#allocation6 + $0x6a8] sm:$0xff]
        %v3031 = vld [vmem:[#allocation6 + $0x6b0] sm:$0xff]
        %v3032 = vld [vmem:[#allocation6 + $0x6b8] sm:$0xff]
        %v3033 = vld [vmem:[#allocation6 + $0x6c0] sm:$0xff]
        %v3034 = vld [vmem:[#allocation6 + $0x6c8] sm:$0xff]
        %v3035 = vld [vmem:[#allocation6 + $0x6d0] sm:$0xff]
        %v3036 = vld [vmem:[#allocation6 + $0x6d8] sm:$0xff]
        %v3037 = vld [vmem:[#allocation6 + $0x6e0] sm:$0xff]
        %v3038 = vld [vmem:[#allocation6 + $0x6e8] sm:$0xff]
        %v3039 = vld [vmem:[#allocation6 + $0x6f0] sm:$0xff]
        %v3040 = vld [vmem:[#allocation6 + $0x6f8] sm:$0xff]
        %v3041 = vld [vmem:[#allocation6 + $0x700] sm:$0xff]
        %v3042 = vld [vmem:[#allocation6 + $0x708] sm:$0xff]
        %v3043 = vld [vmem:[#allocation6 + $0x710] sm:$0xff]
        %v3044 = vld [vmem:[#allocation6 + $0x718] sm:$0xff]
        %v3045 = vld [vmem:[#allocation6 + $0x720] sm:$0xff]
        %v3046 = vld [vmem:[#allocation6 + $0x728] sm:$0xff]
        %v3047 = vld [vmem:[#allocation6 + $0x730] sm:$0xff]
        %v3048 = vld [vmem:[#allocation6 + $0x738] sm:$0xff]
        %v3049 = vld [vmem:[#allocation6 + $0x740] sm:$0xff]
        %v3050 = vld [vmem:[#allocation6 + $0x748] sm:$0xff]
        %v3051 = vld [vmem:[#allocation6 + $0x750] sm:$0xff]
        %v3052 = vld [vmem:[#allocation6 + $0x758] sm:$0xff]
        %v3053 = vld [vmem:[#allocation6 + $0x760] sm:$0xff]
        %v3054 = vld [vmem:[#allocation6 + $0x768] sm:$0xff]
        %v3055 = vld [vmem:[#allocation6 + $0x770] sm:$0xff]
        %v3056 = vld [vmem:[#allocation6 + $0x778] sm:$0xff]
        %v3057 = vld [vmem:[#allocation6 + $0x780] sm:$0xff]
        %v3058 = vld [vmem:[#allocation6 + $0x788] sm:$0xff]
        %v3059 = vld [vmem:[#allocation6 + $0x790] sm:$0xff]
        %v3060 = vld [vmem:[#allocation6 + $0x798] sm:$0xff]
        %v3061 = vld [vmem:[#allocation6 + $0x7a0] sm:$0xff]
        %v3062 = vld [vmem:[#allocation6 + $0x7a8] sm:$0xff]
        %v3063 = vld [vmem:[#allocation6 + $0x7b0] sm:$0xff]
        %v3064 = vld [vmem:[#allocation6 + $0x7b8] sm:$0xff]
        %v3065 = vld [vmem:[#allocation6 + $0x7c0] sm:$0xff]
        %v3066 = vld [vmem:[#allocation6 + $0x7c8] sm:$0xff]
        %v3067 = vld [vmem:[#allocation6 + $0x7d0] sm:$0xff]
        %v3068 = vld [vmem:[#allocation6 + $0x7d8] sm:$0xff]
        %v3069 = vld [vmem:[#allocation6 + $0x7e0] sm:$0xff]
        %v3070 = vld [vmem:[#allocation6 + $0x7e8] sm:$0xff]
        %v3071 = vld [vmem:[#allocation6 + $0x7f0] sm:$0xff]
        %v3072 = vld [vmem:[#allocation6 + $0x7f8] sm:$0xff]
        %v3073 = vld [vmem:[%s4] sm:$0x1]
        %v3075 = vlaneseq
        %v3076 = vshrl.u32 %v3075, 7
        %v3077 = vsub.s32 0, %v3076
        %v3078 = vrot.slane %v3073, %v3077
        %3080 = vmatprep.subr.mxu0 0.0
        %3081 = vmatpush1.msra.mxu0 %v2817
        %3082 = vmatprep.subr.mxu0 0.0
        %3083 = vmatpush1.msra.mxu0 %v2818
        %3084 = vmatprep.subr.mxu0 0.0
        %3085 = vmatpush1.msra.mxu0 %v2819
        %3086 = vmatprep.subr.mxu0 0.0
        %3087 = vmatpush1.msra.mxu0 %v2820
        %3088 = vmatprep.subr.mxu0 0.0
        %3089 = vmatpush1.msra.mxu0 %v2821
        %3090 = vmatprep.subr.mxu0 0.0
        %3091 = vmatpush1.msra.mxu0 %v2822
        %3092 = vmatprep.subr.mxu0 0.0
        %3093 = vmatpush1.msra.mxu0 %v2823
        %3094 = vmatprep.subr.mxu0 0.0
        %3095 = vmatpush1.msra.mxu0 %v2824
        %3096 = vmatprep.subr.mxu0 0.0
        %3097 = vmatpush1.msra.mxu0 %v2825
        %3098 = vmatprep.subr.mxu0 0.0
        %3099 = vmatpush1.msra.mxu0 %v2826
        %3100 = vmatprep.subr.mxu0 0.0
        %3101 = vmatpush1.msra.mxu0 %v2827
        %3102 = vmatprep.subr.mxu0 0.0
        %3103 = vmatpush1.msra.mxu0 %v2828
        %3104 = vmatprep.subr.mxu0 0.0
        %3105 = vmatpush1.msra.mxu0 %v2829
        %3106 = vmatprep.subr.mxu0 0.0
        %3107 = vmatpush1.msra.mxu0 %v2830
        %3108 = vmatprep.subr.mxu0 0.0
        %3109 = vmatpush1.msra.mxu0 %v2831
        %3110 = vmatprep.subr.mxu0 0.0
        %3111 = vmatpush1.msra.mxu0 %v2832
        %3112 = vmatprep.subr.mxu0 0.0
        %3113 = vmatpush1.msra.mxu0 %v2833
        %3114 = vmatprep.subr.mxu0 0.0
        %3115 = vmatpush1.msra.mxu0 %v2834
        %3116 = vmatprep.subr.mxu0 0.0
        %3117 = vmatpush1.msra.mxu0 %v2835
        %3118 = vmatprep.subr.mxu0 0.0
        %3119 = vmatpush1.msra.mxu0 %v2836
        %3120 = vmatprep.subr.mxu0 0.0
        %3121 = vmatpush1.msra.mxu0 %v2837
        %3122 = vmatprep.subr.mxu0 0.0
        %3123 = vmatpush1.msra.mxu0 %v2838
        %3124 = vmatprep.subr.mxu0 0.0
        %3125 = vmatpush1.msra.mxu0 %v2839
        %3126 = vmatprep.subr.mxu0 0.0
        %3127 = vmatpush1.msra.mxu0 %v2840
        %3128 = vmatprep.subr.mxu0 0.0
        %3129 = vmatpush1.msra.mxu0 %v2841
        %3130 = vmatprep.subr.mxu0 0.0
        %3131 = vmatpush1.msra.mxu0 %v2842
        %3132 = vmatprep.subr.mxu0 0.0
        %3133 = vmatpush1.msra.mxu0 %v2843
        %3134 = vmatprep.subr.mxu0 0.0
        %3135 = vmatpush1.msra.mxu0 %v2844
        %3136 = vmatprep.subr.mxu0 0.0
        %3137 = vmatpush1.msra.mxu0 %v2845
        %3138 = vmatprep.subr.mxu0 0.0
        %3139 = vmatpush1.msra.mxu0 %v2846
        %3140 = vmatprep.subr.mxu0 0.0
        %3141 = vmatpush1.msra.mxu0 %v2847
        %3142 = vmatprep.subr.mxu0 0.0
        %3143 = vmatpush1.msra.mxu0 %v2848
        %3144 = vmatprep.mubr.f32.mxu0 %v2022
        %3145 = vmatmul.mubr.f32.gmra.mrb[0].mxu0 %v2021
        %v3146 = vpop.f32.mrb[0].mxu0
        %v3147 = vadd.f32 %v3078, %v3146
        %v3148 = vpop.f32.mrb[0].mxu0
        %3149 = vmatprep.mubr.f32.mxu0 %v2024
        %3150 = vmatmul.mubr.f32.gmra.mrb[0].mxu0 %v2023
        %v3151 = vpop.f32.mrb[0].mxu0
        %v3152 = vadd.f32 %v3078, %v3151
        %v3153 = vpop.f32.mrb[0].mxu0
        %3154 = vmatprep.mubr.f32.mxu0 %v2026
        %3155 = vmatmul.mubr.f32.gmra.mrb[0].mxu0 %v2025
        %v3156 = vpop.f32.mrb[0].mxu0
        %v3157 = vadd.f32 %v3078, %v3156
        %v3158 = vpop.f32.mrb[0].mxu0
        %3159 = vmatprep.mubr.f32.mxu0 %v2028
        %3160 = vmatmul.mubr.f32.gmra.mrb[0].mxu0 %v2027
        %v3161 = vpop.f32.mrb[0].mxu0
        %v3162 = vadd.f32 %v3078, %v3161
        %v3163 = vpop.f32.mrb[0].mxu0
        %3164 = vmatprep.mubr.f32.mxu0 %v2030
        %3165 = vmatmul.mubr.f32.gmra.mrb[0].mxu0 %v2029
        %v3166 = vpop.f32.mrb[0].mxu0
        %v3167 = vadd.f32 %v3078, %v3166
        %v3168 = vpop.f32.mrb[0].mxu0
        %3169 = vmatprep.mubr.f32.mxu0 %v2032
        %3170 = vmatmul.mubr.f32.gmra.mrb[0].mxu0 %v2031
        %v3171 = vpop.f32.mrb[0].mxu0
        %v3172 = vadd.f32 %v3078, %v3171
        %v3173 = vpop.f32.mrb[0].mxu0
        %3174 = vmatprep.mubr.f32.mxu0 %v2034
        %3175 = vmatmul.mubr.f32.gmra.mrb[0].mxu0 %v2033
        %v3176 = vpop.f32.mrb[0].mxu0
        %v3177 = vadd.f32 %v3078, %v3176
        %v3178 = vpop.f32.mrb[0].mxu0
        %3179 = vmatprep.mubr.f32.mxu0 %v2036
        %3180 = vmatmul.mubr.f32.gmra.mrb[0].mxu0 %v2035
        %v3181 = vpop.f32.mrb[0].mxu0
        %v3182 = vadd.f32 %v3078, %v3181
        %v3183 = vpop.f32.mrb[0].mxu0
        %3184 = vmatprep.mubr.f32.mxu0 %v2038
        %3185 = vmatmul.mubr.f32.gmra.mrb[0].mxu0 %v2037
        %v3186 = vpop.f32.mrb[0].mxu0
        %v3187 = vadd.f32 %v3078, %v3186
        %v3188 = vpop.f32.mrb[0].mxu0
        %3189 = vmatprep.mubr.f32.mxu0 %v2040
        %3190 = vmatmul.mubr.f32.gmra.mrb[0].mxu0 %v2039
        %v3191 = vpop.f32.mrb[0].mxu0
        %v3192 = vadd.f32 %v3078, %v3191
        %v3193 = vpop.f32.mrb[0].mxu0
        %3194 = vmatprep.mubr.f32.mxu0 %v2042
        %3195 = vmatmul.mubr.f32.gmra.mrb[0].mxu0 %v2041
        %v3196 = vpop.f32.mrb[0].mxu0
        %v3197 = vadd.f32 %v3078, %v3196
        %v3198 = vpop.f32.mrb[0].mxu0
        %3199 = vmatprep.mubr.f32.mxu0 %v2044
        %3200 = vmatmul.mubr.f32.gmra.mrb[0].mxu0 %v2043
        %v3201 = vpop.f32.mrb[0].mxu0
        %v3202 = vadd.f32 %v3078, %v3201
        %v3203 = vpop.f32.mrb[0].mxu0
        %3204 = vmatprep.mubr.f32.mxu0 %v2046
        %3205 = vmatmul.mubr.f32.gmra.mrb[0].mxu0 %v2045
        %v3206 = vpop.f32.mrb[0].mxu0
        %v3207 = vadd.f32 %v3078, %v3206
        %v3208 = vpop.f32.mrb[0].mxu0
        %3209 = vmatprep.mubr.f32.mxu0 %v2048
        %3210 = vmatmul.mubr.f32.gmra.mrb[0].mxu0 %v2047
        %v3211 = vpop.f32.mrb[0].mxu0
        %v3212 = vadd.f32 %v3078, %v3211
        %v3213 = vpop.f32.mrb[0].mxu0
        %3214 = vmatprep.mubr.f32.mxu0 %v2050
        %3215 = vmatmul.mubr.f32.gmra.mrb[0].mxu0 %v2049
        %v3216 = vpop.f32.mrb[0].mxu0
        %v3217 = vadd.f32 %v3078, %v3216
        %v3218 = vpop.f32.mrb[0].mxu0
        %3219 = vmatprep.mubr.f32.mxu0 %v2052
        %3220 = vmatmul.mubr.f32.gmra.mrb[0].mxu0 %v2051
        %v3221 = vpop.f32.mrb[0].mxu0
        %v3222 = vadd.f32 %v3078, %v3221
        %v3223 = vpop.f32.mrb[0].mxu0
        %3224 = vmatprep.mubr.f32.mxu0 %v2054
        %3225 = vmatmul.mubr.f32.gmra.mrb[0].mxu0 %v2053
        %v3226 = vpop.f32.mrb[0].mxu0
        %v3227 = vadd.f32 %v3078, %v3226
        %v3228 = vpop.f32.mrb[0].mxu0
        %3229 = vdwg.mxu0
        %3230 = vmatprep.subr.mxu0 0.0
        %3231 = vmatpush1.msra.mxu0 %v2849
        %3232 = vmatprep.subr.mxu0 0.0
        %3233 = vmatpush1.msra.mxu0 %v2850
        %3234 = vmatprep.subr.mxu0 0.0
        %3235 = vmatpush1.msra.mxu0 %v2851
        %3236 = vmatprep.subr.mxu0 0.0
        %3237 = vmatpush1.msra.mxu0 %v2852
        %3238 = vmatprep.subr.mxu0 0.0
        %3239 = vmatpush1.msra.mxu0 %v2853
        %3240 = vmatprep.subr.mxu0 0.0
        %3241 = vmatpush1.msra.mxu0 %v2854
        %3242 = vmatprep.subr.mxu0 0.0
        %3243 = vmatpush1.msra.mxu0 %v2855
        %3244 = vmatprep.subr.mxu0 0.0
        %3245 = vmatpush1.msra.mxu0 %v2856
        %3246 = vmatprep.subr.mxu0 0.0
        %3247 = vmatpush1.msra.mxu0 %v2857
        %3248 = vmatprep.subr.mxu0 0.0
        %3249 = vmatpush1.msra.mxu0 %v2858
        %3250 = vmatprep.subr.mxu0 0.0
        %3251 = vmatpush1.msra.mxu0 %v2859
        %3252 = vmatprep.subr.mxu0 0.0
        %3253 = vmatpush1.msra.mxu0 %v2860
        %3254 = vmatprep.subr.mxu0 0.0
        %3255 = vmatpush1.msra.mxu0 %v2861
        %3256 = vmatprep.subr.mxu0 0.0
        %3257 = vmatpush1.msra.mxu0 %v2862
        %3258 = vmatprep.subr.mxu0 0.0
        %3259 = vmatpush1.msra.mxu0 %v2863
        %3260 = vmatprep.subr.mxu0 0.0
        %3261 = vmatpush1.msra.mxu0 %v2864
        %3262 = vmatprep.subr.mxu0 0.0
        %3263 = vmatpush1.msra.mxu0 %v2865
        %3264 = vmatprep.subr.mxu0 0.0
        %3265 = vmatpush1.msra.mxu0 %v2866
        %3266 = vmatprep.subr.mxu0 0.0
        %3267 = vmatpush1.msra.mxu0 %v2867
        %3268 = vmatprep.subr.mxu0 0.0
        %3269 = vmatpush1.msra.mxu0 %v2868
        %3270 = vmatprep.subr.mxu0 0.0
        %3271 = vmatpush1.msra.mxu0 %v2869
        %3272 = vmatprep.subr.mxu0 0.0
        %3273 = vmatpush1.msra.mxu0 %v2870
        %3274 = vmatprep.subr.mxu0 0.0
        %3275 = vmatpush1.msra.mxu0 %v2871
        %3276 = vmatprep.subr.mxu0 0.0
        %3277 = vmatpush1.msra.mxu0 %v2872
        %3278 = vmatprep.subr.mxu0 0.0
        %3279 = vmatpush1.msra.mxu0 %v2873
        %3280 = vmatprep.subr.mxu0 0.0
        %3281 = vmatpush1.msra.mxu0 %v2874
        %3282 = vmatprep.subr.mxu0 0.0
        %3283 = vmatpush1.msra.mxu0 %v2875
        %3284 = vmatprep.subr.mxu0 0.0
        %3285 = vmatpush1.msra.mxu0 %v2876
        %3286 = vmatprep.subr.mxu0 0.0
        %3287 = vmatpush1.msra.mxu0 %v2877
        %3288 = vmatprep.subr.mxu0 0.0
        %3289 = vmatpush1.msra.mxu0 %v2878
        %3290 = vmatprep.subr.mxu0 0.0
        %3291 = vmatpush1.msra.mxu0 %v2879
        %3292 = vmatprep.subr.mxu0 0.0
        %3293 = vmatpush1.msra.mxu0 %v2880
        %3294 = vmatprep.mubr.f32.mxu0 %v2096
        %3295 = vmatmul.mubr.f32.gmra.mrb[0].mxu0 %v2093
        %v3296 = vpop.f32.mrb[0].mxu0
        %v3297 = vadd.f32 %v3147, %v3296
        %v3298 = vpop.f32.mrb[0].mxu0
        %3299 = vmatprep.mubr.f32.mxu0 %v2100
        %3300 = vmatmul.mubr.f32.gmra.mrb[0].mxu0 %v2098
        %v3301 = vpop.f32.mrb[0].mxu0
        %v3302 = vadd.f32 %v3152, %v3301
        %v3303 = vpop.f32.mrb[0].mxu0
        %3304 = vmatprep.mubr.f32.mxu0 %v2104
        %3305 = vmatmul.mubr.f32.gmra.mrb[0].mxu0 %v2102
        %v3306 = vpop.f32.mrb[0].mxu0
        %v3307 = vadd.f32 %v3157, %v3306
        %v3308 = vpop.f32.mrb[0].mxu0
        %3309 = vmatprep.mubr.f32.mxu0 %v2108
        %3310 = vmatmul.mubr.f32.gmra.mrb[0].mxu0 %v2106
        %v3311 = vpop.f32.mrb[0].mxu0
        %v3312 = vadd.f32 %v3162, %v3311
        %v3313 = vpop.f32.mrb[0].mxu0
        %3314 = vmatprep.mubr.f32.mxu0 %v2112
        %3315 = vmatmul.mubr.f32.gmra.mrb[0].mxu0 %v2110
        %v3316 = vpop.f32.mrb[0].mxu0
        %v3317 = vadd.f32 %v3167, %v3316
        %v3318 = vpop.f32.mrb[0].mxu0
        %3319 = vmatprep.mubr.f32.mxu0 %v2116
        %3320 = vmatmul.mubr.f32.gmra.mrb[0].mxu0 %v2114
        %v3321 = vpop.f32.mrb[0].mxu0
        %v3322 = vadd.f32 %v3172, %v3321
        %v3323 = vpop.f32.mrb[0].mxu0
        %3324 = vmatprep.mubr.f32.mxu0 %v2120
        %3325 = vmatmul.mubr.f32.gmra.mrb[0].mxu0 %v2118
        %v3326 = vpop.f32.mrb[0].mxu0
        %v3327 = vadd.f32 %v3177, %v3326
        %v3328 = vpop.f32.mrb[0].mxu0
        %3329 = vmatprep.mubr.f32.mxu0 %v2124
        %3330 = vmatmul.mubr.f32.gmra.mrb[0].mxu0 %v2122
        %v3331 = vpop.f32.mrb[0].mxu0
        %v3332 = vadd.f32 %v3182, %v3331
        %v3333 = vpop.f32.mrb[0].mxu0
        %3334 = vmatprep.mubr.f32.mxu0 %v2128
        %3335 = vmatmul.mubr.f32.gmra.mrb[0].mxu0 %v2126
        %v3336 = vpop.f32.mrb[0].mxu0
        %v3337 = vadd.f32 %v3187, %v3336
        %v3338 = vpop.f32.mrb[0].mxu0
        %3339 = vmatprep.mubr.f32.mxu0 %v2132
        %3340 = vmatmul.mubr.f32.gmra.mrb[0].mxu0 %v2130
        %v3341 = vpop.f32.mrb[0].mxu0
        %v3342 = vadd.f32 %v3192, %v3341
        %v3343 = vpop.f32.mrb[0].mxu0
        %3344 = vmatprep.mubr.f32.mxu0 %v2136
        %3345 = vmatmul.mubr.f32.gmra.mrb[0].mxu0 %v2134
        %v3346 = vpop.f32.mrb[0].mxu0
        %v3347 = vadd.f32 %v3197, %v3346
        %v3348 = vpop.f32.mrb[0].mxu0
        %3349 = vmatprep.mubr.f32.mxu0 %v2140
        %3350 = vmatmul.mubr.f32.gmra.mrb[0].mxu0 %v2138
        %v3351 = vpop.f32.mrb[0].mxu0
        %v3352 = vadd.f32 %v3202, %v3351
        %v3353 = vpop.f32.mrb[0].mxu0
        %3354 = vmatprep.mubr.f32.mxu0 %v2144
        %3355 = vmatmul.mubr.f32.gmra.mrb[0].mxu0 %v2142
        %v3356 = vpop.f32.mrb[0].mxu0
        %v3357 = vadd.f32 %v3207, %v3356
        %v3358 = vpop.f32.mrb[0].mxu0
        %3359 = vmatprep.mubr.f32.mxu0 %v2148
        %3360 = vmatmul.mubr.f32.gmra.mrb[0].mxu0 %v2146
        %v3361 = vpop.f32.mrb[0].mxu0
        %v3362 = vadd.f32 %v3212, %v3361
        %v3363 = vpop.f32.mrb[0].mxu0
        %3364 = vmatprep.mubr.f32.mxu0 %v2152
        %3365 = vmatmul.mubr.f32.gmra.mrb[0].mxu0 %v2150
        %v3366 = vpop.f32.mrb[0].mxu0
        %v3367 = vadd.f32 %v3217, %v3366
        %v3368 = vpop.f32.mrb[0].mxu0
        %3369 = vmatprep.mubr.f32.mxu0 %v2156
        %3370 = vmatmul.mubr.f32.gmra.mrb[0].mxu0 %v2154
        %v3371 = vpop.f32.mrb[0].mxu0
        %v3372 = vadd.f32 %v3222, %v3371
        %v3373 = vpop.f32.mrb[0].mxu0
        %3374 = vmatprep.mubr.f32.mxu0 %v2155
        %3375 = vmatmul.mubr.f32.gmra.mrb[0].mxu0 %v2153
        %v3376 = vpop.f32.mrb[0].mxu0
        %v3377 = vadd.f32 %v3227, %v3376
        %v3378 = vpop.f32.mrb[0].mxu0
        %3379 = vdwg.mxu0
        %3380 = vmatprep.subr.mxu0 0.0
        %3381 = vmatpush1.msra.mxu0 %v2881
        %3382 = vmatprep.subr.mxu0 0.0
        %3383 = vmatpush1.msra.mxu0 %v2882
        %3384 = vmatprep.subr.mxu0 0.0
        %3385 = vmatpush1.msra.mxu0 %v2883
        %3386 = vmatprep.subr.mxu0 0.0
        %3387 = vmatpush1.msra.mxu0 %v2884
        %3388 = vmatprep.subr.mxu0 0.0
        %3389 = vmatpush1.msra.mxu0 %v2885
        %3390 = vmatprep.subr.mxu0 0.0
        %3391 = vmatpush1.msra.mxu0 %v2886
        %3392 = vmatprep.subr.mxu0 0.0
        %3393 = vmatpush1.msra.mxu0 %v2887
        %3394 = vmatprep.subr.mxu0 0.0
        %3395 = vmatpush1.msra.mxu0 %v2888
        %3396 = vmatprep.subr.mxu0 0.0
        %3397 = vmatpush1.msra.mxu0 %v2889
        %3398 = vmatprep.subr.mxu0 0.0
        %3399 = vmatpush1.msra.mxu0 %v2890
        %3400 = vmatprep.subr.mxu0 0.0
        %3401 = vmatpush1.msra.mxu0 %v2891
        %3402 = vmatprep.subr.mxu0 0.0
        %3403 = vmatpush1.msra.mxu0 %v2892
        %3404 = vmatprep.subr.mxu0 0.0
        %3405 = vmatpush1.msra.mxu0 %v2893
        %3406 = vmatprep.subr.mxu0 0.0
        %3407 = vmatpush1.msra.mxu0 %v2894
        %3408 = vmatprep.subr.mxu0 0.0
        %3409 = vmatpush1.msra.mxu0 %v2895
        %3410 = vmatprep.subr.mxu0 0.0
        %3411 = vmatpush1.msra.mxu0 %v2896
        %3412 = vmatprep.subr.mxu0 0.0
        %3413 = vmatpush1.msra.mxu0 %v2897
        %3414 = vmatprep.subr.mxu0 0.0
        %3415 = vmatpush1.msra.mxu0 %v2898
        %3416 = vmatprep.subr.mxu0 0.0
        %3417 = vmatpush1.msra.mxu0 %v2899
        %3418 = vmatprep.subr.mxu0 0.0
        %3419 = vmatpush1.msra.mxu0 %v2900
        %3420 = vmatprep.subr.mxu0 0.0
        %3421 = vmatpush1.msra.mxu0 %v2901
        %3422 = vmatprep.subr.mxu0 0.0
        %3423 = vmatpush1.msra.mxu0 %v2902
        %3424 = vmatprep.subr.mxu0 0.0
        %3425 = vmatpush1.msra.mxu0 %v2903
        %3426 = vmatprep.subr.mxu0 0.0
        %3427 = vmatpush1.msra.mxu0 %v2904
        %3428 = vmatprep.subr.mxu0 0.0
        %3429 = vmatpush1.msra.mxu0 %v2905
        %3430 = vmatprep.subr.mxu0 0.0
        %3431 = vmatpush1.msra.mxu0 %v2906
        %3432 = vmatprep.subr.mxu0 0.0
        %3433 = vmatpush1.msra.mxu0 %v2907
        %3434 = vmatprep.subr.mxu0 0.0
        %3435 = vmatpush1.msra.mxu0 %v2908
        %3436 = vmatprep.subr.mxu0 0.0
        %3437 = vmatpush1.msra.mxu0 %v2909
        %3438 = vmatprep.subr.mxu0 0.0
        %3439 = vmatpush1.msra.mxu0 %v2910
        %3440 = vmatprep.subr.mxu0 0.0
        %3441 = vmatpush1.msra.mxu0 %v2911
        %3442 = vmatprep.subr.mxu0 0.0
        %3443 = vmatpush1.msra.mxu0 %v2912
        %3444 = vmatprep.mubr.f32.mxu0 %v2198
        %3445 = vmatmul.mubr.f32.gmra.mrb[0].mxu0 %v2195
        %v3446 = vpop.f32.mrb[0].mxu0
        %v3447 = vadd.f32 %v3297, %v3446
        %v3448 = vpop.f32.mrb[0].mxu0
        %3449 = vmatprep.mubr.f32.mxu0 %v2202
        %3450 = vmatmul.mubr.f32.gmra.mrb[0].mxu0 %v2200
        %v3451 = vpop.f32.mrb[0].mxu0
        %v3452 = vadd.f32 %v3302, %v3451
        %v3453 = vpop.f32.mrb[0].mxu0
        %3454 = vmatprep.mubr.f32.mxu0 %v2206
        %3455 = vmatmul.mubr.f32.gmra.mrb[0].mxu0 %v2204
        %v3456 = vpop.f32.mrb[0].mxu0
        %v3457 = vadd.f32 %v3307, %v3456
        %v3458 = vpop.f32.mrb[0].mxu0
        %3459 = vmatprep.mubr.f32.mxu0 %v2210
        %3460 = vmatmul.mubr.f32.gmra.mrb[0].mxu0 %v2208
        %v3461 = vpop.f32.mrb[0].mxu0
        %v3462 = vadd.f32 %v3312, %v3461
        %v3463 = vpop.f32.mrb[0].mxu0
        %3464 = vmatprep.mubr.f32.mxu0 %v2214
        %3465 = vmatmul.mubr.f32.gmra.mrb[0].mxu0 %v2212
        %v3466 = vpop.f32.mrb[0].mxu0
        %v3467 = vadd.f32 %v3317, %v3466
        %v3468 = vpop.f32.mrb[0].mxu0
        %3469 = vmatprep.mubr.f32.mxu0 %v2218
        %3470 = vmatmul.mubr.f32.gmra.mrb[0].mxu0 %v2216
        %v3471 = vpop.f32.mrb[0].mxu0
        %v3472 = vadd.f32 %v3322, %v3471
        %v3473 = vpop.f32.mrb[0].mxu0
        %3474 = vmatprep.mubr.f32.mxu0 %v2222
        %3475 = vmatmul.mubr.f32.gmra.mrb[0].mxu0 %v2220
        %v3476 = vpop.f32.mrb[0].mxu0
        %v3477 = vadd.f32 %v3327, %v3476
        %v3478 = vpop.f32.mrb[0].mxu0
        %3479 = vmatprep.mubr.f32.mxu0 %v2226
        %3480 = vmatmul.mubr.f32.gmra.mrb[0].mxu0 %v2224
        %v3481 = vpop.f32.mrb[0].mxu0
        %v3482 = vadd.f32 %v3332, %v3481
        %v3483 = vpop.f32.mrb[0].mxu0
        %3484 = vmatprep.mubr.f32.mxu0 %v2230
        %3485 = vmatmul.mubr.f32.gmra.mrb[0].mxu0 %v2228
        %v3486 = vpop.f32.mrb[0].mxu0
        %v3487 = vadd.f32 %v3337, %v3486
        %v3488 = vpop.f32.mrb[0].mxu0
        %3489 = vmatprep.mubr.f32.mxu0 %v2234
        %3490 = vmatmul.mubr.f32.gmra.mrb[0].mxu0 %v2232
        %v3491 = vpop.f32.mrb[0].mxu0
        %v3492 = vadd.f32 %v3342, %v3491
        %v3493 = vpop.f32.mrb[0].mxu0
        %3494 = vmatprep.mubr.f32.mxu0 %v2238
        %3495 = vmatmul.mubr.f32.gmra.mrb[0].mxu0 %v2236
        %v3496 = vpop.f32.mrb[0].mxu0
        %v3497 = vadd.f32 %v3347, %v3496
        %v3498 = vpop.f32.mrb[0].mxu0
        %3499 = vmatprep.mubr.f32.mxu0 %v2242
        %3500 = vmatmul.mubr.f32.gmra.mrb[0].mxu0 %v2240
        %v3501 = vpop.f32.mrb[0].mxu0
        %v3502 = vadd.f32 %v3352, %v3501
        %v3503 = vpop.f32.mrb[0].mxu0
        %3504 = vmatprep.mubr.f32.mxu0 %v2246
        %3505 = vmatmul.mubr.f32.gmra.mrb[0].mxu0 %v2244
        %v3506 = vpop.f32.mrb[0].mxu0
        %v3507 = vadd.f32 %v3357, %v3506
        %v3508 = vpop.f32.mrb[0].mxu0
        %3509 = vmatprep.mubr.f32.mxu0 %v2250
        %3510 = vmatmul.mubr.f32.gmra.mrb[0].mxu0 %v2248
        %v3511 = vpop.f32.mrb[0].mxu0
        %v3512 = vadd.f32 %v3362, %v3511
        %v3513 = vpop.f32.mrb[0].mxu0
        %3514 = vmatprep.mubr.f32.mxu0 %v2254
        %3515 = vmatmul.mubr.f32.gmra.mrb[0].mxu0 %v2252
        %v3516 = vpop.f32.mrb[0].mxu0
        %v3517 = vadd.f32 %v3367, %v3516
        %v3518 = vpop.f32.mrb[0].mxu0
        %3519 = vmatprep.mubr.f32.mxu0 %v2258
        %3520 = vmatmul.mubr.f32.gmra.mrb[0].mxu0 %v2256
        %v3521 = vpop.f32.mrb[0].mxu0
        %v3522 = vadd.f32 %v3372, %v3521
        %v3523 = vpop.f32.mrb[0].mxu0
        %3524 = vmatprep.mubr.f32.mxu0 %v2262
        %3525 = vmatmul.mubr.f32.gmra.mrb[0].mxu0 %v2260
        %v3526 = vpop.f32.mrb[0].mxu0
        %v3527 = vadd.f32 %v3377, %v3526
        %v3528 = vpop.f32.mrb[0].mxu0
        %3529 = vdwg.mxu0
        %3530 = vmatprep.subr.mxu0 0.0
        %3531 = vmatpush1.msra.mxu0 %v2913
        %3532 = vmatprep.subr.mxu0 0.0
        %3533 = vmatpush1.msra.mxu0 %v2914
        %3534 = vmatprep.subr.mxu0 0.0
        %3535 = vmatpush1.msra.mxu0 %v2915
        %3536 = vmatprep.subr.mxu0 0.0
        %3537 = vmatpush1.msra.mxu0 %v2916
        %3538 = vmatprep.subr.mxu0 0.0
        %3539 = vmatpush1.msra.mxu0 %v2917
        %3540 = vmatprep.subr.mxu0 0.0
        %3541 = vmatpush1.msra.mxu0 %v2918
        %3542 = vmatprep.subr.mxu0 0.0
        %3543 = vmatpush1.msra.mxu0 %v2919
        %3544 = vmatprep.subr.mxu0 0.0
        %3545 = vmatpush1.msra.mxu0 %v2920
        %3546 = vmatprep.subr.mxu0 0.0
        %3547 = vmatpush1.msra.mxu0 %v2921
        %3548 = vmatprep.subr.mxu0 0.0
        %3549 = vmatpush1.msra.mxu0 %v2922
        %3550 = vmatprep.subr.mxu0 0.0
        %3551 = vmatpush1.msra.mxu0 %v2923
        %3552 = vmatprep.subr.mxu0 0.0
        %3553 = vmatpush1.msra.mxu0 %v2924
        %3554 = vmatprep.subr.mxu0 0.0
        %3555 = vmatpush1.msra.mxu0 %v2925
        %3556 = vmatprep.subr.mxu0 0.0
        %3557 = vmatpush1.msra.mxu0 %v2926
        %3558 = vmatprep.subr.mxu0 0.0
        %3559 = vmatpush1.msra.mxu0 %v2927
        %3560 = vmatprep.subr.mxu0 0.0
        %3561 = vmatpush1.msra.mxu0 %v2928
        %3562 = vmatprep.subr.mxu0 0.0
        %3563 = vmatpush1.msra.mxu0 %v2929
        %3564 = vmatprep.subr.mxu0 0.0
        %3565 = vmatpush1.msra.mxu0 %v2930
        %3566 = vmatprep.subr.mxu0 0.0
        %3567 = vmatpush1.msra.mxu0 %v2931
        %3568 = vmatprep.subr.mxu0 0.0
        %3569 = vmatpush1.msra.mxu0 %v2932
        %3570 = vmatprep.subr.mxu0 0.0
        %3571 = vmatpush1.msra.mxu0 %v2933
        %3572 = vmatprep.subr.mxu0 0.0
        %3573 = vmatpush1.msra.mxu0 %v2934
        %3574 = vmatprep.subr.mxu0 0.0
        %3575 = vmatpush1.msra.mxu0 %v2935
        %3576 = vmatprep.subr.mxu0 0.0
        %3577 = vmatpush1.msra.mxu0 %v2936
        %3578 = vmatprep.subr.mxu0 0.0
        %3579 = vmatpush1.msra.mxu0 %v2937
        %3580 = vmatprep.subr.mxu0 0.0
        %3581 = vmatpush1.msra.mxu0 %v2938
        %3582 = vmatprep.subr.mxu0 0.0
        %3583 = vmatpush1.msra.mxu0 %v2939
        %3584 = vmatprep.subr.mxu0 0.0
        %3585 = vmatpush1.msra.mxu0 %v2940
        %3586 = vmatprep.subr.mxu0 0.0
        %3587 = vmatpush1.msra.mxu0 %v2941
        %3588 = vmatprep.subr.mxu0 0.0
        %3589 = vmatpush1.msra.mxu0 %v2942
        %3590 = vmatprep.subr.mxu0 0.0
        %3591 = vmatpush1.msra.mxu0 %v2943
        %3592 = vmatprep.subr.mxu0 0.0
        %3593 = vmatpush1.msra.mxu0 %v2944
        %3594 = vmatprep.mubr.f32.mxu0 %v2302
        %3595 = vmatmul.mubr.f32.gmra.mrb[0].mxu0 %v2299
        %v3596 = vpop.f32.mrb[0].mxu0
        %v3597 = vadd.f32 %v3447, %v3596
        %v3598 = vpop.f32.mrb[0].mxu0
        %3599 = vmatprep.mubr.f32.mxu0 %v2306
        %3600 = vmatmul.mubr.f32.gmra.mrb[0].mxu0 %v2304
        %v3601 = vpop.f32.mrb[0].mxu0
        %v3602 = vadd.f32 %v3452, %v3601
        %v3603 = vpop.f32.mrb[0].mxu0
        %3604 = vmatprep.mubr.f32.mxu0 %v2310
        %3605 = vmatmul.mubr.f32.gmra.mrb[0].mxu0 %v2308
        %v3606 = vpop.f32.mrb[0].mxu0
        %v3607 = vadd.f32 %v3457, %v3606
        %v3608 = vpop.f32.mrb[0].mxu0
        %3609 = vmatprep.mubr.f32.mxu0 %v2314
        %3610 = vmatmul.mubr.f32.gmra.mrb[0].mxu0 %v2312
        %v3611 = vpop.f32.mrb[0].mxu0
        %v3612 = vadd.f32 %v3462, %v3611
        %v3613 = vpop.f32.mrb[0].mxu0
        %3614 = vmatprep.mubr.f32.mxu0 %v2318
        %3615 = vmatmul.mubr.f32.gmra.mrb[0].mxu0 %v2316
        %v3616 = vpop.f32.mrb[0].mxu0
        %v3617 = vadd.f32 %v3467, %v3616
        %v3618 = vpop.f32.mrb[0].mxu0
        %3619 = vmatprep.mubr.f32.mxu0 %v2322
        %3620 = vmatmul.mubr.f32.gmra.mrb[0].mxu0 %v2320
        %v3621 = vpop.f32.mrb[0].mxu0
        %v3622 = vadd.f32 %v3472, %v3621
        %v3623 = vpop.f32.mrb[0].mxu0
        %3624 = vmatprep.mubr.f32.mxu0 %v2326
        %3625 = vmatmul.mubr.f32.gmra.mrb[0].mxu0 %v2324
        %v3626 = vpop.f32.mrb[0].mxu0
        %v3627 = vadd.f32 %v3477, %v3626
        %v3628 = vpop.f32.mrb[0].mxu0
        %3629 = vmatprep.mubr.f32.mxu0 %v2330
        %3630 = vmatmul.mubr.f32.gmra.mrb[0].mxu0 %v2328
        %v3631 = vpop.f32.mrb[0].mxu0
        %v3632 = vadd.f32 %v3482, %v3631
        %v3633 = vpop.f32.mrb[0].mxu0
        %3634 = vmatprep.mubr.f32.mxu0 %v2334
        %3635 = vmatmul.mubr.f32.gmra.mrb[0].mxu0 %v2332
        %v3636 = vpop.f32.mrb[0].mxu0
        %v3637 = vadd.f32 %v3487, %v3636
        %v3638 = vpop.f32.mrb[0].mxu0
        %3639 = vmatprep.mubr.f32.mxu0 %v2338
        %3640 = vmatmul.mubr.f32.gmra.mrb[0].mxu0 %v2336
        %v3641 = vpop.f32.mrb[0].mxu0
        %v3642 = vadd.f32 %v3492, %v3641
        %v3643 = vpop.f32.mrb[0].mxu0
        %3644 = vmatprep.mubr.f32.mxu0 %v2342
        %3645 = vmatmul.mubr.f32.gmra.mrb[0].mxu0 %v2340
        %v3646 = vpop.f32.mrb[0].mxu0
        %v3647 = vadd.f32 %v3497, %v3646
        %v3648 = vpop.f32.mrb[0].mxu0
        %3649 = vmatprep.mubr.f32.mxu0 %v2346
        %3650 = vmatmul.mubr.f32.gmra.mrb[0].mxu0 %v2344
        %v3651 = vpop.f32.mrb[0].mxu0
        %v3652 = vadd.f32 %v3502, %v3651
        %v3653 = vpop.f32.mrb[0].mxu0
        %3654 = vmatprep.mubr.f32.mxu0 %v2350
        %3655 = vmatmul.mubr.f32.gmra.mrb[0].mxu0 %v2348
        %v3656 = vpop.f32.mrb[0].mxu0
        %v3657 = vadd.f32 %v3507, %v3656
        %v3658 = vpop.f32.mrb[0].mxu0
        %3659 = vmatprep.mubr.f32.mxu0 %v2354
        %3660 = vmatmul.mubr.f32.gmra.mrb[0].mxu0 %v2352
        %v3661 = vpop.f32.mrb[0].mxu0
        %v3662 = vadd.f32 %v3512, %v3661
        %v3663 = vpop.f32.mrb[0].mxu0
        %3664 = vmatprep.mubr.f32.mxu0 %v2358
        %3665 = vmatmul.mubr.f32.gmra.mrb[0].mxu0 %v2356
        %v3666 = vpop.f32.mrb[0].mxu0
        %v3667 = vadd.f32 %v3517, %v3666
        %v3668 = vpop.f32.mrb[0].mxu0
        %3669 = vmatprep.mubr.f32.mxu0 %v2362
        %3670 = vmatmul.mubr.f32.gmra.mrb[0].mxu0 %v2360
        %v3671 = vpop.f32.mrb[0].mxu0
        %v3672 = vadd.f32 %v3522, %v3671
        %v3673 = vpop.f32.mrb[0].mxu0
        %3674 = vmatprep.mubr.f32.mxu0 %v2366
        %3675 = vmatmul.mubr.f32.gmra.mrb[0].mxu0 %v2364
        %v3676 = vpop.f32.mrb[0].mxu0
        %v3677 = vadd.f32 %v3527, %v3676
        %v3678 = vpop.f32.mrb[0].mxu0
        %3679 = vdwg.mxu0
        %3680 = vmatprep.subr.mxu0 0.0
        %3681 = vmatpush1.msra.mxu0 %v2945
        %3682 = vmatprep.subr.mxu0 0.0
        %3683 = vmatpush1.msra.mxu0 %v2946
        %3684 = vmatprep.subr.mxu0 0.0
        %3685 = vmatpush1.msra.mxu0 %v2947
        %3686 = vmatprep.subr.mxu0 0.0
        %3687 = vmatpush1.msra.mxu0 %v2948
        %3688 = vmatprep.subr.mxu0 0.0
        %3689 = vmatpush1.msra.mxu0 %v2949
        %3690 = vmatprep.subr.mxu0 0.0
        %3691 = vmatpush1.msra.mxu0 %v2950
        %3692 = vmatprep.subr.mxu0 0.0
        %3693 = vmatpush1.msra.mxu0 %v2951
        %3694 = vmatprep.subr.mxu0 0.0
        %3695 = vmatpush1.msra.mxu0 %v2952
        %3696 = vmatprep.subr.mxu0 0.0
        %3697 = vmatpush1.msra.mxu0 %v2953
        %3698 = vmatprep.subr.mxu0 0.0
        %3699 = vmatpush1.msra.mxu0 %v2954
        %3700 = vmatprep.subr.mxu0 0.0
        %3701 = vmatpush1.msra.mxu0 %v2955
        %3702 = vmatprep.subr.mxu0 0.0
        %3703 = vmatpush1.msra.mxu0 %v2956
        %3704 = vmatprep.subr.mxu0 0.0
        %3705 = vmatpush1.msra.mxu0 %v2957
        %3706 = vmatprep.subr.mxu0 0.0
        %3707 = vmatpush1.msra.mxu0 %v2958
        %3708 = vmatprep.subr.mxu0 0.0
        %3709 = vmatpush1.msra.mxu0 %v2959
        %3710 = vmatprep.subr.mxu0 0.0
        %3711 = vmatpush1.msra.mxu0 %v2960
        %3712 = vmatprep.subr.mxu0 0.0
        %3713 = vmatpush1.msra.mxu0 %v2961
        %3714 = vmatprep.subr.mxu0 0.0
        %3715 = vmatpush1.msra.mxu0 %v2962
        %3716 = vmatprep.subr.mxu0 0.0
        %3717 = vmatpush1.msra.mxu0 %v2963
        %3718 = vmatprep.subr.mxu0 0.0
        %3719 = vmatpush1.msra.mxu0 %v2964
        %3720 = vmatprep.subr.mxu0 0.0
        %3721 = vmatpush1.msra.mxu0 %v2965
        %3722 = vmatprep.subr.mxu0 0.0
        %3723 = vmatpush1.msra.mxu0 %v2966
        %3724 = vmatprep.subr.mxu0 0.0
        %3725 = vmatpush1.msra.mxu0 %v2967
        %3726 = vmatprep.subr.mxu0 0.0
        %3727 = vmatpush1.msra.mxu0 %v2968
        %3728 = vmatprep.subr.mxu0 0.0
        %3729 = vmatpush1.msra.mxu0 %v2969
        %3730 = vmatprep.subr.mxu0 0.0
        %3731 = vmatpush1.msra.mxu0 %v2970
        %3732 = vmatprep.subr.mxu0 0.0
        %3733 = vmatpush1.msra.mxu0 %v2971
        %3734 = vmatprep.subr.mxu0 0.0
        %3735 = vmatpush1.msra.mxu0 %v2972
        %3736 = vmatprep.subr.mxu0 0.0
        %3737 = vmatpush1.msra.mxu0 %v2973
        %3738 = vmatprep.subr.mxu0 0.0
        %3739 = vmatpush1.msra.mxu0 %v2974
        %3740 = vmatprep.subr.mxu0 0.0
        %3741 = vmatpush1.msra.mxu0 %v2975
        %3742 = vmatprep.subr.mxu0 0.0
        %3743 = vmatpush1.msra.mxu0 %v2976
        %3744 = vmatprep.mubr.f32.mxu0 %v2406
        %3745 = vmatmul.mubr.f32.gmra.mrb[0].mxu0 %v2403
        %v3746 = vpop.f32.mrb[0].mxu0
        %v3747 = vadd.f32 %v3597, %v3746
        %v3748 = vpop.f32.mrb[0].mxu0
        %3749 = vmatprep.mubr.f32.mxu0 %v2410
        %3750 = vmatmul.mubr.f32.gmra.mrb[0].mxu0 %v2408
        %v3751 = vpop.f32.mrb[0].mxu0
        %v3752 = vadd.f32 %v3602, %v3751
        %v3753 = vpop.f32.mrb[0].mxu0
        %3754 = vmatprep.mubr.f32.mxu0 %v2414
        %3755 = vmatmul.mubr.f32.gmra.mrb[0].mxu0 %v2412
        %v3756 = vpop.f32.mrb[0].mxu0
        %v3757 = vadd.f32 %v3607, %v3756
        %v3758 = vpop.f32.mrb[0].mxu0
        %3759 = vmatprep.mubr.f32.mxu0 %v2418
        %3760 = vmatmul.mubr.f32.gmra.mrb[0].mxu0 %v2416
        %v3761 = vpop.f32.mrb[0].mxu0
        %v3762 = vadd.f32 %v3612, %v3761
        %v3763 = vpop.f32.mrb[0].mxu0
        %3764 = vmatprep.mubr.f32.mxu0 %v2422
        %3765 = vmatmul.mubr.f32.gmra.mrb[0].mxu0 %v2420
        %v3766 = vpop.f32.mrb[0].mxu0
        %v3767 = vadd.f32 %v3617, %v3766
        %v3768 = vpop.f32.mrb[0].mxu0
        %3769 = vmatprep.mubr.f32.mxu0 %v2426
        %3770 = vmatmul.mubr.f32.gmra.mrb[0].mxu0 %v2424
        %v3771 = vpop.f32.mrb[0].mxu0
        %v3772 = vadd.f32 %v3622, %v3771
        %v3773 = vpop.f32.mrb[0].mxu0
        %3774 = vmatprep.mubr.f32.mxu0 %v2430
        %3775 = vmatmul.mubr.f32.gmra.mrb[0].mxu0 %v2428
        %v3776 = vpop.f32.mrb[0].mxu0
        %v3777 = vadd.f32 %v3627, %v3776
        %v3778 = vpop.f32.mrb[0].mxu0
        %3779 = vmatprep.mubr.f32.mxu0 %v2434
        %3780 = vmatmul.mubr.f32.gmra.mrb[0].mxu0 %v2432
        %v3781 = vpop.f32.mrb[0].mxu0
        %v3782 = vadd.f32 %v3632, %v3781
        %v3783 = vpop.f32.mrb[0].mxu0
        %3784 = vmatprep.mubr.f32.mxu0 %v2438
        %3785 = vmatmul.mubr.f32.gmra.mrb[0].mxu0 %v2436
        %v3786 = vpop.f32.mrb[0].mxu0
        %v3787 = vadd.f32 %v3637, %v3786
        %v3788 = vpop.f32.mrb[0].mxu0
        %3789 = vmatprep.mubr.f32.mxu0 %v2442
        %3790 = vmatmul.mubr.f32.gmra.mrb[0].mxu0 %v2440
        %v3791 = vpop.f32.mrb[0].mxu0
        %v3792 = vadd.f32 %v3642, %v3791
        %v3793 = vpop.f32.mrb[0].mxu0
        %3794 = vmatprep.mubr.f32.mxu0 %v2446
        %3795 = vmatmul.mubr.f32.gmra.mrb[0].mxu0 %v2444
        %v3796 = vpop.f32.mrb[0].mxu0
        %v3797 = vadd.f32 %v3647, %v3796
        %v3798 = vpop.f32.mrb[0].mxu0
        %3799 = vmatprep.mubr.f32.mxu0 %v2450
        %3800 = vmatmul.mubr.f32.gmra.mrb[0].mxu0 %v2448
        %v3801 = vpop.f32.mrb[0].mxu0
        %v3802 = vadd.f32 %v3652, %v3801
        %v3803 = vpop.f32.mrb[0].mxu0
        %3804 = vmatprep.mubr.f32.mxu0 %v2454
        %3805 = vmatmul.mubr.f32.gmra.mrb[0].mxu0 %v2452
        %v3806 = vpop.f32.mrb[0].mxu0
        %v3807 = vadd.f32 %v3657, %v3806
        %v3808 = vpop.f32.mrb[0].mxu0
        %3809 = vmatprep.mubr.f32.mxu0 %v2458
        %3810 = vmatmul.mubr.f32.gmra.mrb[0].mxu0 %v2456
        %v3811 = vpop.f32.mrb[0].mxu0
        %v3812 = vadd.f32 %v3662, %v3811
        %v3813 = vpop.f32.mrb[0].mxu0
        %3814 = vmatprep.mubr.f32.mxu0 %v2462
        %3815 = vmatmul.mubr.f32.gmra.mrb[0].mxu0 %v2460
        %v3816 = vpop.f32.mrb[0].mxu0
        %v3817 = vadd.f32 %v3667, %v3816
        %v3818 = vpop.f32.mrb[0].mxu0
        %3819 = vmatprep.mubr.f32.mxu0 %v2466
        %3820 = vmatmul.mubr.f32.gmra.mrb[0].mxu0 %v2464
        %v3821 = vpop.f32.mrb[0].mxu0
        %v3822 = vadd.f32 %v3672, %v3821
        %v3823 = vpop.f32.mrb[0].mxu0
        %3824 = vmatprep.mubr.f32.mxu0 %v2470
        %3825 = vmatmul.mubr.f32.gmra.mrb[0].mxu0 %v2468
        %v3826 = vpop.f32.mrb[0].mxu0
        %v3827 = vadd.f32 %v3677, %v3826
        %v3828 = vpop.f32.mrb[0].mxu0
        %3829 = vdwg.mxu0
        %3830 = vmatprep.subr.mxu0 0.0
        %3831 = vmatpush1.msra.mxu0 %v2977
        %3832 = vmatprep.subr.mxu0 0.0
        %3833 = vmatpush1.msra.mxu0 %v2978
        %3834 = vmatprep.subr.mxu0 0.0
        %3835 = vmatpush1.msra.mxu0 %v2979
        %3836 = vmatprep.subr.mxu0 0.0
        %3837 = vmatpush1.msra.mxu0 %v2980
        %3838 = vmatprep.subr.mxu0 0.0
        %3839 = vmatpush1.msra.mxu0 %v2981
        %3840 = vmatprep.subr.mxu0 0.0
        %3841 = vmatpush1.msra.mxu0 %v2982
        %3842 = vmatprep.subr.mxu0 0.0
        %3843 = vmatpush1.msra.mxu0 %v2983
        %3844 = vmatprep.subr.mxu0 0.0
        %3845 = vmatpush1.msra.mxu0 %v2984
        %3846 = vmatprep.subr.mxu0 0.0
        %3847 = vmatpush1.msra.mxu0 %v2985
        %3848 = vmatprep.subr.mxu0 0.0
        %3849 = vmatpush1.msra.mxu0 %v2986
        %3850 = vmatprep.subr.mxu0 0.0
        %3851 = vmatpush1.msra.mxu0 %v2987
        %3852 = vmatprep.subr.mxu0 0.0
        %3853 = vmatpush1.msra.mxu0 %v2988
        %3854 = vmatprep.subr.mxu0 0.0
        %3855 = vmatpush1.msra.mxu0 %v2989
        %3856 = vmatprep.subr.mxu0 0.0
        %3857 = vmatpush1.msra.mxu0 %v2990
        %3858 = vmatprep.subr.mxu0 0.0
        %3859 = vmatpush1.msra.mxu0 %v2991
        %3860 = vmatprep.subr.mxu0 0.0
        %3861 = vmatpush1.msra.mxu0 %v2992
        %3862 = vmatprep.subr.mxu0 0.0
        %3863 = vmatpush1.msra.mxu0 %v2993
        %3864 = vmatprep.subr.mxu0 0.0
        %3865 = vmatpush1.msra.mxu0 %v2994
        %3866 = vmatprep.subr.mxu0 0.0
        %3867 = vmatpush1.msra.mxu0 %v2995
        %3868 = vmatprep.subr.mxu0 0.0
        %3869 = vmatpush1.msra.mxu0 %v2996
        %3870 = vmatprep.subr.mxu0 0.0
        %3871 = vmatpush1.msra.mxu0 %v2997
        %3872 = vmatprep.subr.mxu0 0.0
        %3873 = vmatpush1.msra.mxu0 %v2998
        %3874 = vmatprep.subr.mxu0 0.0
        %3875 = vmatpush1.msra.mxu0 %v2999
        %3876 = vmatprep.subr.mxu0 0.0
        %3877 = vmatpush1.msra.mxu0 %v3000
        %3878 = vmatprep.subr.mxu0 0.0
        %3879 = vmatpush1.msra.mxu0 %v3001
        %3880 = vmatprep.subr.mxu0 0.0
        %3881 = vmatpush1.msra.mxu0 %v3002
        %3882 = vmatprep.subr.mxu0 0.0
        %3883 = vmatpush1.msra.mxu0 %v3003
        %3884 = vmatprep.subr.mxu0 0.0
        %3885 = vmatpush1.msra.mxu0 %v3004
        %3886 = vmatprep.subr.mxu0 0.0
        %3887 = vmatpush1.msra.mxu0 %v3005
        %3888 = vmatprep.subr.mxu0 0.0
        %3889 = vmatpush1.msra.mxu0 %v3006
        %3890 = vmatprep.subr.mxu0 0.0
        %3891 = vmatpush1.msra.mxu0 %v3007
        %3892 = vmatprep.subr.mxu0 0.0
        %3893 = vmatpush1.msra.mxu0 %v3008
        %3894 = vmatprep.mubr.f32.mxu0 %v2510
        %3895 = vmatmul.mubr.f32.gmra.mrb[0].mxu0 %v2507
        %v3896 = vpop.f32.mrb[0].mxu0
        %v3897 = vadd.f32 %v3747, %v3896
        %v3898 = vpop.f32.mrb[0].mxu0
        %3899 = vmatprep.mubr.f32.mxu0 %v2514
        %3900 = vmatmul.mubr.f32.gmra.mrb[0].mxu0 %v2512
        %v3901 = vpop.f32.mrb[0].mxu0
        %v3902 = vadd.f32 %v3752, %v3901
        %v3903 = vpop.f32.mrb[0].mxu0
        %3904 = vmatprep.mubr.f32.mxu0 %v2518
        %3905 = vmatmul.mubr.f32.gmra.mrb[0].mxu0 %v2516
        %v3906 = vpop.f32.mrb[0].mxu0
        %v3907 = vadd.f32 %v3757, %v3906
        %v3908 = vpop.f32.mrb[0].mxu0
        %3909 = vmatprep.mubr.f32.mxu0 %v2522
        %3910 = vmatmul.mubr.f32.gmra.mrb[0].mxu0 %v2520
        %v3911 = vpop.f32.mrb[0].mxu0
        %v3912 = vadd.f32 %v3762, %v3911
        %v3913 = vpop.f32.mrb[0].mxu0
        %3914 = vmatprep.mubr.f32.mxu0 %v2526
        %3915 = vmatmul.mubr.f32.gmra.mrb[0].mxu0 %v2524
        %v3916 = vpop.f32.mrb[0].mxu0
        %v3917 = vadd.f32 %v3767, %v3916
        %v3918 = vpop.f32.mrb[0].mxu0
        %3919 = vmatprep.mubr.f32.mxu0 %v2530
        %3920 = vmatmul.mubr.f32.gmra.mrb[0].mxu0 %v2528
        %v3921 = vpop.f32.mrb[0].mxu0
        %v3922 = vadd.f32 %v3772, %v3921
        %v3923 = vpop.f32.mrb[0].mxu0
        %3924 = vmatprep.mubr.f32.mxu0 %v2534
        %3925 = vmatmul.mubr.f32.gmra.mrb[0].mxu0 %v2532
        %v3926 = vpop.f32.mrb[0].mxu0
        %v3927 = vadd.f32 %v3777, %v3926
        %v3928 = vpop.f32.mrb[0].mxu0
        %3929 = vmatprep.mubr.f32.mxu0 %v2538
        %3930 = vmatmul.mubr.f32.gmra.mrb[0].mxu0 %v2536
        %v3931 = vpop.f32.mrb[0].mxu0
        %v3932 = vadd.f32 %v3782, %v3931
        %v3933 = vpop.f32.mrb[0].mxu0
        %3934 = vmatprep.mubr.f32.mxu0 %v2542
        %3935 = vmatmul.mubr.f32.gmra.mrb[0].mxu0 %v2540
        %v3936 = vpop.f32.mrb[0].mxu0
        %v3937 = vadd.f32 %v3787, %v3936
        %v3938 = vpop.f32.mrb[0].mxu0
        %3939 = vmatprep.mubr.f32.mxu0 %v2546
        %3940 = vmatmul.mubr.f32.gmra.mrb[0].mxu0 %v2544
        %v3941 = vpop.f32.mrb[0].mxu0
        %v3942 = vadd.f32 %v3792, %v3941
        %v3943 = vpop.f32.mrb[0].mxu0
        %3944 = vmatprep.mubr.f32.mxu0 %v2550
        %3945 = vmatmul.mubr.f32.gmra.mrb[0].mxu0 %v2548
        %v3946 = vpop.f32.mrb[0].mxu0
        %v3947 = vadd.f32 %v3797, %v3946
        %v3948 = vpop.f32.mrb[0].mxu0
        %3949 = vmatprep.mubr.f32.mxu0 %v2554
        %3950 = vmatmul.mubr.f32.gmra.mrb[0].mxu0 %v2552
        %v3951 = vpop.f32.mrb[0].mxu0
        %v3952 = vadd.f32 %v3802, %v3951
        %v3953 = vpop.f32.mrb[0].mxu0
        %3954 = vmatprep.mubr.f32.mxu0 %v2558
        %3955 = vmatmul.mubr.f32.gmra.mrb[0].mxu0 %v2556
        %v3956 = vpop.f32.mrb[0].mxu0
        %v3957 = vadd.f32 %v3807, %v3956
        %v3958 = vpop.f32.mrb[0].mxu0
        %3959 = vmatprep.mubr.f32.mxu0 %v2562
        %3960 = vmatmul.mubr.f32.gmra.mrb[0].mxu0 %v2560
        %v3961 = vpop.f32.mrb[0].mxu0
        %v3962 = vadd.f32 %v3812, %v3961
        %v3963 = vpop.f32.mrb[0].mxu0
        %3964 = vmatprep.mubr.f32.mxu0 %v2566
        %3965 = vmatmul.mubr.f32.gmra.mrb[0].mxu0 %v2564
        %v3966 = vpop.f32.mrb[0].mxu0
        %v3967 = vadd.f32 %v3817, %v3966
        %v3968 = vpop.f32.mrb[0].mxu0
        %3969 = vmatprep.mubr.f32.mxu0 %v2570
        %3970 = vmatmul.mubr.f32.gmra.mrb[0].mxu0 %v2568
        %v3971 = vpop.f32.mrb[0].mxu0
        %v3972 = vadd.f32 %v3822, %v3971
        %v3973 = vpop.f32.mrb[0].mxu0
        %3974 = vmatprep.mubr.f32.mxu0 %v2574
        %3975 = vmatmul.mubr.f32.gmra.mrb[0].mxu0 %v2572
        %v3976 = vpop.f32.mrb[0].mxu0
        %v3977 = vadd.f32 %v3827, %v3976
        %v3978 = vpop.f32.mrb[0].mxu0
        %3979 = vdwg.mxu0
        %3980 = vmatprep.subr.mxu0 0.0
        %3981 = vmatpush1.msra.mxu0 %v3009
        %3982 = vmatprep.subr.mxu0 0.0
        %3983 = vmatpush1.msra.mxu0 %v3010
        %3984 = vmatprep.subr.mxu0 0.0
        %3985 = vmatpush1.msra.mxu0 %v3011
        %3986 = vmatprep.subr.mxu0 0.0
        %3987 = vmatpush1.msra.mxu0 %v3012
        %3988 = vmatprep.subr.mxu0 0.0
        %3989 = vmatpush1.msra.mxu0 %v3013
        %3990 = vmatprep.subr.mxu0 0.0
        %3991 = vmatpush1.msra.mxu0 %v3014
        %3992 = vmatprep.subr.mxu0 0.0
        %3993 = vmatpush1.msra.mxu0 %v3015
        %3994 = vmatprep.subr.mxu0 0.0
        %3995 = vmatpush1.msra.mxu0 %v3016
        %3996 = vmatprep.subr.mxu0 0.0
        %3997 = vmatpush1.msra.mxu0 %v3017
        %3998 = vmatprep.subr.mxu0 0.0
        %3999 = vmatpush1.msra.mxu0 %v3018
        %4000 = vmatprep.subr.mxu0 0.0
        %4001 = vmatpush1.msra.mxu0 %v3019
        %4002 = vmatprep.subr.mxu0 0.0
        %4003 = vmatpush1.msra.mxu0 %v3020
        %4004 = vmatprep.subr.mxu0 0.0
        %4005 = vmatpush1.msra.mxu0 %v3021
        %4006 = vmatprep.subr.mxu0 0.0
        %4007 = vmatpush1.msra.mxu0 %v3022
        %4008 = vmatprep.subr.mxu0 0.0
        %4009 = vmatpush1.msra.mxu0 %v3023
        %4010 = vmatprep.subr.mxu0 0.0
        %4011 = vmatpush1.msra.mxu0 %v3024
        %4012 = vmatprep.subr.mxu0 0.0
        %4013 = vmatpush1.msra.mxu0 %v3025
        %4014 = vmatprep.subr.mxu0 0.0
        %4015 = vmatpush1.msra.mxu0 %v3026
        %4016 = vmatprep.subr.mxu0 0.0
        %4017 = vmatpush1.msra.mxu0 %v3027
        %4018 = vmatprep.subr.mxu0 0.0
        %4019 = vmatpush1.msra.mxu0 %v3028
        %4020 = vmatprep.subr.mxu0 0.0
        %4021 = vmatpush1.msra.mxu0 %v3029
        %4022 = vmatprep.subr.mxu0 0.0
        %4023 = vmatpush1.msra.mxu0 %v3030
        %4024 = vmatprep.subr.mxu0 0.0
        %4025 = vmatpush1.msra.mxu0 %v3031
        %4026 = vmatprep.subr.mxu0 0.0
        %4027 = vmatpush1.msra.mxu0 %v3032
        %4028 = vmatprep.subr.mxu0 0.0
        %4029 = vmatpush1.msra.mxu0 %v3033
        %4030 = vmatprep.subr.mxu0 0.0
        %4031 = vmatpush1.msra.mxu0 %v3034
        %4032 = vmatprep.subr.mxu0 0.0
        %4033 = vmatpush1.msra.mxu0 %v3035
        %4034 = vmatprep.subr.mxu0 0.0
        %4035 = vmatpush1.msra.mxu0 %v3036
        %4036 = vmatprep.subr.mxu0 0.0
        %4037 = vmatpush1.msra.mxu0 %v3037
        %4038 = vmatprep.subr.mxu0 0.0
        %4039 = vmatpush1.msra.mxu0 %v3038
        %4040 = vmatprep.subr.mxu0 0.0
        %4041 = vmatpush1.msra.mxu0 %v3039
        %4042 = vmatprep.subr.mxu0 0.0
        %4043 = vmatpush1.msra.mxu0 %v3040
        %4044 = vmatprep.mubr.f32.mxu0 %v2614
        %4045 = vmatmul.mubr.f32.gmra.mrb[0].mxu0 %v2611
        %v4046 = vpop.f32.mrb[0].mxu0
        %v4047 = vadd.f32 %v3897, %v4046
        %v4048 = vpop.f32.mrb[0].mxu0
        %4049 = vmatprep.mubr.f32.mxu0 %v2618
        %4050 = vmatmul.mubr.f32.gmra.mrb[0].mxu0 %v2616
        %v4051 = vpop.f32.mrb[0].mxu0
        %v4052 = vadd.f32 %v3902, %v4051
        %v4053 = vpop.f32.mrb[0].mxu0
        %4054 = vmatprep.mubr.f32.mxu0 %v2622
        %4055 = vmatmul.mubr.f32.gmra.mrb[0].mxu0 %v2620
        %v4056 = vpop.f32.mrb[0].mxu0
        %v4057 = vadd.f32 %v3907, %v4056
        %v4058 = vpop.f32.mrb[0].mxu0
        %4059 = vmatprep.mubr.f32.mxu0 %v2626
        %4060 = vmatmul.mubr.f32.gmra.mrb[0].mxu0 %v2624
        %v4061 = vpop.f32.mrb[0].mxu0
        %v4062 = vadd.f32 %v3912, %v4061
        %v4063 = vpop.f32.mrb[0].mxu0
        %4064 = vmatprep.mubr.f32.mxu0 %v2630
        %4065 = vmatmul.mubr.f32.gmra.mrb[0].mxu0 %v2628
        %v4066 = vpop.f32.mrb[0].mxu0
        %v4067 = vadd.f32 %v3917, %v4066
        %v4068 = vpop.f32.mrb[0].mxu0
        %4069 = vmatprep.mubr.f32.mxu0 %v2634
        %4070 = vmatmul.mubr.f32.gmra.mrb[0].mxu0 %v2632
        %v4071 = vpop.f32.mrb[0].mxu0
        %v4072 = vadd.f32 %v3922, %v4071
        %v4073 = vpop.f32.mrb[0].mxu0
        %4074 = vmatprep.mubr.f32.mxu0 %v2638
        %4075 = vmatmul.mubr.f32.gmra.mrb[0].mxu0 %v2636
        %v4076 = vpop.f32.mrb[0].mxu0
        %v4077 = vadd.f32 %v3927, %v4076
        %v4078 = vpop.f32.mrb[0].mxu0
        %4079 = vmatprep.mubr.f32.mxu0 %v2642
        %4080 = vmatmul.mubr.f32.gmra.mrb[0].mxu0 %v2640
        %v4081 = vpop.f32.mrb[0].mxu0
        %v4082 = vadd.f32 %v3932, %v4081
        %v4083 = vpop.f32.mrb[0].mxu0
        %4084 = vmatprep.mubr.f32.mxu0 %v2646
        %4085 = vmatmul.mubr.f32.gmra.mrb[0].mxu0 %v2644
        %v4086 = vpop.f32.mrb[0].mxu0
        %v4087 = vadd.f32 %v3937, %v4086
        %v4088 = vpop.f32.mrb[0].mxu0
        %4089 = vmatprep.mubr.f32.mxu0 %v2650
        %4090 = vmatmul.mubr.f32.gmra.mrb[0].mxu0 %v2648
        %v4091 = vpop.f32.mrb[0].mxu0
        %v4092 = vadd.f32 %v3942, %v4091
        %v4093 = vpop.f32.mrb[0].mxu0
        %4094 = vmatprep.mubr.f32.mxu0 %v2654
        %4095 = vmatmul.mubr.f32.gmra.mrb[0].mxu0 %v2652
        %v4096 = vpop.f32.mrb[0].mxu0
        %v4097 = vadd.f32 %v3947, %v4096
        %v4098 = vpop.f32.mrb[0].mxu0
        %4099 = vmatprep.mubr.f32.mxu0 %v2658
        %4100 = vmatmul.mubr.f32.gmra.mrb[0].mxu0 %v2656
        %v4101 = vpop.f32.mrb[0].mxu0
        %v4102 = vadd.f32 %v3952, %v4101
        %v4103 = vpop.f32.mrb[0].mxu0
        %4104 = vmatprep.mubr.f32.mxu0 %v2662
        %4105 = vmatmul.mubr.f32.gmra.mrb[0].mxu0 %v2660
        %v4106 = vpop.f32.mrb[0].mxu0
        %v4107 = vadd.f32 %v3957, %v4106
        %v4108 = vpop.f32.mrb[0].mxu0
        %4109 = vmatprep.mubr.f32.mxu0 %v2666
        %4110 = vmatmul.mubr.f32.gmra.mrb[0].mxu0 %v2664
        %v4111 = vpop.f32.mrb[0].mxu0
        %v4112 = vadd.f32 %v3962, %v4111
        %v4113 = vpop.f32.mrb[0].mxu0
        %4114 = vmatprep.mubr.f32.mxu0 %v2670
        %4115 = vmatmul.mubr.f32.gmra.mrb[0].mxu0 %v2668
        %v4116 = vpop.f32.mrb[0].mxu0
        %v4117 = vadd.f32 %v3967, %v4116
        %v4118 = vpop.f32.mrb[0].mxu0
        %4119 = vmatprep.mubr.f32.mxu0 %v2674
        %4120 = vmatmul.mubr.f32.gmra.mrb[0].mxu0 %v2672
        %v4121 = vpop.f32.mrb[0].mxu0
        %v4122 = vadd.f32 %v3972, %v4121
        %v4123 = vpop.f32.mrb[0].mxu0
        %4124 = vmatprep.mubr.f32.mxu0 %v2678
        %4125 = vmatmul.mubr.f32.gmra.mrb[0].mxu0 %v2676
        %v4126 = vpop.f32.mrb[0].mxu0
        %v4127 = vadd.f32 %v3977, %v4126
        %v4128 = vpop.f32.mrb[0].mxu0
        %4129 = vdwg.mxu0
        %4130 = vmatprep.subr.mxu0 0.0
        %4131 = vmatpush1.msra.mxu0 %v3041
        %4132 = vmatprep.subr.mxu0 0.0
        %4133 = vmatpush1.msra.mxu0 %v3042
        %4134 = vmatprep.subr.mxu0 0.0
        %4135 = vmatpush1.msra.mxu0 %v3043
        %4136 = vmatprep.subr.mxu0 0.0
        %4137 = vmatpush1.msra.mxu0 %v3044
        %4138 = vmatprep.subr.mxu0 0.0
        %4139 = vmatpush1.msra.mxu0 %v3045
        %4140 = vmatprep.subr.mxu0 0.0
        %4141 = vmatpush1.msra.mxu0 %v3046
        %4142 = vmatprep.subr.mxu0 0.0
        %4143 = vmatpush1.msra.mxu0 %v3047
        %4144 = vmatprep.subr.mxu0 0.0
        %4145 = vmatpush1.msra.mxu0 %v3048
        %4146 = vmatprep.subr.mxu0 0.0
        %4147 = vmatpush1.msra.mxu0 %v3049
        %4148 = vmatprep.subr.mxu0 0.0
        %4149 = vmatpush1.msra.mxu0 %v3050
        %4150 = vmatprep.subr.mxu0 0.0
        %4151 = vmatpush1.msra.mxu0 %v3051
        %4152 = vmatprep.subr.mxu0 0.0
        %4153 = vmatpush1.msra.mxu0 %v3052
        %4154 = vmatprep.subr.mxu0 0.0
        %4155 = vmatpush1.msra.mxu0 %v3053
        %4156 = vmatprep.subr.mxu0 0.0
        %4157 = vmatpush1.msra.mxu0 %v3054
        %4158 = vmatprep.subr.mxu0 0.0
        %4159 = vmatpush1.msra.mxu0 %v3055
        %4160 = vmatprep.subr.mxu0 0.0
        %4161 = vmatpush1.msra.mxu0 %v3056
        %4162 = vmatprep.subr.mxu0 0.0
        %4163 = vmatpush1.msra.mxu0 %v3057
        %4164 = vmatprep.subr.mxu0 0.0
        %4165 = vmatpush1.msra.mxu0 %v3058
        %4166 = vmatprep.subr.mxu0 0.0
        %4167 = vmatpush1.msra.mxu0 %v3059
        %4168 = vmatprep.subr.mxu0 0.0
        %4169 = vmatpush1.msra.mxu0 %v3060
        %4170 = vmatprep.subr.mxu0 0.0
        %4171 = vmatpush1.msra.mxu0 %v3061
        %4172 = vmatprep.subr.mxu0 0.0
        %4173 = vmatpush1.msra.mxu0 %v3062
        %4174 = vmatprep.subr.mxu0 0.0
        %4175 = vmatpush1.msra.mxu0 %v3063
        %4176 = vmatprep.subr.mxu0 0.0
        %4177 = vmatpush1.msra.mxu0 %v3064
        %4178 = vmatprep.subr.mxu0 0.0
        %4179 = vmatpush1.msra.mxu0 %v3065
        %4180 = vmatprep.subr.mxu0 0.0
        %4181 = vmatpush1.msra.mxu0 %v3066
        %4182 = vmatprep.subr.mxu0 0.0
        %4183 = vmatpush1.msra.mxu0 %v3067
        %4184 = vmatprep.subr.mxu0 0.0
        %4185 = vmatpush1.msra.mxu0 %v3068
        %4186 = vmatprep.subr.mxu0 0.0
        %4187 = vmatpush1.msra.mxu0 %v3069
        %4188 = vmatprep.subr.mxu0 0.0
        %4189 = vmatpush1.msra.mxu0 %v3070
        %4190 = vmatprep.subr.mxu0 0.0
        %4191 = vmatpush1.msra.mxu0 %v3071
        %4192 = vmatprep.subr.mxu0 0.0
        %4193 = vmatpush1.msra.mxu0 %v3072
        %4194 = vmatprep.mubr.f32.mxu0 %v2718
        %4195 = vmatmul.mubr.f32.gmra.mrb[0].mxu0 %v2715
        %v4196 = vpop.f32.mrb[0].mxu0
        %v4197 = vadd.f32 %v4047, %v4196
        %v4198 = vpop.f32.mrb[0].mxu0
        %4199 = vmatprep.mubr.f32.mxu0 %v2722
        %4200 = vmatmul.mubr.f32.gmra.mrb[0].mxu0 %v2720
        %v4201 = vpop.f32.mrb[0].mxu0
        %v4202 = vadd.f32 %v4052, %v4201
        %v4203 = vpop.f32.mrb[0].mxu0
        %4204 = vmatprep.mubr.f32.mxu0 %v2726
        %4205 = vmatmul.mubr.f32.gmra.mrb[0].mxu0 %v2724
        %v4206 = vpop.f32.mrb[0].mxu0
        %v4207 = vadd.f32 %v4057, %v4206
        %v4208 = vpop.f32.mrb[0].mxu0
        %4209 = vmatprep.mubr.f32.mxu0 %v2730
        %4210 = vmatmul.mubr.f32.gmra.mrb[0].mxu0 %v2728
        %v4211 = vpop.f32.mrb[0].mxu0
        %v4212 = vadd.f32 %v4062, %v4211
        %v4213 = vpop.f32.mrb[0].mxu0
        %4214 = vmatprep.mubr.f32.mxu0 %v2734
        %4215 = vmatmul.mubr.f32.gmra.mrb[0].mxu0 %v2732
        %v4216 = vpop.f32.mrb[0].mxu0
        %v4217 = vadd.f32 %v4067, %v4216
        %v4218 = vpop.f32.mrb[0].mxu0
        %4219 = vmatprep.mubr.f32.mxu0 %v2738
        %4220 = vmatmul.mubr.f32.gmra.mrb[0].mxu0 %v2736
        %v4221 = vpop.f32.mrb[0].mxu0
        %v4222 = vadd.f32 %v4072, %v4221
        %v4223 = vpop.f32.mrb[0].mxu0
        %4224 = vmatprep.mubr.f32.mxu0 %v2742
        %4225 = vmatmul.mubr.f32.gmra.mrb[0].mxu0 %v2740
        %v4226 = vpop.f32.mrb[0].mxu0
        %v4227 = vadd.f32 %v4077, %v4226
        %v4228 = vpop.f32.mrb[0].mxu0
        %4229 = vmatprep.mubr.f32.mxu0 %v2746
        %4230 = vmatmul.mubr.f32.gmra.mrb[0].mxu0 %v2744
        %v4231 = vpop.f32.mrb[0].mxu0
        %v4232 = vadd.f32 %v4082, %v4231
        %v4233 = vpop.f32.mrb[0].mxu0
        %4234 = vmatprep.mubr.f32.mxu0 %v2750
        %4235 = vmatmul.mubr.f32.gmra.mrb[0].mxu0 %v2748
        %v4236 = vpop.f32.mrb[0].mxu0
        %v4237 = vadd.f32 %v4087, %v4236
        %v4238 = vpop.f32.mrb[0].mxu0
        %4239 = vmatprep.mubr.f32.mxu0 %v2754
        %4240 = vmatmul.mubr.f32.gmra.mrb[0].mxu0 %v2752
        %v4241 = vpop.f32.mrb[0].mxu0
        %v4242 = vadd.f32 %v4092, %v4241
        %v4243 = vpop.f32.mrb[0].mxu0
        %4244 = vmatprep.mubr.f32.mxu0 %v2758
        %4245 = vmatmul.mubr.f32.gmra.mrb[0].mxu0 %v2756
        %v4246 = vpop.f32.mrb[0].mxu0
        %v4247 = vadd.f32 %v4097, %v4246
        %v4248 = vpop.f32.mrb[0].mxu0
        %4249 = vmatprep.mubr.f32.mxu0 %v2762
        %4250 = vmatmul.mubr.f32.gmra.mrb[0].mxu0 %v2760
        %v4251 = vpop.f32.mrb[0].mxu0
        %v4252 = vadd.f32 %v4102, %v4251
        %v4253 = vpop.f32.mrb[0].mxu0
        %4254 = vmatprep.mubr.f32.mxu0 %v2766
        %4255 = vmatmul.mubr.f32.gmra.mrb[0].mxu0 %v2764
        %v4256 = vpop.f32.mrb[0].mxu0
        %v4257 = vadd.f32 %v4107, %v4256
        %v4258 = vpop.f32.mrb[0].mxu0
        %4259 = vmatprep.mubr.f32.mxu0 %v2770
        %4260 = vmatmul.mubr.f32.gmra.mrb[0].mxu0 %v2768
        %v4261 = vpop.f32.mrb[0].mxu0
        %v4262 = vadd.f32 %v4112, %v4261
        %v4263 = vpop.f32.mrb[0].mxu0
        %4264 = vmatprep.mubr.f32.mxu0 %v2774
        %4265 = vmatmul.mubr.f32.gmra.mrb[0].mxu0 %v2772
        %v4266 = vpop.f32.mrb[0].mxu0
        %v4267 = vadd.f32 %v4117, %v4266
        %v4268 = vpop.f32.mrb[0].mxu0
        %4269 = vmatprep.mubr.f32.mxu0 %v2778
        %4270 = vmatmul.mubr.f32.gmra.mrb[0].mxu0 %v2776
        %v4271 = vpop.f32.mrb[0].mxu0
        %v4272 = vadd.f32 %v4122, %v4271
        %v4273 = vpop.f32.mrb[0].mxu0
        %4274 = vmatprep.mubr.f32.mxu0 %v2782
        %4275 = vmatmul.mubr.f32.gmra.mrb[0].mxu0 %v2780
        %v4276 = vpop.f32.mrb[0].mxu0
        %v4277 = vadd.f32 %v4127, %v4276
        %v4278 = vpop.f32.mrb[0].mxu0
        %4279 = vdwg.mxu0
        %v4280 = vmax.f32 %v4197, 0.0
        %v4281 = vmax.f32 %v4202, 0.0
        %v4282 = vmax.f32 %v4207, 0.0
        %v4283 = vmax.f32 %v4212, 0.0
        %v4284 = vmax.f32 %v4217, 0.0
        %v4285 = vmax.f32 %v4222, 0.0
        %v4286 = vmax.f32 %v4227, 0.0
        %v4287 = vmax.f32 %v4232, 0.0
        %v4288 = vmax.f32 %v4237, 0.0
        %v4289 = vmax.f32 %v4242, 0.0
        %v4290 = vmax.f32 %v4247, 0.0
        %v4291 = vmax.f32 %v4252, 0.0
        %v4292 = vmax.f32 %v4257, 0.0
        %v4293 = vmax.f32 %v4262, 0.0
        %v4294 = vmax.f32 %v4267, 0.0
        %v4295 = vmax.f32 %v4272, 0.0
        %v4296 = vmax.f32 %v4277, 0.0
        %s4297 = ssub.s32 %s336, 3
        %v4298 = vstv %s4297
        %v4299 = vadd.s32 %v4298, %v1894
        %v4300 = vadd.s32 %v4298, %v1895
        %v4301 = vadd.s32 %v4298, %v1896
        %v4302 = vadd.s32 %v4298, %v1897
        %v4303 = vadd.s32 %v4298, %v1898
        %v4304 = vadd.s32 %v4298, %v1899
        %v4305 = vadd.s32 %v4298, %v1900
        %v4306 = vadd.s32 %v4298, %v1901
        %v4307 = vadd.s32 %v4298, %v1902
        %v4308 = vadd.s32 %v4298, %v1903
        %v4309 = vadd.s32 %v4298, %v1904
        %v4310 = vadd.s32 %v4298, %v1905
        %v4311 = vadd.s32 %v4298, %v1906
        %v4312 = vadd.s32 %v4298, %v1907
        %v4313 = vadd.s32 %v4298, %v1908
        %v4314 = vadd.s32 %v4298, %v1909
        %v4315 = vadd.s32 %v4298, %v1910
        %vm4316 = vcmp.ge.s32.totalorder %v4299, 0
        %vm4317 = vcmp.ge.s32.totalorder %v4300, 0
        %vm4318 = vcmp.ge.s32.totalorder %v4301, 0
        %vm4319 = vcmp.ge.s32.totalorder %v4302, 0
        %vm4320 = vcmp.ge.s32.totalorder %v4303, 0
        %vm4321 = vcmp.ge.s32.totalorder %v4304, 0
        %vm4322 = vcmp.ge.s32.totalorder %v4305, 0
        %vm4323 = vcmp.ge.s32.totalorder %v4306, 0
        %vm4324 = vcmp.ge.s32.totalorder %v4307, 0
        %vm4325 = vcmp.ge.s32.totalorder %v4308, 0
        %vm4326 = vcmp.ge.s32.totalorder %v4309, 0
        %vm4327 = vcmp.ge.s32.totalorder %v4310, 0
        %vm4328 = vcmp.ge.s32.totalorder %v4311, 0
        %vm4329 = vcmp.ge.s32.totalorder %v4312, 0
        %vm4330 = vcmp.ge.s32.totalorder %v4313, 0
        %vm4331 = vcmp.ge.s32.totalorder %v4314, 0
        %vm4332 = vcmp.ge.s32.totalorder %v4315, 0
        %vm4333 = vcmp.lt.s32.totalorder %v4299, 240
        %vm4334 = vcmp.lt.s32.totalorder %v4300, 240
        %vm4335 = vcmp.lt.s32.totalorder %v4301, 240
        %vm4336 = vcmp.lt.s32.totalorder %v4302, 240
        %vm4337 = vcmp.lt.s32.totalorder %v4303, 240
        %vm4338 = vcmp.lt.s32.totalorder %v4304, 240
        %vm4339 = vcmp.lt.s32.totalorder %v4305, 240
        %vm4340 = vcmp.lt.s32.totalorder %v4306, 240
        %vm4341 = vcmp.lt.s32.totalorder %v4307, 240
        %vm4342 = vcmp.lt.s32.totalorder %v4308, 240
        %vm4343 = vcmp.lt.s32.totalorder %v4309, 240
        %vm4344 = vcmp.lt.s32.totalorder %v4310, 240
        %vm4345 = vcmp.lt.s32.totalorder %v4311, 240
        %vm4346 = vcmp.lt.s32.totalorder %v4312, 240
        %vm4347 = vcmp.lt.s32.totalorder %v4313, 240
        %vm4348 = vcmp.lt.s32.totalorder %v4314, 240
        %vm4349 = vcmp.lt.s32.totalorder %v4315, 240
        %vm4350 = vmand %vm4316, %vm4333
        %vm4351 = vmand %vm4317, %vm4334
        %vm4352 = vmand %vm4318, %vm4335
        %vm4353 = vmand %vm4319, %vm4336
        %vm4354 = vmand %vm4320, %vm4337
        %vm4355 = vmand %vm4321, %vm4338
        %vm4356 = vmand %vm4322, %vm4339
        %vm4357 = vmand %vm4323, %vm4340
        %vm4358 = vmand %vm4324, %vm4341
        %vm4359 = vmand %vm4325, %vm4342
        %vm4360 = vmand %vm4326, %vm4343
        %vm4361 = vmand %vm4327, %vm4344
        %vm4362 = vmand %vm4328, %vm4345
        %vm4363 = vmand %vm4329, %vm4346
        %vm4364 = vmand %vm4330, %vm4347
        %vm4365 = vmand %vm4331, %vm4348
        %vm4366 = vmand %vm4332, %vm4349
        %v4367 = vsel %vm4350, 1, 0
        %v4368 = vsel %vm4351, 1, 0
        %v4369 = vsel %vm4352, 1, 0
        %v4370 = vsel %vm4353, 1, 0
        %v4371 = vsel %vm4354, 1, 0
        %v4372 = vsel %vm4355, 1, 0
        %v4373 = vsel %vm4356, 1, 0
        %v4374 = vsel %vm4357, 1, 0
        %v4375 = vsel %vm4358, 1, 0
        %v4376 = vsel %vm4359, 1, 0
        %v4377 = vsel %vm4360, 1, 0
        %v4378 = vsel %vm4361, 1, 0
        %v4379 = vsel %vm4362, 1, 0
        %v4380 = vsel %vm4363, 1, 0
        %v4381 = vsel %vm4364, 1, 0
        %v4382 = vsel %vm4365, 1, 0
        %v4383 = vsel %vm4366, 1, 0
        %vm4384 = vcmp.eq.s32.totalorder %v4367, 1
        %vm4385 = vcmp.eq.s32.totalorder %v4368, 1
        %vm4386 = vcmp.eq.s32.totalorder %v4369, 1
        %vm4387 = vcmp.eq.s32.totalorder %v4370, 1
        %vm4388 = vcmp.eq.s32.totalorder %v4371, 1
        %vm4389 = vcmp.eq.s32.totalorder %v4372, 1
        %vm4390 = vcmp.eq.s32.totalorder %v4373, 1
        %vm4391 = vcmp.eq.s32.totalorder %v4374, 1
        %vm4392 = vcmp.eq.s32.totalorder %v4375, 1
        %vm4393 = vcmp.eq.s32.totalorder %v4376, 1
        %vm4394 = vcmp.eq.s32.totalorder %v4377, 1
        %vm4395 = vcmp.eq.s32.totalorder %v4378, 1
        %vm4396 = vcmp.eq.s32.totalorder %v4379, 1
        %vm4397 = vcmp.eq.s32.totalorder %v4380, 1
        %vm4398 = vcmp.eq.s32.totalorder %v4381, 1
        %vm4399 = vcmp.eq.s32.totalorder %v4382, 1
        %vm4400 = vcmp.eq.s32.totalorder %v4383, 1
        %v4401 = vsel %vm4384, %v4280, 0.0
        %v4402 = vsel %vm4385, %v4281, 0.0
        %v4403 = vsel %vm4386, %v4282, 0.0
        %v4404 = vsel %vm4387, %v4283, 0.0
        %v4405 = vsel %vm4388, %v4284, 0.0
        %v4406 = vsel %vm4389, %v4285, 0.0
        %v4407 = vsel %vm4390, %v4286, 0.0
        %v4408 = vsel %vm4391, %v4287, 0.0
        %v4409 = vsel %vm4392, %v4288, 0.0
        %v4410 = vsel %vm4393, %v4289, 0.0
        %v4411 = vsel %vm4394, %v4290, 0.0
        %v4412 = vsel %vm4395, %v4291, 0.0
        %v4413 = vsel %vm4396, %v4292, 0.0
        %v4414 = vsel %vm4397, %v4293, 0.0
        %v4415 = vsel %vm4398, %v4294, 0.0
        %v4416 = vsel %vm4399, %v4295, 0.0
        %v4417 = vsel %vm4400, %v4296, 0.0
        %v4435 = vrot.slane %v4401, 1
        %v4436 = vrot.slane %v4402, 1
        %v4437 = vsel %vm507, %v4435, %v4436
        %v4438 = vrot.slane %v4403, 1
        %v4439 = vsel %vm507, %v4436, %v4438
        %v4440 = vrot.slane %v4404, 1
        %v4441 = vsel %vm507, %v4438, %v4440
        %v4442 = vrot.slane %v4405, 1
        %v4443 = vsel %vm507, %v4440, %v4442
        %v4444 = vrot.slane %v4406, 1
        %v4445 = vsel %vm507, %v4442, %v4444
        %v4446 = vrot.slane %v4407, 1
        %v4447 = vsel %vm507, %v4444, %v4446
        %v4448 = vrot.slane %v4408, 1
        %v4449 = vsel %vm507, %v4446, %v4448
        %v4450 = vrot.slane %v4409, 1
        %v4451 = vsel %vm507, %v4448, %v4450
        %v4452 = vrot.slane %v4410, 1
        %v4453 = vsel %vm507, %v4450, %v4452
        %v4454 = vrot.slane %v4411, 1
        %v4455 = vsel %vm507, %v4452, %v4454
        %v4456 = vrot.slane %v4412, 1
        %v4457 = vsel %vm507, %v4454, %v4456
        %v4458 = vrot.slane %v4413, 1
        %v4459 = vsel %vm507, %v4456, %v4458
        %v4460 = vrot.slane %v4414, 1
        %v4461 = vsel %vm507, %v4458, %v4460
        %v4462 = vrot.slane %v4415, 1
        %v4463 = vsel %vm507, %v4460, %v4462
        %v4464 = vrot.slane %v4416, 1
        %v4465 = vsel %vm507, %v4462, %v4464
        %v4466 = vrot.slane %v4417, 1
        %v4467 = vsel %vm507, %v4464, %v4466
        %v4484 = vrot.slane %v4401, 2
        %v4485 = vrot.slane %v4402, 2
        %v4486 = vsel %vm561, %v4484, %v4485
        %v4487 = vrot.slane %v4403, 2
        %v4488 = vsel %vm561, %v4485, %v4487
        %v4489 = vrot.slane %v4404, 2
        %v4490 = vsel %vm561, %v4487, %v4489
        %v4491 = vrot.slane %v4405, 2
        %v4492 = vsel %vm561, %v4489, %v4491
        %v4493 = vrot.slane %v4406, 2
        %v4494 = vsel %vm561, %v4491, %v4493
        %v4495 = vrot.slane %v4407, 2
        %v4496 = vsel %vm561, %v4493, %v4495
        %v4497 = vrot.slane %v4408, 2
        %v4498 = vsel %vm561, %v4495, %v4497
        %v4499 = vrot.slane %v4409, 2
        %v4500 = vsel %vm561, %v4497, %v4499
        %v4501 = vrot.slane %v4410, 2
        %v4502 = vsel %vm561, %v4499, %v4501
        %v4503 = vrot.slane %v4411, 2
        %v4504 = vsel %vm561, %v4501, %v4503
        %v4505 = vrot.slane %v4412, 2
        %v4506 = vsel %vm561, %v4503, %v4505
        %v4507 = vrot.slane %v4413, 2
        %v4508 = vsel %vm561, %v4505, %v4507
        %v4509 = vrot.slane %v4414, 2
        %v4510 = vsel %vm561, %v4507, %v4509
        %v4511 = vrot.slane %v4415, 2
        %v4512 = vsel %vm561, %v4509, %v4511
        %v4513 = vrot.slane %v4416, 2
        %v4514 = vsel %vm561, %v4511, %v4513
        %v4515 = vrot.slane %v4417, 2
        %v4516 = vsel %vm561, %v4513, %v4515
        %v4533 = vrot.slane %v4401, 3
        %v4534 = vrot.slane %v4402, 3
        %v4535 = vsel %vm616, %v4533, %v4534
        %v4536 = vrot.slane %v4403, 3
        %v4537 = vsel %vm616, %v4534, %v4536
        %v4538 = vrot.slane %v4404, 3
        %v4539 = vsel %vm616, %v4536, %v4538
        %v4540 = vrot.slane %v4405, 3
        %v4541 = vsel %vm616, %v4538, %v4540
        %v4542 = vrot.slane %v4406, 3
        %v4543 = vsel %vm616, %v4540, %v4542
        %v4544 = vrot.slane %v4407, 3
        %v4545 = vsel %vm616, %v4542, %v4544
        %v4546 = vrot.slane %v4408, 3
        %v4547 = vsel %vm616, %v4544, %v4546
        %v4548 = vrot.slane %v4409, 3
        %v4549 = vsel %vm616, %v4546, %v4548
        %v4550 = vrot.slane %v4410, 3
        %v4551 = vsel %vm616, %v4548, %v4550
        %v4552 = vrot.slane %v4411, 3
        %v4553 = vsel %vm616, %v4550, %v4552
        %v4554 = vrot.slane %v4412, 3
        %v4555 = vsel %vm616, %v4552, %v4554
        %v4556 = vrot.slane %v4413, 3
        %v4557 = vsel %vm616, %v4554, %v4556
        %v4558 = vrot.slane %v4414, 3
        %v4559 = vsel %vm616, %v4556, %v4558
        %v4560 = vrot.slane %v4415, 3
        %v4561 = vsel %vm616, %v4558, %v4560
        %v4562 = vrot.slane %v4416, 3
        %v4563 = vsel %vm616, %v4560, %v4562
        %v4564 = vrot.slane %v4417, 3
        %v4565 = vsel %vm616, %v4562, %v4564
        %v4582 = vrot.slane %v4401, 4
        %v4583 = vrot.slane %v4402, 4
        %v4584 = vsel %vm672, %v4582, %v4583
        %v4585 = vrot.slane %v4403, 4
        %v4586 = vsel %vm672, %v4583, %v4585
        %v4587 = vrot.slane %v4404, 4
        %v4588 = vsel %vm672, %v4585, %v4587
        %v4589 = vrot.slane %v4405, 4
        %v4590 = vsel %vm672, %v4587, %v4589
        %v4591 = vrot.slane %v4406, 4
        %v4592 = vsel %vm672, %v4589, %v4591
        %v4593 = vrot.slane %v4407, 4
        %v4594 = vsel %vm672, %v4591, %v4593
        %v4595 = vrot.slane %v4408, 4
        %v4596 = vsel %vm672, %v4593, %v4595
        %v4597 = vrot.slane %v4409, 4
        %v4598 = vsel %vm672, %v4595, %v4597
        %v4599 = vrot.slane %v4410, 4
        %v4600 = vsel %vm672, %v4597, %v4599
        %v4601 = vrot.slane %v4411, 4
        %v4602 = vsel %vm672, %v4599, %v4601
        %v4603 = vrot.slane %v4412, 4
        %v4604 = vsel %vm672, %v4601, %v4603
        %v4605 = vrot.slane %v4413, 4
        %v4606 = vsel %vm672, %v4603, %v4605
        %v4607 = vrot.slane %v4414, 4
        %v4608 = vsel %vm672, %v4605, %v4607
        %v4609 = vrot.slane %v4415, 4
        %v4610 = vsel %vm672, %v4607, %v4609
        %v4611 = vrot.slane %v4416, 4
        %v4612 = vsel %vm672, %v4609, %v4611
        %v4613 = vrot.slane %v4417, 4
        %v4614 = vsel %vm672, %v4611, %v4613
        %v4631 = vrot.slane %v4401, 5
        %v4632 = vrot.slane %v4402, 5
        %v4633 = vsel %vm728, %v4631, %v4632
        %v4634 = vrot.slane %v4403, 5
        %v4635 = vsel %vm728, %v4632, %v4634
        %v4636 = vrot.slane %v4404, 5
        %v4637 = vsel %vm728, %v4634, %v4636
        %v4638 = vrot.slane %v4405, 5
        %v4639 = vsel %vm728, %v4636, %v4638
        %v4640 = vrot.slane %v4406, 5
        %v4641 = vsel %vm728, %v4638, %v4640
        %v4642 = vrot.slane %v4407, 5
        %v4643 = vsel %vm728, %v4640, %v4642
        %v4644 = vrot.slane %v4408, 5
        %v4645 = vsel %vm728, %v4642, %v4644
        %v4646 = vrot.slane %v4409, 5
        %v4647 = vsel %vm728, %v4644, %v4646
        %v4648 = vrot.slane %v4410, 5
        %v4649 = vsel %vm728, %v4646, %v4648
        %v4650 = vrot.slane %v4411, 5
        %v4651 = vsel %vm728, %v4648, %v4650
        %v4652 = vrot.slane %v4412, 5
        %v4653 = vsel %vm728, %v4650, %v4652
        %v4654 = vrot.slane %v4413, 5
        %v4655 = vsel %vm728, %v4652, %v4654
        %v4656 = vrot.slane %v4414, 5
        %v4657 = vsel %vm728, %v4654, %v4656
        %v4658 = vrot.slane %v4415, 5
        %v4659 = vsel %vm728, %v4656, %v4658
        %v4660 = vrot.slane %v4416, 5
        %v4661 = vsel %vm728, %v4658, %v4660
        %v4662 = vrot.slane %v4417, 5
        %v4663 = vsel %vm728, %v4660, %v4662
        %v4680 = vrot.slane %v4401, 6
        %v4681 = vrot.slane %v4402, 6
        %v4682 = vsel %vm784, %v4680, %v4681
        %v4683 = vrot.slane %v4403, 6
        %v4684 = vsel %vm784, %v4681, %v4683
        %v4685 = vrot.slane %v4404, 6
        %v4686 = vsel %vm784, %v4683, %v4685
        %v4687 = vrot.slane %v4405, 6
        %v4688 = vsel %vm784, %v4685, %v4687
        %v4689 = vrot.slane %v4406, 6
        %v4690 = vsel %vm784, %v4687, %v4689
        %v4691 = vrot.slane %v4407, 6
        %v4692 = vsel %vm784, %v4689, %v4691
        %v4693 = vrot.slane %v4408, 6
        %v4694 = vsel %vm784, %v4691, %v4693
        %v4695 = vrot.slane %v4409, 6
        %v4696 = vsel %vm784, %v4693, %v4695
        %v4697 = vrot.slane %v4410, 6
        %v4698 = vsel %vm784, %v4695, %v4697
        %v4699 = vrot.slane %v4411, 6
        %v4700 = vsel %vm784, %v4697, %v4699
        %v4701 = vrot.slane %v4412, 6
        %v4702 = vsel %vm784, %v4699, %v4701
        %v4703 = vrot.slane %v4413, 6
        %v4704 = vsel %vm784, %v4701, %v4703
        %v4705 = vrot.slane %v4414, 6
        %v4706 = vsel %vm784, %v4703, %v4705
        %v4707 = vrot.slane %v4415, 6
        %v4708 = vsel %vm784, %v4705, %v4707
        %v4709 = vrot.slane %v4416, 6
        %v4710 = vsel %vm784, %v4707, %v4709
        %v4711 = vrot.slane %v4417, 6
        %v4712 = vsel %vm784, %v4709, %v4711
        %v4729 = vrot.slane %v4401, 7
        %v4730 = vrot.slane %v4402, 7
        %v4731 = vsel %vm840, %v4729, %v4730
        %v4732 = vrot.slane %v4403, 7
        %v4733 = vsel %vm840, %v4730, %v4732
        %v4734 = vrot.slane %v4404, 7
        %v4735 = vsel %vm840, %v4732, %v4734
        %v4736 = vrot.slane %v4405, 7
        %v4737 = vsel %vm840, %v4734, %v4736
        %v4738 = vrot.slane %v4406, 7
        %v4739 = vsel %vm840, %v4736, %v4738
        %v4740 = vrot.slane %v4407, 7
        %v4741 = vsel %vm840, %v4738, %v4740
        %v4742 = vrot.slane %v4408, 7
        %v4743 = vsel %vm840, %v4740, %v4742
        %v4744 = vrot.slane %v4409, 7
        %v4745 = vsel %vm840, %v4742, %v4744
        %v4746 = vrot.slane %v4410, 7
        %v4747 = vsel %vm840, %v4744, %v4746
        %v4748 = vrot.slane %v4411, 7
        %v4749 = vsel %vm840, %v4746, %v4748
        %v4750 = vrot.slane %v4412, 7
        %v4751 = vsel %vm840, %v4748, %v4750
        %v4752 = vrot.slane %v4413, 7
        %v4753 = vsel %vm840, %v4750, %v4752
        %v4754 = vrot.slane %v4414, 7
        %v4755 = vsel %vm840, %v4752, %v4754
        %v4756 = vrot.slane %v4415, 7
        %v4757 = vsel %vm840, %v4754, %v4756
        %v4758 = vrot.slane %v4416, 7
        %v4759 = vsel %vm840, %v4756, %v4758
        %v4760 = vrot.slane %v4417, 7
        %v4761 = vsel %vm840, %v4758, %v4760
        %v4778 = vld [vmem:[#allocation8] sm:$0xff]
        %v4779 = vld [vmem:[#allocation8 + $0x8] sm:$0xff]
        %v4780 = vld [vmem:[#allocation8 + $0x10] sm:$0xff]
        %v4781 = vld [vmem:[#allocation8 + $0x18] sm:$0xff]
        %v4782 = vld [vmem:[#allocation8 + $0x20] sm:$0xff]
        %v4783 = vld [vmem:[#allocation8 + $0x28] sm:$0xff]
        %v4784 = vld [vmem:[#allocation8 + $0x30] sm:$0xff]
        %v4785 = vld [vmem:[#allocation8 + $0x38] sm:$0xff]
        %v4786 = vld [vmem:[#allocation8 + $0x40] sm:$0xff]
        %v4787 = vld [vmem:[#allocation8 + $0x48] sm:$0xff]
        %v4788 = vld [vmem:[#allocation8 + $0x50] sm:$0xff]
        %v4789 = vld [vmem:[#allocation8 + $0x58] sm:$0xff]
        %v4790 = vld [vmem:[#allocation8 + $0x60] sm:$0xff]
        %v4791 = vld [vmem:[#allocation8 + $0x68] sm:$0xff]
        %v4792 = vld [vmem:[#allocation8 + $0x70] sm:$0xff]
        %v4793 = vld [vmem:[#allocation8 + $0x78] sm:$0xff]
        %v4794 = vld [vmem:[#allocation8 + $0x80] sm:$0xff]
        %v4795 = vld [vmem:[#allocation8 + $0x88] sm:$0xff]
        %v4796 = vld [vmem:[#allocation8 + $0x90] sm:$0xff]
        %v4797 = vld [vmem:[#allocation8 + $0x98] sm:$0xff]
        %v4798 = vld [vmem:[#allocation8 + $0xa0] sm:$0xff]
        %v4799 = vld [vmem:[#allocation8 + $0xa8] sm:$0xff]
        %v4800 = vld [vmem:[#allocation8 + $0xb0] sm:$0xff]
        %v4801 = vld [vmem:[#allocation8 + $0xb8] sm:$0xff]
        %v4802 = vld [vmem:[#allocation8 + $0xc0] sm:$0xff]
        %v4803 = vld [vmem:[#allocation8 + $0xc8] sm:$0xff]
        %v4804 = vld [vmem:[#allocation8 + $0xd0] sm:$0xff]
        %v4805 = vld [vmem:[#allocation8 + $0xd8] sm:$0xff]
        %v4806 = vld [vmem:[#allocation8 + $0xe0] sm:$0xff]
        %v4807 = vld [vmem:[#allocation8 + $0xe8] sm:$0xff]
        %v4808 = vld [vmem:[#allocation8 + $0xf0] sm:$0xff]
        %v4809 = vld [vmem:[#allocation8 + $0xf8] sm:$0xff]
        %v4810 = vld [vmem:[#allocation8 + $0x100] sm:$0xff]
        %v4811 = vld [vmem:[#allocation8 + $0x108] sm:$0xff]
        %v4812 = vld [vmem:[#allocation8 + $0x110] sm:$0xff]
        %v4813 = vld [vmem:[#allocation8 + $0x118] sm:$0xff]
        %v4814 = vld [vmem:[#allocation8 + $0x120] sm:$0xff]
        %v4815 = vld [vmem:[#allocation8 + $0x128] sm:$0xff]
        %v4816 = vld [vmem:[#allocation8 + $0x130] sm:$0xff]
        %v4817 = vld [vmem:[#allocation8 + $0x138] sm:$0xff]
        %v4818 = vld [vmem:[#allocation8 + $0x140] sm:$0xff]
        %v4819 = vld [vmem:[#allocation8 + $0x148] sm:$0xff]
        %v4820 = vld [vmem:[#allocation8 + $0x150] sm:$0xff]
        %v4821 = vld [vmem:[#allocation8 + $0x158] sm:$0xff]
        %v4822 = vld [vmem:[#allocation8 + $0x160] sm:$0xff]
        %v4823 = vld [vmem:[#allocation8 + $0x168] sm:$0xff]
        %v4824 = vld [vmem:[#allocation8 + $0x170] sm:$0xff]
        %v4825 = vld [vmem:[#allocation8 + $0x178] sm:$0xff]
        %v4826 = vld [vmem:[#allocation8 + $0x180] sm:$0xff]
        %v4827 = vld [vmem:[#allocation8 + $0x188] sm:$0xff]
        %v4828 = vld [vmem:[#allocation8 + $0x190] sm:$0xff]
        %v4829 = vld [vmem:[#allocation8 + $0x198] sm:$0xff]
        %v4830 = vld [vmem:[#allocation8 + $0x1a0] sm:$0xff]
        %v4831 = vld [vmem:[#allocation8 + $0x1a8] sm:$0xff]
        %v4832 = vld [vmem:[#allocation8 + $0x1b0] sm:$0xff]
        %v4833 = vld [vmem:[#allocation8 + $0x1b8] sm:$0xff]
        %v4834 = vld [vmem:[#allocation8 + $0x1c0] sm:$0xff]
        %v4835 = vld [vmem:[#allocation8 + $0x1c8] sm:$0xff]
        %v4836 = vld [vmem:[#allocation8 + $0x1d0] sm:$0xff]
        %v4837 = vld [vmem:[#allocation8 + $0x1d8] sm:$0xff]
        %v4838 = vld [vmem:[#allocation8 + $0x1e0] sm:$0xff]
        %v4839 = vld [vmem:[#allocation8 + $0x1e8] sm:$0xff]
        %v4840 = vld [vmem:[#allocation8 + $0x1f0] sm:$0xff]
        %v4841 = vld [vmem:[#allocation8 + $0x1f8] sm:$0xff]
        %v4842 = vld [vmem:[#allocation8 + $0x200] sm:$0xff]
        %v4843 = vld [vmem:[#allocation8 + $0x208] sm:$0xff]
        %v4844 = vld [vmem:[#allocation8 + $0x210] sm:$0xff]
        %v4845 = vld [vmem:[#allocation8 + $0x218] sm:$0xff]
        %v4846 = vld [vmem:[#allocation8 + $0x220] sm:$0xff]
        %v4847 = vld [vmem:[#allocation8 + $0x228] sm:$0xff]
        %v4848 = vld [vmem:[#allocation8 + $0x230] sm:$0xff]
        %v4849 = vld [vmem:[#allocation8 + $0x238] sm:$0xff]
        %v4850 = vld [vmem:[#allocation8 + $0x240] sm:$0xff]
        %v4851 = vld [vmem:[#allocation8 + $0x248] sm:$0xff]
        %v4852 = vld [vmem:[#allocation8 + $0x250] sm:$0xff]
        %v4853 = vld [vmem:[#allocation8 + $0x258] sm:$0xff]
        %v4854 = vld [vmem:[#allocation8 + $0x260] sm:$0xff]
        %v4855 = vld [vmem:[#allocation8 + $0x268] sm:$0xff]
        %v4856 = vld [vmem:[#allocation8 + $0x270] sm:$0xff]
        %v4857 = vld [vmem:[#allocation8 + $0x278] sm:$0xff]
        %v4858 = vld [vmem:[#allocation8 + $0x280] sm:$0xff]
        %v4859 = vld [vmem:[#allocation8 + $0x288] sm:$0xff]
        %v4860 = vld [vmem:[#allocation8 + $0x290] sm:$0xff]
        %v4861 = vld [vmem:[#allocation8 + $0x298] sm:$0xff]
        %v4862 = vld [vmem:[#allocation8 + $0x2a0] sm:$0xff]
        %v4863 = vld [vmem:[#allocation8 + $0x2a8] sm:$0xff]
        %v4864 = vld [vmem:[#allocation8 + $0x2b0] sm:$0xff]
        %v4865 = vld [vmem:[#allocation8 + $0x2b8] sm:$0xff]
        %v4866 = vld [vmem:[#allocation8 + $0x2c0] sm:$0xff]
        %v4867 = vld [vmem:[#allocation8 + $0x2c8] sm:$0xff]
        %v4868 = vld [vmem:[#allocation8 + $0x2d0] sm:$0xff]
        %v4869 = vld [vmem:[#allocation8 + $0x2d8] sm:$0xff]
        %v4870 = vld [vmem:[#allocation8 + $0x2e0] sm:$0xff]
        %v4871 = vld [vmem:[#allocation8 + $0x2e8] sm:$0xff]
        %v4872 = vld [vmem:[#allocation8 + $0x2f0] sm:$0xff]
        %v4873 = vld [vmem:[#allocation8 + $0x2f8] sm:$0xff]
        %v4874 = vld [vmem:[#allocation8 + $0x300] sm:$0xff]
        %v4875 = vld [vmem:[#allocation8 + $0x308] sm:$0xff]
        %v4876 = vld [vmem:[#allocation8 + $0x310] sm:$0xff]
        %v4877 = vld [vmem:[#allocation8 + $0x318] sm:$0xff]
        %v4878 = vld [vmem:[#allocation8 + $0x320] sm:$0xff]
        %v4879 = vld [vmem:[#allocation8 + $0x328] sm:$0xff]
        %v4880 = vld [vmem:[#allocation8 + $0x330] sm:$0xff]
        %v4881 = vld [vmem:[#allocation8 + $0x338] sm:$0xff]
        %v4882 = vld [vmem:[#allocation8 + $0x340] sm:$0xff]
        %v4883 = vld [vmem:[#allocation8 + $0x348] sm:$0xff]
        %v4884 = vld [vmem:[#allocation8 + $0x350] sm:$0xff]
        %v4885 = vld [vmem:[#allocation8 + $0x358] sm:$0xff]
        %v4886 = vld [vmem:[#allocation8 + $0x360] sm:$0xff]
        %v4887 = vld [vmem:[#allocation8 + $0x368] sm:$0xff]
        %v4888 = vld [vmem:[#allocation8 + $0x370] sm:$0xff]
        %v4889 = vld [vmem:[#allocation8 + $0x378] sm:$0xff]
        %v4890 = vld [vmem:[#allocation8 + $0x380] sm:$0xff]
        %v4891 = vld [vmem:[#allocation8 + $0x388] sm:$0xff]
        %v4892 = vld [vmem:[#allocation8 + $0x390] sm:$0xff]
        %v4893 = vld [vmem:[#allocation8 + $0x398] sm:$0xff]
        %v4894 = vld [vmem:[#allocation8 + $0x3a0] sm:$0xff]
        %v4895 = vld [vmem:[#allocation8 + $0x3a8] sm:$0xff]
        %v4896 = vld [vmem:[#allocation8 + $0x3b0] sm:$0xff]
        %v4897 = vld [vmem:[#allocation8 + $0x3b8] sm:$0xff]
        %v4898 = vld [vmem:[#allocation8 + $0x3c0] sm:$0xff]
        %v4899 = vld [vmem:[#allocation8 + $0x3c8] sm:$0xff]
        %v4900 = vld [vmem:[#allocation8 + $0x3d0] sm:$0xff]
        %v4901 = vld [vmem:[#allocation8 + $0x3d8] sm:$0xff]
        %v4902 = vld [vmem:[#allocation8 + $0x3e0] sm:$0xff]
        %v4903 = vld [vmem:[#allocation8 + $0x3e8] sm:$0xff]
        %v4904 = vld [vmem:[#allocation8 + $0x3f0] sm:$0xff]
        %v4905 = vld [vmem:[#allocation8 + $0x3f8] sm:$0xff]
        %v4906 = vld [vmem:[%s6] sm:$0x1]
        %v4908 = vlaneseq
        %v4909 = vshrl.u32 %v4908, 7
        %v4910 = vsub.s32 0, %v4909
        %v4911 = vrot.slane %v4906, %v4910
        %4913 = vmatprep.subr.mxu0 0.0
        %4914 = vmatpush1.msra.mxu0 %v4778
        %4915 = vmatprep.subr.mxu0 0.0
        %4916 = vmatpush1.msra.mxu0 %v4779
        %4917 = vmatprep.subr.mxu0 0.0
        %4918 = vmatpush1.msra.mxu0 %v4780
        %4919 = vmatprep.subr.mxu0 0.0
        %4920 = vmatpush1.msra.mxu0 %v4781
        %4921 = vmatprep.subr.mxu0 0.0
        %4922 = vmatpush1.msra.mxu0 %v4782
        %4923 = vmatprep.subr.mxu0 0.0
        %4924 = vmatpush1.msra.mxu0 %v4783
        %4925 = vmatprep.subr.mxu0 0.0
        %4926 = vmatpush1.msra.mxu0 %v4784
        %4927 = vmatprep.subr.mxu0 0.0
        %4928 = vmatpush1.msra.mxu0 %v4785
        %4929 = vmatprep.subr.mxu0 0.0
        %4930 = vmatpush1.msra.mxu0 %v4786
        %4931 = vmatprep.subr.mxu0 0.0
        %4932 = vmatpush1.msra.mxu0 %v4787
        %4933 = vmatprep.subr.mxu0 0.0
        %4934 = vmatpush1.msra.mxu0 %v4788
        %4935 = vmatprep.subr.mxu0 0.0
        %4936 = vmatpush1.msra.mxu0 %v4789
        %4937 = vmatprep.subr.mxu0 0.0
        %4938 = vmatpush1.msra.mxu0 %v4790
        %4939 = vmatprep.subr.mxu0 0.0
        %4940 = vmatpush1.msra.mxu0 %v4791
        %4941 = vmatprep.subr.mxu0 0.0
        %4942 = vmatpush1.msra.mxu0 %v4792
        %4943 = vmatprep.subr.mxu0 0.0
        %4944 = vmatpush1.msra.mxu0 %v4793
        %4945 = vmatprep.subr.mxu0 0.0
        %4946 = vmatpush1.msra.mxu0 %v4794
        %4947 = vmatprep.subr.mxu0 0.0
        %4948 = vmatpush1.msra.mxu0 %v4795
        %4949 = vmatprep.subr.mxu0 0.0
        %4950 = vmatpush1.msra.mxu0 %v4796
        %4951 = vmatprep.subr.mxu0 0.0
        %4952 = vmatpush1.msra.mxu0 %v4797
        %4953 = vmatprep.subr.mxu0 0.0
        %4954 = vmatpush1.msra.mxu0 %v4798
        %4955 = vmatprep.subr.mxu0 0.0
        %4956 = vmatpush1.msra.mxu0 %v4799
        %4957 = vmatprep.subr.mxu0 0.0
        %4958 = vmatpush1.msra.mxu0 %v4800
        %4959 = vmatprep.subr.mxu0 0.0
        %4960 = vmatpush1.msra.mxu0 %v4801
        %4961 = vmatprep.subr.mxu0 0.0
        %4962 = vmatpush1.msra.mxu0 %v4802
        %4963 = vmatprep.subr.mxu0 0.0
        %4964 = vmatpush1.msra.mxu0 %v4803
        %4965 = vmatprep.subr.mxu0 0.0
        %4966 = vmatpush1.msra.mxu0 %v4804
        %4967 = vmatprep.subr.mxu0 0.0
        %4968 = vmatpush1.msra.mxu0 %v4805
        %4969 = vmatprep.subr.mxu0 0.0
        %4970 = vmatpush1.msra.mxu0 %v4806
        %4971 = vmatprep.subr.mxu0 0.0
        %4972 = vmatpush1.msra.mxu0 %v4807
        %4973 = vmatprep.subr.mxu0 0.0
        %4974 = vmatpush1.msra.mxu0 %v4808
        %4975 = vmatprep.subr.mxu0 0.0
        %4976 = vmatpush1.msra.mxu0 %v4809
        %4977 = vmatprep.mubr.f32.mxu0 %v4437
        %4978 = vmatmul.mubr.f32.gmra.mrb[0].mxu0 %v4401
        %v4979 = vpop.f32.mrb[0].mxu0
        %v4980 = vadd.f32 %v4911, %v4979
        %v4981 = vpop.f32.mrb[0].mxu0
        %4982 = vmatprep.mubr.f32.mxu0 %v4439
        %4983 = vmatmul.mubr.f32.gmra.mrb[0].mxu0 %v4402
        %v4984 = vpop.f32.mrb[0].mxu0
        %v4985 = vadd.f32 %v4911, %v4984
        %v4986 = vpop.f32.mrb[0].mxu0
        %4987 = vmatprep.mubr.f32.mxu0 %v4441
        %4988 = vmatmul.mubr.f32.gmra.mrb[0].mxu0 %v4403
        %v4989 = vpop.f32.mrb[0].mxu0
        %v4990 = vadd.f32 %v4911, %v4989
        %v4991 = vpop.f32.mrb[0].mxu0
        %4992 = vmatprep.mubr.f32.mxu0 %v4443
        %4993 = vmatmul.mubr.f32.gmra.mrb[0].mxu0 %v4404
        %v4994 = vpop.f32.mrb[0].mxu0
        %v4995 = vadd.f32 %v4911, %v4994
        %v4996 = vpop.f32.mrb[0].mxu0
        %4997 = vmatprep.mubr.f32.mxu0 %v4445
        %4998 = vmatmul.mubr.f32.gmra.mrb[0].mxu0 %v4405
        %v4999 = vpop.f32.mrb[0].mxu0
        %v5000 = vadd.f32 %v4911, %v4999
        %v5001 = vpop.f32.mrb[0].mxu0
        %5002 = vmatprep.mubr.f32.mxu0 %v4447
        %5003 = vmatmul.mubr.f32.gmra.mrb[0].mxu0 %v4406
        %v5004 = vpop.f32.mrb[0].mxu0
        %v5005 = vadd.f32 %v4911, %v5004
        %v5006 = vpop.f32.mrb[0].mxu0
        %5007 = vmatprep.mubr.f32.mxu0 %v4449
        %5008 = vmatmul.mubr.f32.gmra.mrb[0].mxu0 %v4407
        %v5009 = vpop.f32.mrb[0].mxu0
        %v5010 = vadd.f32 %v4911, %v5009
        %v5011 = vpop.f32.mrb[0].mxu0
        %5012 = vmatprep.mubr.f32.mxu0 %v4451
        %5013 = vmatmul.mubr.f32.gmra.mrb[0].mxu0 %v4408
        %v5014 = vpop.f32.mrb[0].mxu0
        %v5015 = vadd.f32 %v4911, %v5014
        %v5016 = vpop.f32.mrb[0].mxu0
        %5017 = vmatprep.mubr.f32.mxu0 %v4453
        %5018 = vmatmul.mubr.f32.gmra.mrb[0].mxu0 %v4409
        %v5019 = vpop.f32.mrb[0].mxu0
        %v5020 = vadd.f32 %v4911, %v5019
        %v5021 = vpop.f32.mrb[0].mxu0
        %5022 = vmatprep.mubr.f32.mxu0 %v4455
        %5023 = vmatmul.mubr.f32.gmra.mrb[0].mxu0 %v4410
        %v5024 = vpop.f32.mrb[0].mxu0
        %v5025 = vadd.f32 %v4911, %v5024
        %v5026 = vpop.f32.mrb[0].mxu0
        %5027 = vmatprep.mubr.f32.mxu0 %v4457
        %5028 = vmatmul.mubr.f32.gmra.mrb[0].mxu0 %v4411
        %v5029 = vpop.f32.mrb[0].mxu0
        %v5030 = vadd.f32 %v4911, %v5029
        %v5031 = vpop.f32.mrb[0].mxu0
        %5032 = vmatprep.mubr.f32.mxu0 %v4459
        %5033 = vmatmul.mubr.f32.gmra.mrb[0].mxu0 %v4412
        %v5034 = vpop.f32.mrb[0].mxu0
        %v5035 = vadd.f32 %v4911, %v5034
        %v5036 = vpop.f32.mrb[0].mxu0
        %5037 = vmatprep.mubr.f32.mxu0 %v4461
        %5038 = vmatmul.mubr.f32.gmra.mrb[0].mxu0 %v4413
        %v5039 = vpop.f32.mrb[0].mxu0
        %v5040 = vadd.f32 %v4911, %v5039
        %v5041 = vpop.f32.mrb[0].mxu0
        %5042 = vmatprep.mubr.f32.mxu0 %v4463
        %5043 = vmatmul.mubr.f32.gmra.mrb[0].mxu0 %v4414
        %v5044 = vpop.f32.mrb[0].mxu0
        %v5045 = vadd.f32 %v4911, %v5044
        %v5046 = vpop.f32.mrb[0].mxu0
        %5047 = vmatprep.mubr.f32.mxu0 %v4465
        %5048 = vmatmul.mubr.f32.gmra.mrb[0].mxu0 %v4415
        %v5049 = vpop.f32.mrb[0].mxu0
        %v5050 = vadd.f32 %v4911, %v5049
        %v5051 = vpop.f32.mrb[0].mxu0
        %5052 = vmatprep.mubr.f32.mxu0 %v4467
        %5053 = vmatmul.mubr.f32.gmra.mrb[0].mxu0 %v4416
        %v5054 = vpop.f32.mrb[0].mxu0
        %v5055 = vadd.f32 %v4911, %v5054
        %v5056 = vpop.f32.mrb[0].mxu0
        %5057 = vdwg.mxu0
        %5058 = vmatprep.subr.mxu0 0.0
        %5059 = vmatpush1.msra.mxu0 %v4810
        %5060 = vmatprep.subr.mxu0 0.0
        %5061 = vmatpush1.msra.mxu0 %v4811
        %5062 = vmatprep.subr.mxu0 0.0
        %5063 = vmatpush1.msra.mxu0 %v4812
        %5064 = vmatprep.subr.mxu0 0.0
        %5065 = vmatpush1.msra.mxu0 %v4813
        %5066 = vmatprep.subr.mxu0 0.0
        %5067 = vmatpush1.msra.mxu0 %v4814
        %5068 = vmatprep.subr.mxu0 0.0
        %5069 = vmatpush1.msra.mxu0 %v4815
        %5070 = vmatprep.subr.mxu0 0.0
        %5071 = vmatpush1.msra.mxu0 %v4816
        %5072 = vmatprep.subr.mxu0 0.0
        %5073 = vmatpush1.msra.mxu0 %v4817
        %5074 = vmatprep.subr.mxu0 0.0
        %5075 = vmatpush1.msra.mxu0 %v4818
        %5076 = vmatprep.subr.mxu0 0.0
        %5077 = vmatpush1.msra.mxu0 %v4819
        %5078 = vmatprep.subr.mxu0 0.0
        %5079 = vmatpush1.msra.mxu0 %v4820
        %5080 = vmatprep.subr.mxu0 0.0
        %5081 = vmatpush1.msra.mxu0 %v4821
        %5082 = vmatprep.subr.mxu0 0.0
        %5083 = vmatpush1.msra.mxu0 %v4822
        %5084 = vmatprep.subr.mxu0 0.0
        %5085 = vmatpush1.msra.mxu0 %v4823
        %5086 = vmatprep.subr.mxu0 0.0
        %5087 = vmatpush1.msra.mxu0 %v4824
        %5088 = vmatprep.subr.mxu0 0.0
        %5089 = vmatpush1.msra.mxu0 %v4825
        %5090 = vmatprep.subr.mxu0 0.0
        %5091 = vmatpush1.msra.mxu0 %v4826
        %5092 = vmatprep.subr.mxu0 0.0
        %5093 = vmatpush1.msra.mxu0 %v4827
        %5094 = vmatprep.subr.mxu0 0.0
        %5095 = vmatpush1.msra.mxu0 %v4828
        %5096 = vmatprep.subr.mxu0 0.0
        %5097 = vmatpush1.msra.mxu0 %v4829
        %5098 = vmatprep.subr.mxu0 0.0
        %5099 = vmatpush1.msra.mxu0 %v4830
        %5100 = vmatprep.subr.mxu0 0.0
        %5101 = vmatpush1.msra.mxu0 %v4831
        %5102 = vmatprep.subr.mxu0 0.0
        %5103 = vmatpush1.msra.mxu0 %v4832
        %5104 = vmatprep.subr.mxu0 0.0
        %5105 = vmatpush1.msra.mxu0 %v4833
        %5106 = vmatprep.subr.mxu0 0.0
        %5107 = vmatpush1.msra.mxu0 %v4834
        %5108 = vmatprep.subr.mxu0 0.0
        %5109 = vmatpush1.msra.mxu0 %v4835
        %5110 = vmatprep.subr.mxu0 0.0
        %5111 = vmatpush1.msra.mxu0 %v4836
        %5112 = vmatprep.subr.mxu0 0.0
        %5113 = vmatpush1.msra.mxu0 %v4837
        %5114 = vmatprep.subr.mxu0 0.0
        %5115 = vmatpush1.msra.mxu0 %v4838
        %5116 = vmatprep.subr.mxu0 0.0
        %5117 = vmatpush1.msra.mxu0 %v4839
        %5118 = vmatprep.subr.mxu0 0.0
        %5119 = vmatpush1.msra.mxu0 %v4840
        %5120 = vmatprep.subr.mxu0 0.0
        %5121 = vmatpush1.msra.mxu0 %v4841
        %5122 = vmatprep.mubr.f32.mxu0 %v4535
        %5123 = vmatmul.mubr.f32.gmra.mrb[0].mxu0 %v4486
        %v5124 = vpop.f32.mrb[0].mxu0
        %v5125 = vadd.f32 %v4980, %v5124
        %v5126 = vpop.f32.mrb[0].mxu0
        %5127 = vmatprep.mubr.f32.mxu0 %v4537
        %5128 = vmatmul.mubr.f32.gmra.mrb[0].mxu0 %v4488
        %v5129 = vpop.f32.mrb[0].mxu0
        %v5130 = vadd.f32 %v4985, %v5129
        %v5131 = vpop.f32.mrb[0].mxu0
        %5132 = vmatprep.mubr.f32.mxu0 %v4539
        %5133 = vmatmul.mubr.f32.gmra.mrb[0].mxu0 %v4490
        %v5134 = vpop.f32.mrb[0].mxu0
        %v5135 = vadd.f32 %v4990, %v5134
        %v5136 = vpop.f32.mrb[0].mxu0
        %5137 = vmatprep.mubr.f32.mxu0 %v4541
        %5138 = vmatmul.mubr.f32.gmra.mrb[0].mxu0 %v4492
        %v5139 = vpop.f32.mrb[0].mxu0
        %v5140 = vadd.f32 %v4995, %v5139
        %v5141 = vpop.f32.mrb[0].mxu0
        %5142 = vmatprep.mubr.f32.mxu0 %v4543
        %5143 = vmatmul.mubr.f32.gmra.mrb[0].mxu0 %v4494
        %v5144 = vpop.f32.mrb[0].mxu0
        %v5145 = vadd.f32 %v5000, %v5144
        %v5146 = vpop.f32.mrb[0].mxu0
        %5147 = vmatprep.mubr.f32.mxu0 %v4545
        %5148 = vmatmul.mubr.f32.gmra.mrb[0].mxu0 %v4496
        %v5149 = vpop.f32.mrb[0].mxu0
        %v5150 = vadd.f32 %v5005, %v5149
        %v5151 = vpop.f32.mrb[0].mxu0
        %5152 = vmatprep.mubr.f32.mxu0 %v4547
        %5153 = vmatmul.mubr.f32.gmra.mrb[0].mxu0 %v4498
        %v5154 = vpop.f32.mrb[0].mxu0
        %v5155 = vadd.f32 %v5010, %v5154
        %v5156 = vpop.f32.mrb[0].mxu0
        %5157 = vmatprep.mubr.f32.mxu0 %v4549
        %5158 = vmatmul.mubr.f32.gmra.mrb[0].mxu0 %v4500
        %v5159 = vpop.f32.mrb[0].mxu0
        %v5160 = vadd.f32 %v5015, %v5159
        %v5161 = vpop.f32.mrb[0].mxu0
        %5162 = vmatprep.mubr.f32.mxu0 %v4551
        %5163 = vmatmul.mubr.f32.gmra.mrb[0].mxu0 %v4502
        %v5164 = vpop.f32.mrb[0].mxu0
        %v5165 = vadd.f32 %v5020, %v5164
        %v5166 = vpop.f32.mrb[0].mxu0
        %5167 = vmatprep.mubr.f32.mxu0 %v4553
        %5168 = vmatmul.mubr.f32.gmra.mrb[0].mxu0 %v4504
        %v5169 = vpop.f32.mrb[0].mxu0
        %v5170 = vadd.f32 %v5025, %v5169
        %v5171 = vpop.f32.mrb[0].mxu0
        %5172 = vmatprep.mubr.f32.mxu0 %v4555
        %5173 = vmatmul.mubr.f32.gmra.mrb[0].mxu0 %v4506
        %v5174 = vpop.f32.mrb[0].mxu0
        %v5175 = vadd.f32 %v5030, %v5174
        %v5176 = vpop.f32.mrb[0].mxu0
        %5177 = vmatprep.mubr.f32.mxu0 %v4557
        %5178 = vmatmul.mubr.f32.gmra.mrb[0].mxu0 %v4508
        %v5179 = vpop.f32.mrb[0].mxu0
        %v5180 = vadd.f32 %v5035, %v5179
        %v5181 = vpop.f32.mrb[0].mxu0
        %5182 = vmatprep.mubr.f32.mxu0 %v4559
        %5183 = vmatmul.mubr.f32.gmra.mrb[0].mxu0 %v4510
        %v5184 = vpop.f32.mrb[0].mxu0
        %v5185 = vadd.f32 %v5040, %v5184
        %v5186 = vpop.f32.mrb[0].mxu0
        %5187 = vmatprep.mubr.f32.mxu0 %v4561
        %5188 = vmatmul.mubr.f32.gmra.mrb[0].mxu0 %v4512
        %v5189 = vpop.f32.mrb[0].mxu0
        %v5190 = vadd.f32 %v5045, %v5189
        %v5191 = vpop.f32.mrb[0].mxu0
        %5192 = vmatprep.mubr.f32.mxu0 %v4563
        %5193 = vmatmul.mubr.f32.gmra.mrb[0].mxu0 %v4514
        %v5194 = vpop.f32.mrb[0].mxu0
        %v5195 = vadd.f32 %v5050, %v5194
        %v5196 = vpop.f32.mrb[0].mxu0
        %5197 = vmatprep.mubr.f32.mxu0 %v4565
        %5198 = vmatmul.mubr.f32.gmra.mrb[0].mxu0 %v4516
        %v5199 = vpop.f32.mrb[0].mxu0
        %v5200 = vadd.f32 %v5055, %v5199
        %v5201 = vpop.f32.mrb[0].mxu0
        %5202 = vdwg.mxu0
        %5203 = vmatprep.subr.mxu0 0.0
        %5204 = vmatpush1.msra.mxu0 %v4842
        %5205 = vmatprep.subr.mxu0 0.0
        %5206 = vmatpush1.msra.mxu0 %v4843
        %5207 = vmatprep.subr.mxu0 0.0
        %5208 = vmatpush1.msra.mxu0 %v4844
        %5209 = vmatprep.subr.mxu0 0.0
        %5210 = vmatpush1.msra.mxu0 %v4845
        %5211 = vmatprep.subr.mxu0 0.0
        %5212 = vmatpush1.msra.mxu0 %v4846
        %5213 = vmatprep.subr.mxu0 0.0
        %5214 = vmatpush1.msra.mxu0 %v4847
        %5215 = vmatprep.subr.mxu0 0.0
        %5216 = vmatpush1.msra.mxu0 %v4848
        %5217 = vmatprep.subr.mxu0 0.0
        %5218 = vmatpush1.msra.mxu0 %v4849
        %5219 = vmatprep.subr.mxu0 0.0
        %5220 = vmatpush1.msra.mxu0 %v4850
        %5221 = vmatprep.subr.mxu0 0.0
        %5222 = vmatpush1.msra.mxu0 %v4851
        %5223 = vmatprep.subr.mxu0 0.0
        %5224 = vmatpush1.msra.mxu0 %v4852
        %5225 = vmatprep.subr.mxu0 0.0
        %5226 = vmatpush1.msra.mxu0 %v4853
        %5227 = vmatprep.subr.mxu0 0.0
        %5228 = vmatpush1.msra.mxu0 %v4854
        %5229 = vmatprep.subr.mxu0 0.0
        %5230 = vmatpush1.msra.mxu0 %v4855
        %5231 = vmatprep.subr.mxu0 0.0
        %5232 = vmatpush1.msra.mxu0 %v4856
        %5233 = vmatprep.subr.mxu0 0.0
        %5234 = vmatpush1.msra.mxu0 %v4857
        %5235 = vmatprep.subr.mxu0 0.0
        %5236 = vmatpush1.msra.mxu0 %v4858
        %5237 = vmatprep.subr.mxu0 0.0
        %5238 = vmatpush1.msra.mxu0 %v4859
        %5239 = vmatprep.subr.mxu0 0.0
        %5240 = vmatpush1.msra.mxu0 %v4860
        %5241 = vmatprep.subr.mxu0 0.0
        %5242 = vmatpush1.msra.mxu0 %v4861
        %5243 = vmatprep.subr.mxu0 0.0
        %5244 = vmatpush1.msra.mxu0 %v4862
        %5245 = vmatprep.subr.mxu0 0.0
        %5246 = vmatpush1.msra.mxu0 %v4863
        %5247 = vmatprep.subr.mxu0 0.0
        %5248 = vmatpush1.msra.mxu0 %v4864
        %5249 = vmatprep.subr.mxu0 0.0
        %5250 = vmatpush1.msra.mxu0 %v4865
        %5251 = vmatprep.subr.mxu0 0.0
        %5252 = vmatpush1.msra.mxu0 %v4866
        %5253 = vmatprep.subr.mxu0 0.0
        %5254 = vmatpush1.msra.mxu0 %v4867
        %5255 = vmatprep.subr.mxu0 0.0
        %5256 = vmatpush1.msra.mxu0 %v4868
        %5257 = vmatprep.subr.mxu0 0.0
        %5258 = vmatpush1.msra.mxu0 %v4869
        %5259 = vmatprep.subr.mxu0 0.0
        %5260 = vmatpush1.msra.mxu0 %v4870
        %5261 = vmatprep.subr.mxu0 0.0
        %5262 = vmatpush1.msra.mxu0 %v4871
        %5263 = vmatprep.subr.mxu0 0.0
        %5264 = vmatpush1.msra.mxu0 %v4872
        %5265 = vmatprep.subr.mxu0 0.0
        %5266 = vmatpush1.msra.mxu0 %v4873
        %5267 = vmatprep.mubr.f32.mxu0 %v4633
        %5268 = vmatmul.mubr.f32.gmra.mrb[0].mxu0 %v4584
        %v5269 = vpop.f32.mrb[0].mxu0
        %v5270 = vadd.f32 %v5125, %v5269
        %v5271 = vpop.f32.mrb[0].mxu0
        %5272 = vmatprep.mubr.f32.mxu0 %v4635
        %5273 = vmatmul.mubr.f32.gmra.mrb[0].mxu0 %v4586
        %v5274 = vpop.f32.mrb[0].mxu0
        %v5275 = vadd.f32 %v5130, %v5274
        %v5276 = vpop.f32.mrb[0].mxu0
        %5277 = vmatprep.mubr.f32.mxu0 %v4637
        %5278 = vmatmul.mubr.f32.gmra.mrb[0].mxu0 %v4588
        %v5279 = vpop.f32.mrb[0].mxu0
        %v5280 = vadd.f32 %v5135, %v5279
        %v5281 = vpop.f32.mrb[0].mxu0
        %5282 = vmatprep.mubr.f32.mxu0 %v4639
        %5283 = vmatmul.mubr.f32.gmra.mrb[0].mxu0 %v4590
        %v5284 = vpop.f32.mrb[0].mxu0
        %v5285 = vadd.f32 %v5140, %v5284
        %v5286 = vpop.f32.mrb[0].mxu0
        %5287 = vmatprep.mubr.f32.mxu0 %v4641
        %5288 = vmatmul.mubr.f32.gmra.mrb[0].mxu0 %v4592
        %v5289 = vpop.f32.mrb[0].mxu0
        %v5290 = vadd.f32 %v5145, %v5289
        %v5291 = vpop.f32.mrb[0].mxu0
        %5292 = vmatprep.mubr.f32.mxu0 %v4643
        %5293 = vmatmul.mubr.f32.gmra.mrb[0].mxu0 %v4594
        %v5294 = vpop.f32.mrb[0].mxu0
        %v5295 = vadd.f32 %v5150, %v5294
        %v5296 = vpop.f32.mrb[0].mxu0
        %5297 = vmatprep.mubr.f32.mxu0 %v4645
        %5298 = vmatmul.mubr.f32.gmra.mrb[0].mxu0 %v4596
        %v5299 = vpop.f32.mrb[0].mxu0
        %v5300 = vadd.f32 %v5155, %v5299
        %v5301 = vpop.f32.mrb[0].mxu0
        %5302 = vmatprep.mubr.f32.mxu0 %v4647
        %5303 = vmatmul.mubr.f32.gmra.mrb[0].mxu0 %v4598
        %v5304 = vpop.f32.mrb[0].mxu0
        %v5305 = vadd.f32 %v5160, %v5304
        %v5306 = vpop.f32.mrb[0].mxu0
        %5307 = vmatprep.mubr.f32.mxu0 %v4649
        %5308 = vmatmul.mubr.f32.gmra.mrb[0].mxu0 %v4600
        %v5309 = vpop.f32.mrb[0].mxu0
        %v5310 = vadd.f32 %v5165, %v5309
        %v5311 = vpop.f32.mrb[0].mxu0
        %5312 = vmatprep.mubr.f32.mxu0 %v4651
        %5313 = vmatmul.mubr.f32.gmra.mrb[0].mxu0 %v4602
        %v5314 = vpop.f32.mrb[0].mxu0
        %v5315 = vadd.f32 %v5170, %v5314
        %v5316 = vpop.f32.mrb[0].mxu0
        %5317 = vmatprep.mubr.f32.mxu0 %v4653
        %5318 = vmatmul.mubr.f32.gmra.mrb[0].mxu0 %v4604
        %v5319 = vpop.f32.mrb[0].mxu0
        %v5320 = vadd.f32 %v5175, %v5319
        %v5321 = vpop.f32.mrb[0].mxu0
        %5322 = vmatprep.mubr.f32.mxu0 %v4655
        %5323 = vmatmul.mubr.f32.gmra.mrb[0].mxu0 %v4606
        %v5324 = vpop.f32.mrb[0].mxu0
        %v5325 = vadd.f32 %v5180, %v5324
        %v5326 = vpop.f32.mrb[0].mxu0
        %5327 = vmatprep.mubr.f32.mxu0 %v4657
        %5328 = vmatmul.mubr.f32.gmra.mrb[0].mxu0 %v4608
        %v5329 = vpop.f32.mrb[0].mxu0
        %v5330 = vadd.f32 %v5185, %v5329
        %v5331 = vpop.f32.mrb[0].mxu0
        %5332 = vmatprep.mubr.f32.mxu0 %v4659
        %5333 = vmatmul.mubr.f32.gmra.mrb[0].mxu0 %v4610
        %v5334 = vpop.f32.mrb[0].mxu0
        %v5335 = vadd.f32 %v5190, %v5334
        %v5336 = vpop.f32.mrb[0].mxu0
        %5337 = vmatprep.mubr.f32.mxu0 %v4661
        %5338 = vmatmul.mubr.f32.gmra.mrb[0].mxu0 %v4612
        %v5339 = vpop.f32.mrb[0].mxu0
        %v5340 = vadd.f32 %v5195, %v5339
        %v5341 = vpop.f32.mrb[0].mxu0
        %5342 = vmatprep.mubr.f32.mxu0 %v4663
        %5343 = vmatmul.mubr.f32.gmra.mrb[0].mxu0 %v4614
        %v5344 = vpop.f32.mrb[0].mxu0
        %v5345 = vadd.f32 %v5200, %v5344
        %v5346 = vpop.f32.mrb[0].mxu0
        %5347 = vdwg.mxu0
        %5348 = vmatprep.subr.mxu0 0.0
        %5349 = vmatpush1.msra.mxu0 %v4874
        %5350 = vmatprep.subr.mxu0 0.0
        %5351 = vmatpush1.msra.mxu0 %v4875
        %5352 = vmatprep.subr.mxu0 0.0
        %5353 = vmatpush1.msra.mxu0 %v4876
        %5354 = vmatprep.subr.mxu0 0.0
        %5355 = vmatpush1.msra.mxu0 %v4877
        %5356 = vmatprep.subr.mxu0 0.0
        %5357 = vmatpush1.msra.mxu0 %v4878
        %5358 = vmatprep.subr.mxu0 0.0
        %5359 = vmatpush1.msra.mxu0 %v4879
        %5360 = vmatprep.subr.mxu0 0.0
        %5361 = vmatpush1.msra.mxu0 %v4880
        %5362 = vmatprep.subr.mxu0 0.0
        %5363 = vmatpush1.msra.mxu0 %v4881
        %5364 = vmatprep.subr.mxu0 0.0
        %5365 = vmatpush1.msra.mxu0 %v4882
        %5366 = vmatprep.subr.mxu0 0.0
        %5367 = vmatpush1.msra.mxu0 %v4883
        %5368 = vmatprep.subr.mxu0 0.0
        %5369 = vmatpush1.msra.mxu0 %v4884
        %5370 = vmatprep.subr.mxu0 0.0
        %5371 = vmatpush1.msra.mxu0 %v4885
        %5372 = vmatprep.subr.mxu0 0.0
        %5373 = vmatpush1.msra.mxu0 %v4886
        %5374 = vmatprep.subr.mxu0 0.0
        %5375 = vmatpush1.msra.mxu0 %v4887
        %5376 = vmatprep.subr.mxu0 0.0
        %5377 = vmatpush1.msra.mxu0 %v4888
        %5378 = vmatprep.subr.mxu0 0.0
        %5379 = vmatpush1.msra.mxu0 %v4889
        %5380 = vmatprep.subr.mxu0 0.0
        %5381 = vmatpush1.msra.mxu0 %v4890
        %5382 = vmatprep.subr.mxu0 0.0
        %5383 = vmatpush1.msra.mxu0 %v4891
        %5384 = vmatprep.subr.mxu0 0.0
        %5385 = vmatpush1.msra.mxu0 %v4892
        %5386 = vmatprep.subr.mxu0 0.0
        %5387 = vmatpush1.msra.mxu0 %v4893
        %5388 = vmatprep.subr.mxu0 0.0
        %5389 = vmatpush1.msra.mxu0 %v4894
        %5390 = vmatprep.subr.mxu0 0.0
        %5391 = vmatpush1.msra.mxu0 %v4895
        %5392 = vmatprep.subr.mxu0 0.0
        %5393 = vmatpush1.msra.mxu0 %v4896
        %5394 = vmatprep.subr.mxu0 0.0
        %5395 = vmatpush1.msra.mxu0 %v4897
        %5396 = vmatprep.subr.mxu0 0.0
        %5397 = vmatpush1.msra.mxu0 %v4898
        %5398 = vmatprep.subr.mxu0 0.0
        %5399 = vmatpush1.msra.mxu0 %v4899
        %5400 = vmatprep.subr.mxu0 0.0
        %5401 = vmatpush1.msra.mxu0 %v4900
        %5402 = vmatprep.subr.mxu0 0.0
        %5403 = vmatpush1.msra.mxu0 %v4901
        %5404 = vmatprep.subr.mxu0 0.0
        %5405 = vmatpush1.msra.mxu0 %v4902
        %5406 = vmatprep.subr.mxu0 0.0
        %5407 = vmatpush1.msra.mxu0 %v4903
        %5408 = vmatprep.subr.mxu0 0.0
        %5409 = vmatpush1.msra.mxu0 %v4904
        %5410 = vmatprep.subr.mxu0 0.0
        %5411 = vmatpush1.msra.mxu0 %v4905
        %5412 = vmatprep.mubr.f32.mxu0 %v4731
        %5413 = vmatmul.mubr.f32.gmra.mrb[0].mxu0 %v4682
        %v5414 = vpop.f32.mrb[0].mxu0
        %v5415 = vadd.f32 %v5270, %v5414
        %v5416 = vpop.f32.mrb[0].mxu0
        %5417 = vmatprep.mubr.f32.mxu0 %v4733
        %5418 = vmatmul.mubr.f32.gmra.mrb[0].mxu0 %v4684
        %v5419 = vpop.f32.mrb[0].mxu0
        %v5420 = vadd.f32 %v5275, %v5419
        %v5421 = vpop.f32.mrb[0].mxu0
        %5422 = vmatprep.mubr.f32.mxu0 %v4735
        %5423 = vmatmul.mubr.f32.gmra.mrb[0].mxu0 %v4686
        %v5424 = vpop.f32.mrb[0].mxu0
        %v5425 = vadd.f32 %v5280, %v5424
        %v5426 = vpop.f32.mrb[0].mxu0
        %5427 = vmatprep.mubr.f32.mxu0 %v4737
        %5428 = vmatmul.mubr.f32.gmra.mrb[0].mxu0 %v4688
        %v5429 = vpop.f32.mrb[0].mxu0
        %v5430 = vadd.f32 %v5285, %v5429
        %v5431 = vpop.f32.mrb[0].mxu0
        %5432 = vmatprep.mubr.f32.mxu0 %v4739
        %5433 = vmatmul.mubr.f32.gmra.mrb[0].mxu0 %v4690
        %v5434 = vpop.f32.mrb[0].mxu0
        %v5435 = vadd.f32 %v5290, %v5434
        %v5436 = vpop.f32.mrb[0].mxu0
        %5437 = vmatprep.mubr.f32.mxu0 %v4741
        %5438 = vmatmul.mubr.f32.gmra.mrb[0].mxu0 %v4692
        %v5439 = vpop.f32.mrb[0].mxu0
        %v5440 = vadd.f32 %v5295, %v5439
        %v5441 = vpop.f32.mrb[0].mxu0
        %5442 = vmatprep.mubr.f32.mxu0 %v4743
        %5443 = vmatmul.mubr.f32.gmra.mrb[0].mxu0 %v4694
        %v5444 = vpop.f32.mrb[0].mxu0
        %v5445 = vadd.f32 %v5300, %v5444
        %v5446 = vpop.f32.mrb[0].mxu0
        %5447 = vmatprep.mubr.f32.mxu0 %v4745
        %5448 = vmatmul.mubr.f32.gmra.mrb[0].mxu0 %v4696
        %v5449 = vpop.f32.mrb[0].mxu0
        %v5450 = vadd.f32 %v5305, %v5449
        %v5451 = vpop.f32.mrb[0].mxu0
        %5452 = vmatprep.mubr.f32.mxu0 %v4747
        %5453 = vmatmul.mubr.f32.gmra.mrb[0].mxu0 %v4698
        %v5454 = vpop.f32.mrb[0].mxu0
        %v5455 = vadd.f32 %v5310, %v5454
        %v5456 = vpop.f32.mrb[0].mxu0
        %5457 = vmatprep.mubr.f32.mxu0 %v4749
        %5458 = vmatmul.mubr.f32.gmra.mrb[0].mxu0 %v4700
        %v5459 = vpop.f32.mrb[0].mxu0
        %v5460 = vadd.f32 %v5315, %v5459
        %v5461 = vpop.f32.mrb[0].mxu0
        %5462 = vmatprep.mubr.f32.mxu0 %v4751
        %5463 = vmatmul.mubr.f32.gmra.mrb[0].mxu0 %v4702
        %v5464 = vpop.f32.mrb[0].mxu0
        %v5465 = vadd.f32 %v5320, %v5464
        %v5466 = vpop.f32.mrb[0].mxu0
        %5467 = vmatprep.mubr.f32.mxu0 %v4753
        %5468 = vmatmul.mubr.f32.gmra.mrb[0].mxu0 %v4704
        %v5469 = vpop.f32.mrb[0].mxu0
        %v5470 = vadd.f32 %v5325, %v5469
        %v5471 = vpop.f32.mrb[0].mxu0
        %5472 = vmatprep.mubr.f32.mxu0 %v4755
        %5473 = vmatmul.mubr.f32.gmra.mrb[0].mxu0 %v4706
        %v5474 = vpop.f32.mrb[0].mxu0
        %v5475 = vadd.f32 %v5330, %v5474
        %v5476 = vpop.f32.mrb[0].mxu0
        %5477 = vmatprep.mubr.f32.mxu0 %v4757
        %5478 = vmatmul.mubr.f32.gmra.mrb[0].mxu0 %v4708
        %v5479 = vpop.f32.mrb[0].mxu0
        %v5480 = vadd.f32 %v5335, %v5479
        %v5481 = vpop.f32.mrb[0].mxu0
        %5482 = vmatprep.mubr.f32.mxu0 %v4759
        %5483 = vmatmul.mubr.f32.gmra.mrb[0].mxu0 %v4710
        %v5484 = vpop.f32.mrb[0].mxu0
        %v5485 = vadd.f32 %v5340, %v5484
        %v5486 = vpop.f32.mrb[0].mxu0
        %5487 = vmatprep.mubr.f32.mxu0 %v4761
        %5488 = vmatmul.mubr.f32.gmra.mrb[0].mxu0 %v4712
        %v5489 = vpop.f32.mrb[0].mxu0
        %v5490 = vadd.f32 %v5345, %v5489
        %v5491 = vpop.f32.mrb[0].mxu0
        %5492 = vdwg.mxu0
        %v5493 = vmax.f32 %v5415, 0.0
        %v5494 = vmax.f32 %v5420, 0.0
        %v5495 = vmax.f32 %v5425, 0.0
        %v5496 = vmax.f32 %v5430, 0.0
        %v5497 = vmax.f32 %v5435, 0.0
        %v5498 = vmax.f32 %v5440, 0.0
        %v5499 = vmax.f32 %v5445, 0.0
        %v5500 = vmax.f32 %v5450, 0.0
        %v5501 = vmax.f32 %v5455, 0.0
        %v5502 = vmax.f32 %v5460, 0.0
        %v5503 = vmax.f32 %v5465, 0.0
        %v5504 = vmax.f32 %v5470, 0.0
        %v5505 = vmax.f32 %v5475, 0.0
        %v5506 = vmax.f32 %v5480, 0.0
        %v5507 = vmax.f32 %v5485, 0.0
        %v5508 = vmax.f32 %v5490, 0.0
        %5509 = vst [vmem:[%s329] sm:$0xff] %v5493
        %5510 = vst [vmem:[%s329 + $0x8] sm:$0xff] %v5494
        %5511 = vst [vmem:[%s329 + $0x10] sm:$0xff] %v5495
        %5512 = vst [vmem:[%s329 + $0x18] sm:$0xff] %v5496
        %5513 = vst [vmem:[%s329 + $0x20] sm:$0xff] %v5497
        %5514 = vst [vmem:[%s329 + $0x28] sm:$0xff] %v5498
        %5515 = vst [vmem:[%s329 + $0x30] sm:$0xff] %v5499
        %5516 = vst [vmem:[%s329 + $0x38] sm:$0xff] %v5500
        %5517 = vst [vmem:[%s329 + $0x40] sm:$0xff] %v5501
        %5518 = vst [vmem:[%s329 + $0x48] sm:$0xff] %v5502
        %5519 = vst [vmem:[%s329 + $0x50] sm:$0xff] %v5503
        %5520 = vst [vmem:[%s329 + $0x58] sm:$0xff] %v5504
        %5521 = vst [vmem:[%s329 + $0x60] sm:$0xff] %v5505
        %5522 = vst [vmem:[%s329 + $0x68] sm:$0xff] %v5506
        %5523 = vst [vmem:[%s329 + $0x70] sm:$0xff] %v5507
        %5524 = vst [vmem:[%s329 + $0x78] sm:$0xff] %v5508
        %s5525 = sand.u32 %s197, 1
        %s5526 = scalar_lea.sflag [#allocation5], %s5525
        %s5527 = sand.u32 %s197, 1
        %s5528 = smul.addr %s5527, 128
        %s5529 = scalar_lea.vmem [#allocation9], %s5528
        // Predicated region
        $region65: #{tpu_custom_call.1} parent=47 // pred_check
          %p5530 = pneg %p207
        $region66: #{tpu_custom_call.1} parent=47 // pred_check_branch
          %5532 = sbr.rel (%p5530) target = $region68
        $region67: #{tpu_custom_call.1} parent=47 // pred_region
          %s5533 = smul.u32 16, %s28
          %s5535 = ssub.s32 2048, 2048
          %5536 = vsyncadd %s5526, %s5535
          %s5537 = smul.addr %s27, 32
          %s5538 = sadd.s32 %s5533, %s5537
          %s5539 = smul.addr %s5538, 128
          %s5540 = scalar_lea.hbm %s7, %s5539
          %s5541 = sshll.u32 %s5529, 4
          %s5542 = int_to_ptr.vmem [resolvable:$true] %s5541
          %5547 = dma.vmem_to_hbm [thread:$0]  %s5542, 2048, %s5540, %s5526, 128, 128, 8
        $region68: #{tpu_custom_call.1} parent=47 // pred_fallthru
          _
      $region48: #{tpu_custom_call.1} parent=5 // pred_fallthru
        _
      %p5548 = scmp.le.s32.totalorder 2, %s18
      // Predicated region
      $region69: #{tpu_custom_call.1} parent=5 // pred_check
        %p5549 = pneg %p5548
      $region70: #{tpu_custom_call.1} parent=5 // pred_check_branch
        %5551 = sbr.rel (%p5549) target = $region72
      $region71: #{tpu_custom_call.1} parent=5 // pred_region
        %s5552 = ssub.s32 %s18, 2
        // Predicated region
        $region73: #{tpu_custom_call.1} parent=71 // pred_check
          %p5553 = pneg %p213
        $region74: #{tpu_custom_call.1} parent=71 // pred_check_branch
          %5555 = sbr.rel (%p5553) target = $region76
        $region75: #{tpu_custom_call.1} parent=71 // pred_region
          %s5556 = sand.u32 %s198, 1
          %s5557 = scalar_lea.sflag [#allocation5], %s5556
          %s5558 = sand.u32 %s198, 1
          %s5559 = smul.addr %s5558, 128
          %s5560 = scalar_lea.vmem [#allocation9], %s5559
          %5561 = dma.done %s5557, 2048
        $region76: #{tpu_custom_call.1} parent=71 // pred_fallthru
          _
      $region72: #{tpu_custom_call.1} parent=5 // pred_fallthru
        _
    $region6: #{tpu_custom_call.1} parent=1 // loop_footer
      %s22 = sadd.s32 1, %s18
    $region7: #{tpu_custom_call.1} parent=1 // loop_footer_branch
      %17 = sbr.rel target = $region3
    $region8: #{tpu_custom_call.1} parent=1 // loop_exit
      _
    %5562 = vsyncpa [#allocation4], 1
    %s5563 = scalar_lea.sflag [#allocation4], 1
    %5564 = vsyncpa %s5563, 1
    %5565 = vsyncpa [#allocation7], 1
    %5566 = vsyncpa [#allocation5], 1
    %s5567 = scalar_lea.sflag [#allocation5], 1
    %5568 = vsyncpa %s5567, 1

</llo_original>
